<compile_context>
chip_gen: v5e
topology: v5e:2x2
jax: 0.10.0
libtpu: 0.0.40
codegen_flags: <defaults>
</compile_context>

<pallas_src>
import functools

import jax
import jax.numpy as jnp
from jax.experimental import pallas as pl
from jax.experimental.pallas import tpu as pltpu

EPS = 1e-5
LANE = 128


def _round_up(x, m):
    return (x + m - 1) // m * m


def _tpu_vmem_capacity_bytes():
    """Best-effort physical VMEM query; conservative fallback (v7x-sized)."""
    try:
        info = pltpu.get_tpu_info()
        for attr in ("vmem_capacity_bytes", "vmem_size_bytes", "vmem_bytes"):
            v = getattr(info, attr, None)
            if v:
                return int(v)
    except Exception:
        pass
    return 64 << 20


def _default_tk_target():
    # bigger K tiles on 128-MiB generations (v4/v5e/v6e), smaller on v7x
    return 2048 if _tpu_vmem_capacity_bytes() >= (120 << 20) else 1024


def _vmem_budget_bytes():
    cap = _tpu_vmem_capacity_bytes()
    return (96 << 20) if cap >= (120 << 20) else (48 << 20)


def _bn_train(h, gamma=None, beta=None):
    """BatchNorm1d forward with batch statistics (training mode), f32 math."""
    mean = jnp.mean(h, axis=0, keepdims=True)
    hc = h - mean                      # formed once, reused for var + normalise
    var = jnp.mean(hc * hc, axis=0, keepdims=True)   # biased variance
    hn = hc * jax.lax.rsqrt(var + EPS)
    if gamma is not None:
        hn = hn * gamma + beta
    return hn


def _simsiam_kernel(
    x1_ref, x2_ref,                         # (N, TK) f32 input K-tiles (per view)
    wf_ref,                                 # (TK, P) bf16 backbone K-tile (streamed ONCE)
    w1_ref, w2_ref, w3_ref,                 # projection weights, bf16, VMEM-resident
    wp1_ref, wp2_ref,                       # predictor weights, bf16, VMEM-resident
    vec_ref,                                # (8, Vmax) f32 packed gamma/beta/bias
    z_ref, p_ref,                           # (2N, D) outputs: rows [0:N]=view1, [N:2N]=view2
    acc_ref,                                # (2, N, P) f32 backbone accumulators
    *, n, p_pad, h_pad, d_pad,
):
    f32 = jnp.float32
    bf16 = jnp.bfloat16
    k = pl.program_id(0)

    # ---- backbone: flatten -> Linear, K-tiled over flat_dim -----------------
    @pl.when(k == 0)
    def _():
        acc_ref[...] = jnp.zeros_like(acc_ref)

    wf = wf_ref[...]                                     # load once, use for both views
    acc_ref[0] += jnp.dot(x1_ref[...].astype(bf16), wf, preferred_element_type=f32)
    acc_ref[1] += jnp.dot(x2_ref[...].astype(bf16), wf, preferred_element_type=f32)

    # ---- on last K step: projection MLP + predictor, per view ---------------
    @pl.when(k == pl.num_programs(0) - 1)
    def _():
        g1 = vec_ref[0:1, :p_pad]
        b1 = vec_ref[1:2, :p_pad]
        g2 = vec_ref[2:3, :p_pad]
        b2 = vec_ref[3:4, :p_pad]
        gp = vec_ref[4:5, :h_pad]
        bp = vec_ref[5:6, :h_pad]
        bp2 = vec_ref[6:7, :d_pad]

        # BatchNorm statistics must stay per-view (N rows each).
        for v in range(2):
            rows = slice(v * n, (v + 1) * n)
            # backbone bias dropped: constant over the batch, cancelled by the
            # BN mean subtraction two ops below -> forward values identical.
            h = acc_ref[v]                                            # (N, P) f32

            # projection layer 1: Linear(no bias) -> BN -> ReLU
            h = jnp.dot(h.astype(bf16), w1_ref[...], preferred_element_type=f32)
            h = jnp.maximum(_bn_train(h, g1, b1), 0.0)
            # projection layer 2: Linear(no bias) -> BN -> ReLU
            h = jnp.dot(h.astype(bf16), w2_ref[...], preferred_element_type=f32)
            h = jnp.maximum(_bn_train(h, g2, b2), 0.0)
            # original classifier Linear -> BN(dim, affine=False)
            # (classifier bias dropped: cancelled by the BN mean subtraction)
            h = jnp.dot(h.astype(bf16), w3_ref[...], preferred_element_type=f32)
            z = _bn_train(h)
            z_ref[rows, :] = z.astype(z_ref.dtype)

            # predictor: Linear(no bias) -> BN -> ReLU -> Linear(+bias)
            q = jnp.dot(z.astype(bf16), wp1_ref[...], preferred_element_type=f32)
            q = jnp.maximum(_bn_train(q, gp, bp), 0.0)
            p = jnp.dot(q.astype(bf16), wp2_ref[...], preferred_element_type=f32) + bp2
            p_ref[rows, :] = p.astype(p_ref.dtype)


def _prepare_params(params, f_pad, p_pad, d_pad, h_pad):
    """Pad feature dims to lane multiples, cast weights to bf16, pack vectors."""
    bf16 = jnp.bfloat16

    def pad2(w, r, c):
        return jnp.pad(w, ((0, r - w.shape[0]), (0, c - w.shape[1])))

    wf = pad2(params["wf"], f_pad, p_pad).astype(bf16)
    w1 = pad2(params["w1"], p_pad, p_pad).astype(bf16)
    w2 = pad2(params["w2"], p_pad, p_pad).astype(bf16)
    w3 = pad2(params["w3"], p_pad, d_pad).astype(bf16)
    wp1 = pad2(params["wp1"], d_pad, h_pad).astype(bf16)
    wp2 = pad2(params["wp2"], h_pad, d_pad).astype(bf16)

    vmax = max(p_pad, d_pad, h_pad)

    def padv(v):
        v = v.reshape(1, -1).astype(jnp.float32)
        return jnp.pad(v, ((0, 0), (0, vmax - v.shape[1])))

    vecs = jnp.concatenate(
        [
            padv(params["g1"]), padv(params["b1"]),
            padv(params["g2"]), padv(params["b2"]),
            padv(params["gp"]), padv(params["bp"]),
            padv(params["bp2"]),
            jnp.zeros((1, vmax), jnp.float32),      # pad to 8 sublanes
        ],
        axis=0,
    )
    return wf, w1, w2, w3, wp1, wp2, vecs


def simsiam_forward(x1, x2, params, *, tk_target=None, single_buffer_weights=True):
    """SimSiam forward: returns (p1, p2, z1.detach, z2.detach), each (N, dim)."""
    n = x1.shape[0]
    x1f = x1.reshape(n, -1).astype(jnp.float32)
    x2f = x2.reshape(n, -1).astype(jnp.float32)
    flat = x1f.shape[1]
    prev, dim = params["w3"].shape
    pred = params["wp1"].shape[1]

    # lane padding for every feature dimension
    p_pad = _round_up(prev, LANE)
    d_pad = _round_up(dim, LANE)
    h_pad = _round_up(pred, LANE)

    # K tile: clamp upward -- if the whole flat dim fits one target tile, use
    # a single K step; otherwise use the generation-dependent target.
    if tk_target is None:
        tk_target = _default_tk_target()
    f_lane = _round_up(flat, LANE)
    if f_lane <= tk_target:
        tk, f_pad = f_lane, f_lane
    else:
        tk = tk_target
        f_pad = _round_up(flat, tk)
    kt = f_pad // tk

    # x stays f32 in HBM (no bf16 staging copy); pad the flat dim only if the
    # chosen tile doesn't divide it.
    if f_pad != flat:
        x1f = jnp.pad(x1f, ((0, 0), (0, f_pad - flat)))
        x2f = jnp.pad(x2f, ((0, 0), (0, f_pad - flat)))

    wf, w1, w2, w3, wp1, wp2, vecs = _prepare_params(
        params, f_pad, p_pad, d_pad, h_pad)
    vmax = vecs.shape[1]

    def const_spec(shape):
        # Weight blocks never change index -> single-buffer them (saves VMEM,
        # mostly relevant on v7x).  Fall back to default buffering if the
        # installed jax doesn't support pipeline_mode / Buffered(1).
        if single_buffer_weights:
            try:
                return pl.BlockSpec(shape, lambda k: (0, 0),
                                    pipeline_mode=pl.Buffered(1))
            except (TypeError, ValueError, AttributeError):
                pass
        return pl.BlockSpec(shape, lambda k: (0, 0))

    kernel = functools.partial(
        _simsiam_kernel, n=n, p_pad=p_pad, h_pad=h_pad, d_pad=d_pad)

    z, p = pl.pallas_call(
        kernel,
        out_shape=(
            jax.ShapeDtypeStruct((2 * n, d_pad), jnp.float32),
            jax.ShapeDtypeStruct((2 * n, d_pad), jnp.float32),
        ),
        grid_spec=pltpu.PrefetchScalarGridSpec(
            num_scalar_prefetch=0,
            grid=(kt,),                                         # backbone K tiles
            in_specs=[
                pl.BlockSpec((n, tk), lambda k: (0, k)),        # x1 (view 1)
                pl.BlockSpec((n, tk), lambda k: (0, k)),        # x2 (view 2)
                pl.BlockSpec((tk, p_pad), lambda k: (k, 0)),    # wf, streamed once
                const_spec((p_pad, p_pad)),                     # w1
                const_spec((p_pad, p_pad)),                     # w2
                const_spec((p_pad, d_pad)),                     # w3
                const_spec((d_pad, h_pad)),                     # wp1
                const_spec((h_pad, d_pad)),                     # wp2
                const_spec((8, vmax)),                          # packed vecs
            ],
            out_specs=(
                pl.BlockSpec((2 * n, d_pad), lambda k: (0, 0)),
                pl.BlockSpec((2 * n, d_pad), lambda k: (0, 0)),
            ),
            scratch_shapes=[pltpu.VMEM((2, n, p_pad), jnp.float32)],
        ),
        compiler_params=pltpu.CompilerParams(
            dimension_semantics=("arbitrary",),
            vmem_limit_bytes=_vmem_budget_bytes(),
        ),
    )(x1f, x2f, wf, w1, w2, w3, wp1, wp2, vecs)

    z = z[:, :dim]
    p = p[:, :dim]
    p1, p2 = p[:n], p[n:]
    z1, z2 = z[:n], z[n:]
    # z1/z2 are detached in PyTorch; detach is a no-op on forward values.
    return p1, p2, jax.lax.stop_gradient(z1), jax.lax.stop_gradient(z2)


def init_params(key, flat_dim, prev_dim, dim, pred_dim):
    ks = jax.random.split(key, 10)
    s = lambda fan_in: 1.0 / jnp.sqrt(jnp.float32(fan_in))
    # Backbone bias and classifier bias are omitted: both sit directly in
    # front of a train-mode BatchNorm mean subtraction, so they have no effect
    # on the forward values (classic bias-before-BN redundancy).
    return {
        # synthetic backbone: flatten -> Linear(flat, prev)
        "wf": jax.random.normal(ks[0], (flat_dim, prev_dim), jnp.float32) * s(flat_dim),
        # projection MLP
        "w1": jax.random.normal(ks[1], (prev_dim, prev_dim), jnp.float32) * s(prev_dim),
        "g1": 1.0 + 0.1 * jax.random.normal(ks[2], (1, prev_dim), jnp.float32),
        "b1": 0.1 * jax.random.normal(ks[3], (1, prev_dim), jnp.float32),
        "w2": jax.random.normal(ks[4], (prev_dim, prev_dim), jnp.float32) * s(prev_dim),
        "g2": 1.0 + 0.1 * jax.random.normal(ks[5], (1, prev_dim), jnp.float32),
        "b2": 0.1 * jax.random.normal(ks[6], (1, prev_dim), jnp.float32),
        # original classifier (bias dropped, see note above)
        "w3": jax.random.normal(ks[7], (prev_dim, dim), jnp.float32) * s(prev_dim),
        # predictor
        "wp1": jax.random.normal(ks[8], (dim, pred_dim), jnp.float32) * s(dim),
        "gp": 1.0 + 0.1 * jax.random.normal(ks[9], (1, pred_dim), jnp.float32),
        "bp": 0.1 * jnp.ones((1, pred_dim), jnp.float32),
        "wp2": jax.random.normal(ks[0], (pred_dim, dim), jnp.float32) * s(pred_dim),
        "bp2": jnp.zeros((1, dim), jnp.float32),
    }


if __name__ == "__main__":
    # small, TPU-friendly shapes: batch=8 (sublane); prev/pred dims are
    # deliberately sub-lane (64/32) to exercise the padding path.
    N, C, H, W = 8, 4, 16, 16
    PREV_DIM, DIM, PRED_DIM = 64, 128, 32
    FLAT = C * H * W

    key = jax.random.PRNGKey(0)
    kx1, kx2, kp = jax.random.split(key, 3)
    x1 = jax.random.normal(kx1, (N, C, H, W), jnp.float32)
    x2 = jax.random.normal(kx2, (N, C, H, W), jnp.float32)
    params = init_params(kp, FLAT, PREV_DIM, DIM, PRED_DIM)

    try:
        out = jax.jit(simsiam_forward)(x1, x2, params)
        jax.block_until_ready(out)
    except Exception:
        # TODO(synk): pipeline_mode=pl.Buffered(1) not supported on this jax
        # build -> rerun with default double-buffered weight blocks.
        fwd = functools.partial(simsiam_forward, single_buffer_weights=False)
        out = jax.jit(fwd)(x1, x2, params)
        jax.block_until_ready(out)

    p1, p2, z1, z2 = out
    assert p1.shape == (N, DIM) and p2.shape == (N, DIM)
    assert z1.shape == (N, DIM) and z2.shape == (N, DIM)
    assert bool(jnp.all(jnp.isfinite(p1)) & jnp.all(jnp.isfinite(p2))
                & jnp.all(jnp.isfinite(z1)) & jnp.all(jnp.isfinite(z2)))
    print("KERNEL_OK")
</pallas_src>

<mosaic_0001>
module attributes {stable_mosaic.version = 11 : i64} {
  func.func @_simsiam_kernel(%arg0: i32, %arg1: memref<8x1024xf32, #tpu.memory_space<vmem>>, %arg2: memref<8x1024xf32, #tpu.memory_space<vmem>>, %arg3: memref<1024x128xbf16, #tpu.memory_space<vmem>>, %arg4: memref<128x128xbf16, #tpu.memory_space<vmem>>, %arg5: memref<128x128xbf16, #tpu.memory_space<vmem>>, %arg6: memref<128x128xbf16, #tpu.memory_space<vmem>>, %arg7: memref<128x128xbf16, #tpu.memory_space<vmem>>, %arg8: memref<128x128xbf16, #tpu.memory_space<vmem>>, %arg9: memref<8x128xf32, #tpu.memory_space<vmem>>, %arg10: memref<16x128xf32, #tpu.memory_space<vmem>>, %arg11: memref<16x128xf32, #tpu.memory_space<vmem>>, %arg12: memref<2x8x128xf32, #tpu.memory_space<vmem>>) attributes {dimension_semantics = [#tpu.dimension_semantics<arbitrary>], iteration_bounds = array<i64: 1>, scalar_prefetch = 0 : i64, scratch_operands = 1 : i64, tpu.core_type = #tpu.core_type<tc>, window_params = [{transform_indices = @transform_0, window_bounds = array<i64: 8, 1024>}, {transform_indices = @transform_1, window_bounds = array<i64: 8, 1024>}, {transform_indices = @transform_2, window_bounds = array<i64: 1024, 128>}, {pipeline_mode = #tpu.pipeline_mode<synchronous>, transform_indices = @transform_3, window_bounds = array<i64: 128, 128>}, {pipeline_mode = #tpu.pipeline_mode<synchronous>, transform_indices = @transform_4, window_bounds = array<i64: 128, 128>}, {pipeline_mode = #tpu.pipeline_mode<synchronous>, transform_indices = @transform_5, window_bounds = array<i64: 128, 128>}, {pipeline_mode = #tpu.pipeline_mode<synchronous>, transform_indices = @transform_6, window_bounds = array<i64: 128, 128>}, {pipeline_mode = #tpu.pipeline_mode<synchronous>, transform_indices = @transform_7, window_bounds = array<i64: 128, 128>}, {pipeline_mode = #tpu.pipeline_mode<synchronous>, transform_indices = @transform_8, window_bounds = array<i64: 8, 128>}, {pipeline_mode = #tpu.pipeline_mode<synchronous>, transform_indices = @transform_9, window_bounds = array<i64: 16, 128>}, {pipeline_mode = #tpu.pipeline_mode<synchronous>, transform_indices = @transform_10, window_bounds = array<i64: 16, 128>}]} {
    %c0_i32 = arith.constant 0 : i32
    %0 = arith.cmpi eq, %arg0, %c0_i32 : i32
    %1 = arith.extui %0 : i1 to i32
    %c0_i32_0 = arith.constant 0 : i32
    %2 = arith.cmpi ne, %1, %c0_i32_0 : i32
    scf.if %2 {
      %cst_20 = arith.constant 0.000000e+00 : f32
      %25 = vector.broadcast %cst_20 : f32 to vector<2x8x128xf32>
      %c0_21 = arith.constant 0 : index
      %c0_22 = arith.constant 0 : index
      %c0_23 = arith.constant 0 : index
      %26 = vector.load %arg12[%c0_21, %c0_22, %c0_23] : memref<2x8x128xf32, #tpu.memory_space<vmem>>, vector<2x8x128xf32>
      tpu.vector_store %arg12[%c0_21, %c0_22, %c0_23], %25 {strides = array<i32>} : memref<2x8x128xf32, #tpu.memory_space<vmem>>, vector<2x8x128xf32>,
    } else {
    }
    %c0 = arith.constant 0 : index
    %c0_1 = arith.constant 0 : index
    %3 = vector.load %arg3[%c0, %c0_1] : memref<1024x128xbf16, #tpu.memory_space<vmem>>, vector<1024x128xbf16>
    %c0_2 = arith.constant 0 : index
    %c0_3 = arith.constant 0 : index
    %c0_4 = arith.constant 0 : index
    %4 = vector.load %arg12[%c0_2, %c0_3, %c0_4] : memref<2x8x128xf32, #tpu.memory_space<vmem>>, vector<1x8x128xf32>
    %5 = vector.shape_cast %4 : vector<1x8x128xf32> to vector<8x128xf32>
    %c0_5 = arith.constant 0 : index
    %c0_6 = arith.constant 0 : index
    %6 = vector.load %arg1[%c0_5, %c0_6] : memref<8x1024xf32, #tpu.memory_space<vmem>>, vector<8x1024xf32>
    %7 = arith.truncf %6 : vector<8x1024xf32> to vector<8x1024xbf16>
    %cst = arith.constant dense<0.000000e+00> : vector<8x128xf32>
    %8 = tpu.matmul %7, %3, %cst {dimension_numbers = #tpu.dot_dimension_numbers<[1], [0], [0], [1], [0, 0, 1, 1], [], []>} : vector<8x1024xbf16>, vector<1024x128xbf16>, vector<8x128xf32> -> vector<8x128xf32>
    %9 = arith.addf %5, %8 : vector<8x128xf32>
    %c0_7 = arith.constant 0 : index
    %c0_8 = arith.constant 0 : index
    %c0_9 = arith.constant 0 : index
    %10 = vector.load %arg12[%c0_7, %c0_8, %c0_9] : memref<2x8x128xf32, #tpu.memory_space<vmem>>, vector<1x8x128xf32>
    %11 = vector.shape_cast %10 : vector<1x8x128xf32> to vector<8x128xf32>
    %12 = vector.shape_cast %9 : vector<8x128xf32> to vector<1x8x128xf32>
    tpu.vector_store %arg12[%c0_7, %c0_8, %c0_9], %12 {strides = array<i32>} : memref<2x8x128xf32, #tpu.memory_space<vmem>>, vector<1x8x128xf32>,
    %c1 = arith.constant 1 : index
    %c0_10 = arith.constant 0 : index
    %c0_11 = arith.constant 0 : index
    %13 = vector.load %arg12[%c1, %c0_10, %c0_11] : memref<2x8x128xf32, #tpu.memory_space<vmem>>, vector<1x8x128xf32>
    %14 = vector.shape_cast %13 : vector<1x8x128xf32> to vector<8x128xf32>
    %c0_12 = arith.constant 0 : index
    %c0_13 = arith.constant 0 : index
    %15 = vector.load %arg2[%c0_12, %c0_13] : memref<8x1024xf32, #tpu.memory_space<vmem>>, vector<8x1024xf32>
    %16 = arith.truncf %15 : vector<8x1024xf32> to vector<8x1024xbf16>
    %cst_14 = arith.constant dense<0.000000e+00> : vector<8x128xf32>
    %17 = tpu.matmul %16, %3, %cst_14 {dimension_numbers = #tpu.dot_dimension_numbers<[1], [0], [0], [1], [0, 0, 1, 1], [], []>} : vector<8x1024xbf16>, vector<1024x128xbf16>, vector<8x128xf32> -> vector<8x128xf32>
    %18 = arith.addf %14, %17 : vector<8x128xf32>
    %c1_15 = arith.constant 1 : index
    %c0_16 = arith.constant 0 : index
    %c0_17 = arith.constant 0 : index
    %19 = vector.load %arg12[%c1_15, %c0_16, %c0_17] : memref<2x8x128xf32, #tpu.memory_space<vmem>>, vector<1x8x128xf32>
    %20 = vector.shape_cast %19 : vector<1x8x128xf32> to vector<8x128xf32>
    %21 = vector.shape_cast %18 : vector<8x128xf32> to vector<1x8x128xf32>
    tpu.vector_store %arg12[%c1_15, %c0_16, %c0_17], %21 {strides = array<i32>} : memref<2x8x128xf32, #tpu.memory_space<vmem>>, vector<1x8x128xf32>,
    %c0_i32_18 = arith.constant 0 : i32
    %22 = arith.cmpi eq, %arg0, %c0_i32_18 : i32
    %23 = arith.extui %22 : i1 to i32
    %c0_i32_19 = arith.constant 0 : i32
    %24 = arith.cmpi ne, %23, %c0_i32_19 : i32
    scf.if %24 {
      %c0_20 = arith.constant 0 : index
      %c0_21 = arith.constant 0 : index
      %25 = vector.load %arg9[%c0_20, %c0_21] : memref<8x128xf32, #tpu.memory_space<vmem>>, vector<1x128xf32>
      %c1_22 = arith.constant 1 : index
      %c0_23 = arith.constant 0 : index
      %26 = vector.load %arg9[%c1_22, %c0_23] : memref<8x128xf32, #tpu.memory_space<vmem>>, vector<1x128xf32>
      %c2 = arith.constant 2 : index
      %c0_24 = arith.constant 0 : index
      %27 = vector.load %arg9[%c2, %c0_24] : memref<8x128xf32, #tpu.memory_space<vmem>>, vector<1x128xf32>
      %c3 = arith.constant 3 : index
      %c0_25 = arith.constant 0 : index
      %28 = vector.load %arg9[%c3, %c0_25] : memref<8x128xf32, #tpu.memory_space<vmem>>, vector<1x128xf32>
      %c4 = arith.constant 4 : index
      %c0_26 = arith.constant 0 : index
      %29 = vector.load %arg9[%c4, %c0_26] : memref<8x128xf32, #tpu.memory_space<vmem>>, vector<1x128xf32>
      %c5 = arith.constant 5 : index
      %c0_27 = arith.constant 0 : index
      %30 = vector.load %arg9[%c5, %c0_27] : memref<8x128xf32, #tpu.memory_space<vmem>>, vector<1x128xf32>
      %c6 = arith.constant 6 : index
      %c0_28 = arith.constant 0 : index
      %31 = vector.load %arg9[%c6, %c0_28] : memref<8x128xf32, #tpu.memory_space<vmem>>, vector<1x128xf32>
      %c0_29 = arith.constant 0 : index
      %c0_30 = arith.constant 0 : index
      %c0_31 = arith.constant 0 : index
      %32 = vector.load %arg12[%c0_29, %c0_30, %c0_31] : memref<2x8x128xf32, #tpu.memory_space<vmem>>, vector<1x8x128xf32>
      %33 = vector.shape_cast %32 : vector<1x8x128xf32> to vector<8x128xf32>
      %34 = arith.truncf %33 : vector<8x128xf32> to vector<8x128xbf16>
      %c0_32 = arith.constant 0 : index
      %c0_33 = arith.constant 0 : index
      %35 = vector.load %arg4[%c0_32, %c0_33] : memref<128x128xbf16, #tpu.memory_space<vmem>>, vector<128x128xbf16>
      %cst_34 = arith.constant dense<0.000000e+00> : vector<8x128xf32>
      %36 = tpu.matmul %34, %35, %cst_34 {dimension_numbers = #tpu.dot_dimension_numbers<[1], [0], [0], [1], [0, 0, 1, 1], [], []>} : vector<8x128xbf16>, vector<128x128xbf16>, vector<8x128xf32> -> vector<8x128xf32>
      %cst_35 = arith.constant dense<0.000000e+00> : vector<128xf32>
      %37 = vector.multi_reduction <add>, %36, %cst_35 [0] : vector<8x128xf32> to vector<128xf32>
      %38 = vector.shape_cast %37 : vector<128xf32> to vector<1x128xf32>
      %cst_36 = arith.constant 8.000000e+00 : f32
      %39 = vector.broadcast %cst_36 : f32 to vector<1x128xf32>
      %40 = arith.divf %38, %39 : vector<1x128xf32>
      %41 = vector.broadcast %40 : vector<1x128xf32> to vector<8x128xf32>
      %42 = arith.subf %36, %41 : vector<8x128xf32>
      %43 = arith.mulf %42, %42 : vector<8x128xf32>
      %cst_37 = arith.constant dense<0.000000e+00> : vector<128xf32>
      %44 = vector.multi_reduction <add>, %43, %cst_37 [0] : vector<8x128xf32> to vector<128xf32>
      %45 = vector.shape_cast %44 : vector<128xf32> to vector<1x128xf32>
      %cst_38 = arith.constant 8.000000e+00 : f32
      %46 = vector.broadcast %cst_38 : f32 to vector<1x128xf32>
      %47 = arith.divf %45, %46 : vector<1x128xf32>
      %cst_39 = arith.constant 9.99999974E-6 : f32
      %48 = vector.broadcast %cst_39 : f32 to vector<1x128xf32>
      %49 = arith.addf %47, %48 : vector<1x128xf32>
      %50 = math.rsqrt %49 : vector<1x128xf32>
      %51 = vector.broadcast %50 : vector<1x128xf32> to vector<8x128xf32>
      %52 = arith.mulf %42, %51 : vector<8x128xf32>
      %53 = vector.broadcast %25 : vector<1x128xf32> to vector<8x128xf32>
      %54 = arith.mulf %52, %53 : vector<8x128xf32>
      %55 = vector.broadcast %26 : vector<1x128xf32> to vector<8x128xf32>
      %56 = arith.addf %54, %55 : vector<8x128xf32>
      %cst_40 = arith.constant 0.000000e+00 : f32
      %57 = vector.broadcast %cst_40 : f32 to vector<8x128xf32>
      %58 = arith.maximumf %56, %57 : vector<8x128xf32>
      %59 = arith.truncf %58 : vector<8x128xf32> to vector<8x128xbf16>
      %c0_41 = arith.constant 0 : index
      %c0_42 = arith.constant 0 : index
      %60 = vector.load %arg5[%c0_41, %c0_42] : memref<128x128xbf16, #tpu.memory_space<vmem>>, vector<128x128xbf16>
      %cst_43 = arith.constant dense<0.000000e+00> : vector<8x128xf32>
      %61 = tpu.matmul %59, %60, %cst_43 {dimension_numbers = #tpu.dot_dimension_numbers<[1], [0], [0], [1], [0, 0, 1, 1], [], []>} : vector<8x128xbf16>, vector<128x128xbf16>, vector<8x128xf32> -> vector<8x128xf32>
      %cst_44 = arith.constant dense<0.000000e+00> : vector<128xf32>
      %62 = vector.multi_reduction <add>, %61, %cst_44 [0] : vector<8x128xf32> to vector<128xf32>
      %63 = vector.shape_cast %62 : vector<128xf32> to vector<1x128xf32>
      %cst_45 = arith.constant 8.000000e+00 : f32
      %64 = vector.broadcast %cst_45 : f32 to vector<1x128xf32>
      %65 = arith.divf %63, %64 : vector<1x128xf32>
      %66 = vector.broadcast %65 : vector<1x128xf32> to vector<8x128xf32>
      %67 = arith.subf %61, %66 : vector<8x128xf32>
      %68 = arith.mulf %67, %67 : vector<8x128xf32>
      %cst_46 = arith.constant dense<0.000000e+00> : vector<128xf32>
      %69 = vector.multi_reduction <add>, %68, %cst_46 [0] : vector<8x128xf32> to vector<128xf32>
      %70 = vector.shape_cast %69 : vector<128xf32> to vector<1x128xf32>
      %cst_47 = arith.constant 8.000000e+00 : f32
      %71 = vector.broadcast %cst_47 : f32 to vector<1x128xf32>
      %72 = arith.divf %70, %71 : vector<1x128xf32>
      %cst_48 = arith.constant 9.99999974E-6 : f32
      %73 = vector.broadcast %cst_48 : f32 to vector<1x128xf32>
      %74 = arith.addf %72, %73 : vector<1x128xf32>
      %75 = math.rsqrt %74 : vector<1x128xf32>
      %76 = vector.broadcast %75 : vector<1x128xf32> to vector<8x128xf32>
      %77 = arith.mulf %67, %76 : vector<8x128xf32>
      %78 = vector.broadcast %27 : vector<1x128xf32> to vector<8x128xf32>
      %79 = arith.mulf %77, %78 : vector<8x128xf32>
      %80 = vector.broadcast %28 : vector<1x128xf32> to vector<8x128xf32>
      %81 = arith.addf %79, %80 : vector<8x128xf32>
      %cst_49 = arith.constant 0.000000e+00 : f32
      %82 = vector.broadcast %cst_49 : f32 to vector<8x128xf32>
      %83 = arith.maximumf %81, %82 : vector<8x128xf32>
      %84 = arith.truncf %83 : vector<8x128xf32> to vector<8x128xbf16>
      %c0_50 = arith.constant 0 : index
      %c0_51 = arith.constant 0 : index
      %85 = vector.load %arg6[%c0_50, %c0_51] : memref<128x128xbf16, #tpu.memory_space<vmem>>, vector<128x128xbf16>
      %cst_52 = arith.constant dense<0.000000e+00> : vector<8x128xf32>
      %86 = tpu.matmul %84, %85, %cst_52 {dimension_numbers = #tpu.dot_dimension_numbers<[1], [0], [0], [1], [0, 0, 1, 1], [], []>} : vector<8x128xbf16>, vector<128x128xbf16>, vector<8x128xf32> -> vector<8x128xf32>
      %cst_53 = arith.constant dense<0.000000e+00> : vector<128xf32>
      %87 = vector.multi_reduction <add>, %86, %cst_53 [0] : vector<8x128xf32> to vector<128xf32>
      %88 = vector.shape_cast %87 : vector<128xf32> to vector<1x128xf32>
      %cst_54 = arith.constant 8.000000e+00 : f32
      %89 = vector.broadcast %cst_54 : f32 to vector<1x128xf32>
      %90 = arith.divf %88, %89 : vector<1x128xf32>
      %91 = vector.broadcast %90 : vector<1x128xf32> to vector<8x128xf32>
      %92 = arith.subf %86, %91 : vector<8x128xf32>
      %93 = arith.mulf %92, %92 : vector<8x128xf32>
      %cst_55 = arith.constant dense<0.000000e+00> : vector<128xf32>
      %94 = vector.multi_reduction <add>, %93, %cst_55 [0] : vector<8x128xf32> to vector<128xf32>
      %95 = vector.shape_cast %94 : vector<128xf32> to vector<1x128xf32>
      %cst_56 = arith.constant 8.000000e+00 : f32
      %96 = vector.broadcast %cst_56 : f32 to vector<1x128xf32>
      %97 = arith.divf %95, %96 : vector<1x128xf32>
      %cst_57 = arith.constant 9.99999974E-6 : f32
      %98 = vector.broadcast %cst_57 : f32 to vector<1x128xf32>
      %99 = arith.addf %97, %98 : vector<1x128xf32>
      %100 = math.rsqrt %99 : vector<1x128xf32>
      %101 = vector.broadcast %100 : vector<1x128xf32> to vector<8x128xf32>
      %102 = arith.mulf %92, %101 : vector<8x128xf32>
      %c0_58 = arith.constant 0 : index
      %c0_59 = arith.constant 0 : index
      %103 = vector.load %arg10[%c0_58, %c0_59] : memref<16x128xf32, #tpu.memory_space<vmem>>, vector<8x128xf32>
      tpu.vector_store %arg10[%c0_58, %c0_59], %102 {strides = array<i32>} : memref<16x128xf32, #tpu.memory_space<vmem>>, vector<8x128xf32>,
      %104 = arith.truncf %102 : vector<8x128xf32> to vector<8x128xbf16>
      %c0_60 = arith.constant 0 : index
      %c0_61 = arith.constant 0 : index
      %105 = vector.load %arg7[%c0_60, %c0_61] : memref<128x128xbf16, #tpu.memory_space<vmem>>, vector<128x128xbf16>
      %cst_62 = arith.constant dense<0.000000e+00> : vector<8x128xf32>
      %106 = tpu.matmul %104, %105, %cst_62 {dimension_numbers = #tpu.dot_dimension_numbers<[1], [0], [0], [1], [0, 0, 1, 1], [], []>} : vector<8x128xbf16>, vector<128x128xbf16>, vector<8x128xf32> -> vector<8x128xf32>
      %cst_63 = arith.constant dense<0.000000e+00> : vector<128xf32>
      %107 = vector.multi_reduction <add>, %106, %cst_63 [0] : vector<8x128xf32> to vector<128xf32>
      %108 = vector.shape_cast %107 : vector<128xf32> to vector<1x128xf32>
      %cst_64 = arith.constant 8.000000e+00 : f32
      %109 = vector.broadcast %cst_64 : f32 to vector<1x128xf32>
      %110 = arith.divf %108, %109 : vector<1x128xf32>
      %111 = vector.broadcast %110 : vector<1x128xf32> to vector<8x128xf32>
      %112 = arith.subf %106, %111 : vector<8x128xf32>
      %113 = arith.mulf %112, %112 : vector<8x128xf32>
      %cst_65 = arith.constant dense<0.000000e+00> : vector<128xf32>
      %114 = vector.multi_reduction <add>, %113, %cst_65 [0] : vector<8x128xf32> to vector<128xf32>
      %115 = vector.shape_cast %114 : vector<128xf32> to vector<1x128xf32>
      %cst_66 = arith.constant 8.000000e+00 : f32
      %116 = vector.broadcast %cst_66 : f32 to vector<1x128xf32>
      %117 = arith.divf %115, %116 : vector<1x128xf32>
      %cst_67 = arith.constant 9.99999974E-6 : f32
      %118 = vector.broadcast %cst_67 : f32 to vector<1x128xf32>
      %119 = arith.addf %117, %118 : vector<1x128xf32>
      %120 = math.rsqrt %119 : vector<1x128xf32>
      %121 = vector.broadcast %120 : vector<1x128xf32> to vector<8x128xf32>
      %122 = arith.mulf %112, %121 : vector<8x128xf32>
      %123 = vector.broadcast %29 : vector<1x128xf32> to vector<8x128xf32>
      %124 = arith.mulf %122, %123 : vector<8x128xf32>
      %125 = vector.broadcast %30 : vector<1x128xf32> to vector<8x128xf32>
      %126 = arith.addf %124, %125 : vector<8x128xf32>
      %cst_68 = arith.constant 0.000000e+00 : f32
      %127 = vector.broadcast %cst_68 : f32 to vector<8x128xf32>
      %128 = arith.maximumf %126, %127 : vector<8x128xf32>
      %129 = arith.truncf %128 : vector<8x128xf32> to vector<8x128xbf16>
      %c0_69 = arith.constant 0 : index
      %c0_70 = arith.constant 0 : index
      %130 = vector.load %arg8[%c0_69, %c0_70] : memref<128x128xbf16, #tpu.memory_space<vmem>>, vector<128x128xbf16>
      %cst_71 = arith.constant dense<0.000000e+00> : vector<8x128xf32>
      %131 = tpu.matmul %129, %130, %cst_71 {dimension_numbers = #tpu.dot_dimension_numbers<[1], [0], [0], [1], [0, 0, 1, 1], [], []>} : vector<8x128xbf16>, vector<128x128xbf16>, vector<8x128xf32> -> vector<8x128xf32>
      %132 = vector.broadcast %31 : vector<1x128xf32> to vector<8x128xf32>
      %133 = arith.addf %131, %132 : vector<8x128xf32>
      %c0_72 = arith.constant 0 : index
      %c0_73 = arith.constant 0 : index
      %134 = vector.load %arg11[%c0_72, %c0_73] : memref<16x128xf32, #tpu.memory_space<vmem>>, vector<8x128xf32>
      tpu.vector_store %arg11[%c0_72, %c0_73], %133 {strides = array<i32>} : memref<16x128xf32, #tpu.memory_space<vmem>>, vector<8x128xf32>,
      %c1_74 = arith.constant 1 : index
      %c0_75 = arith.constant 0 : index
      %c0_76 = arith.constant 0 : index
      %135 = vector.load %arg12[%c1_74, %c0_75, %c0_76] : memref<2x8x128xf32, #tpu.memory_space<vmem>>, vector<1x8x128xf32>
      %136 = vector.shape_cast %135 : vector<1x8x128xf32> to vector<8x128xf32>
      %137 = arith.truncf %136 : vector<8x128xf32> to vector<8x128xbf16>
      %c0_77 = arith.constant 0 : index
      %c0_78 = arith.constant 0 : index
      %138 = vector.load %arg4[%c0_77, %c0_78] : memref<128x128xbf16, #tpu.memory_space<vmem>>, vector<128x128xbf16>
      %cst_79 = arith.constant dense<0.000000e+00> : vector<8x128xf32>
      %139 = tpu.matmul %137, %138, %cst_79 {dimension_numbers = #tpu.dot_dimension_numbers<[1], [0], [0], [1], [0, 0, 1, 1], [], []>} : vector<8x128xbf16>, vector<128x128xbf16>, vector<8x128xf32> -> vector<8x128xf32>
      %cst_80 = arith.constant dense<0.000000e+00> : vector<128xf32>
      %140 = vector.multi_reduction <add>, %139, %cst_80 [0] : vector<8x128xf32> to vector<128xf32>
      %141 = vector.shape_cast %140 : vector<128xf32> to vector<1x128xf32>
      %cst_81 = arith.constant 8.000000e+00 : f32
      %142 = vector.broadcast %cst_81 : f32 to vector<1x128xf32>
      %143 = arith.divf %141, %142 : vector<1x128xf32>
      %144 = vector.broadcast %143 : vector<1x128xf32> to vector<8x128xf32>
      %145 = arith.subf %139, %144 : vector<8x128xf32>
      %146 = arith.mulf %145, %145 : vector<8x128xf32>
      %cst_82 = arith.constant dense<0.000000e+00> : vector<128xf32>
      %147 = vector.multi_reduction <add>, %146, %cst_82 [0] : vector<8x128xf32> to vector<128xf32>
      %148 = vector.shape_cast %147 : vector<128xf32> to vector<1x128xf32>
      %cst_83 = arith.constant 8.000000e+00 : f32
      %149 = vector.broadcast %cst_83 : f32 to vector<1x128xf32>
      %150 = arith.divf %148, %149 : vector<1x128xf32>
      %cst_84 = arith.constant 9.99999974E-6 : f32
      %151 = vector.broadcast %cst_84 : f32 to vector<1x128xf32>
      %152 = arith.addf %150, %151 : vector<1x128xf32>
      %153 = math.rsqrt %152 : vector<1x128xf32>
      %154 = vector.broadcast %153 : vector<1x128xf32> to vector<8x128xf32>
      %155 = arith.mulf %145, %154 : vector<8x128xf32>
      %156 = vector.broadcast %25 : vector<1x128xf32> to vector<8x128xf32>
      %157 = arith.mulf %155, %156 : vector<8x128xf32>
      %158 = vector.broadcast %26 : vector<1x128xf32> to vector<8x128xf32>
      %159 = arith.addf %157, %158 : vector<8x128xf32>
      %cst_85 = arith.constant 0.000000e+00 : f32
      %160 = vector.broadcast %cst_85 : f32 to vector<8x128xf32>
      %161 = arith.maximumf %159, %160 : vector<8x128xf32>
      %162 = arith.truncf %161 : vector<8x128xf32> to vector<8x128xbf16>
      %c0_86 = arith.constant 0 : index
      %c0_87 = arith.constant 0 : index
      %163 = vector.load %arg5[%c0_86, %c0_87] : memref<128x128xbf16, #tpu.memory_space<vmem>>, vector<128x128xbf16>
      %cst_88 = arith.constant dense<0.000000e+00> : vector<8x128xf32>
      %164 = tpu.matmul %162, %163, %cst_88 {dimension_numbers = #tpu.dot_dimension_numbers<[1], [0], [0], [1], [0, 0, 1, 1], [], []>} : vector<8x128xbf16>, vector<128x128xbf16>, vector<8x128xf32> -> vector<8x128xf32>
      %cst_89 = arith.constant dense<0.000000e+00> : vector<128xf32>
      %165 = vector.multi_reduction <add>, %164, %cst_89 [0] : vector<8x128xf32> to vector<128xf32>
      %166 = vector.shape_cast %165 : vector<128xf32> to vector<1x128xf32>
      %cst_90 = arith.constant 8.000000e+00 : f32
      %167 = vector.broadcast %cst_90 : f32 to vector<1x128xf32>
      %168 = arith.divf %166, %167 : vector<1x128xf32>
      %169 = vector.broadcast %168 : vector<1x128xf32> to vector<8x128xf32>
      %170 = arith.subf %164, %169 : vector<8x128xf32>
      %171 = arith.mulf %170, %170 : vector<8x128xf32>
      %cst_91 = arith.constant dense<0.000000e+00> : vector<128xf32>
      %172 = vector.multi_reduction <add>, %171, %cst_91 [0] : vector<8x128xf32> to vector<128xf32>
      %173 = vector.shape_cast %172 : vector<128xf32> to vector<1x128xf32>
      %cst_92 = arith.constant 8.000000e+00 : f32
      %174 = vector.broadcast %cst_92 : f32 to vector<1x128xf32>
      %175 = arith.divf %173, %174 : vector<1x128xf32>
      %cst_93 = arith.constant 9.99999974E-6 : f32
      %176 = vector.broadcast %cst_93 : f32 to vector<1x128xf32>
      %177 = arith.addf %175, %176 : vector<1x128xf32>
      %178 = math.rsqrt %177 : vector<1x128xf32>
      %179 = vector.broadcast %178 : vector<1x128xf32> to vector<8x128xf32>
      %180 = arith.mulf %170, %179 : vector<8x128xf32>
      %181 = vector.broadcast %27 : vector<1x128xf32> to vector<8x128xf32>
      %182 = arith.mulf %180, %181 : vector<8x128xf32>
      %183 = vector.broadcast %28 : vector<1x128xf32> to vector<8x128xf32>
      %184 = arith.addf %182, %183 : vector<8x128xf32>
      %cst_94 = arith.constant 0.000000e+00 : f32
      %185 = vector.broadcast %cst_94 : f32 to vector<8x128xf32>
      %186 = arith.maximumf %184, %185 : vector<8x128xf32>
      %187 = arith.truncf %186 : vector<8x128xf32> to vector<8x128xbf16>
      %c0_95 = arith.constant 0 : index
      %c0_96 = arith.constant 0 : index
      %188 = vector.load %arg6[%c0_95, %c0_96] : memref<128x128xbf16, #tpu.memory_space<vmem>>, vector<128x128xbf16>
      %cst_97 = arith.constant dense<0.000000e+00> : vector<8x128xf32>
      %189 = tpu.matmul %187, %188, %cst_97 {dimension_numbers = #tpu.dot_dimension_numbers<[1], [0], [0], [1], [0, 0, 1, 1], [], []>} : vector<8x128xbf16>, vector<128x128xbf16>, vector<8x128xf32> -> vector<8x128xf32>
      %cst_98 = arith.constant dense<0.000000e+00> : vector<128xf32>
      %190 = vector.multi_reduction <add>, %189, %cst_98 [0] : vector<8x128xf32> to vector<128xf32>
      %191 = vector.shape_cast %190 : vector<128xf32> to vector<1x128xf32>
      %cst_99 = arith.constant 8.000000e+00 : f32
      %192 = vector.broadcast %cst_99 : f32 to vector<1x128xf32>
      %193 = arith.divf %191, %192 : vector<1x128xf32>
      %194 = vector.broadcast %193 : vector<1x128xf32> to vector<8x128xf32>
      %195 = arith.subf %189, %194 : vector<8x128xf32>
      %196 = arith.mulf %195, %195 : vector<8x128xf32>
      %cst_100 = arith.constant dense<0.000000e+00> : vector<128xf32>
      %197 = vector.multi_reduction <add>, %196, %cst_100 [0] : vector<8x128xf32> to vector<128xf32>
      %198 = vector.shape_cast %197 : vector<128xf32> to vector<1x128xf32>
      %cst_101 = arith.constant 8.000000e+00 : f32
      %199 = vector.broadcast %cst_101 : f32 to vector<1x128xf32>
      %200 = arith.divf %198, %199 : vector<1x128xf32>
      %cst_102 = arith.constant 9.99999974E-6 : f32
      %201 = vector.broadcast %cst_102 : f32 to vector<1x128xf32>
      %202 = arith.addf %200, %201 : vector<1x128xf32>
      %203 = math.rsqrt %202 : vector<1x128xf32>
      %204 = vector.broadcast %203 : vector<1x128xf32> to vector<8x128xf32>
      %205 = arith.mulf %195, %204 : vector<8x128xf32>
      %c8 = arith.constant 8 : index
      %c0_103 = arith.constant 0 : index
      %206 = vector.load %arg10[%c8, %c0_103] : memref<16x128xf32, #tpu.memory_space<vmem>>, vector<8x128xf32>
      tpu.vector_store %arg10[%c8, %c0_103], %205 {strides = array<i32>} : memref<16x128xf32, #tpu.memory_space<vmem>>, vector<8x128xf32>,
      %207 = arith.truncf %205 : vector<8x128xf32> to vector<8x128xbf16>
      %c0_104 = arith.constant 0 : index
      %c0_105 = arith.constant 0 : index
      %208 = vector.load %arg7[%c0_104, %c0_105] : memref<128x128xbf16, #tpu.memory_space<vmem>>, vector<128x128xbf16>
      %cst_106 = arith.constant dense<0.000000e+00> : vector<8x128xf32>
      %209 = tpu.matmul %207, %208, %cst_106 {dimension_numbers = #tpu.dot_dimension_numbers<[1], [0], [0], [1], [0, 0, 1, 1], [], []>} : vector<8x128xbf16>, vector<128x128xbf16>, vector<8x128xf32> -> vector<8x128xf32>
      %cst_107 = arith.constant dense<0.000000e+00> : vector<128xf32>
      %210 = vector.multi_reduction <add>, %209, %cst_107 [0] : vector<8x128xf32> to vector<128xf32>
      %211 = vector.shape_cast %210 : vector<128xf32> to vector<1x128xf32>
      %cst_108 = arith.constant 8.000000e+00 : f32
      %212 = vector.broadcast %cst_108 : f32 to vector<1x128xf32>
      %213 = arith.divf %211, %212 : vector<1x128xf32>
      %214 = vector.broadcast %213 : vector<1x128xf32> to vector<8x128xf32>
      %215 = arith.subf %209, %214 : vector<8x128xf32>
      %216 = arith.mulf %215, %215 : vector<8x128xf32>
      %cst_109 = arith.constant dense<0.000000e+00> : vector<128xf32>
      %217 = vector.multi_reduction <add>, %216, %cst_109 [0] : vector<8x128xf32> to vector<128xf32>
      %218 = vector.shape_cast %217 : vector<128xf32> to vector<1x128xf32>
      %cst_110 = arith.constant 8.000000e+00 : f32
      %219 = vector.broadcast %cst_110 : f32 to vector<1x128xf32>
      %220 = arith.divf %218, %219 : vector<1x128xf32>
      %cst_111 = arith.constant 9.99999974E-6 : f32
      %221 = vector.broadcast %cst_111 : f32 to vector<1x128xf32>
      %222 = arith.addf %220, %221 : vector<1x128xf32>
      %223 = math.rsqrt %222 : vector<1x128xf32>
      %224 = vector.broadcast %223 : vector<1x128xf32> to vector<8x128xf32>
      %225 = arith.mulf %215, %224 : vector<8x128xf32>
      %226 = vector.broadcast %29 : vector<1x128xf32> to vector<8x128xf32>
      %227 = arith.mulf %225, %226 : vector<8x128xf32>
      %228 = vector.broadcast %30 : vector<1x128xf32> to vector<8x128xf32>
      %229 = arith.addf %227, %228 : vector<8x128xf32>
      %cst_112 = arith.constant 0.000000e+00 : f32
      %230 = vector.broadcast %cst_112 : f32 to vector<8x128xf32>
      %231 = arith.maximumf %229, %230 : vector<8x128xf32>
      %232 = arith.truncf %231 : vector<8x128xf32> to vector<8x128xbf16>
      %c0_113 = arith.constant 0 : index
      %c0_114 = arith.constant 0 : index
      %233 = vector.load %arg8[%c0_113, %c0_114] : memref<128x128xbf16, #tpu.memory_space<vmem>>, vector<128x128xbf16>
      %cst_115 = arith.constant dense<0.000000e+00> : vector<8x128xf32>
      %234 = tpu.matmul %232, %233, %cst_115 {dimension_numbers = #tpu.dot_dimension_numbers<[1], [0], [0], [1], [0, 0, 1, 1], [], []>} : vector<8x128xbf16>, vector<128x128xbf16>, vector<8x128xf32> -> vector<8x128xf32>
      %235 = vector.broadcast %31 : vector<1x128xf32> to vector<8x128xf32>
      %236 = arith.addf %234, %235 : vector<8x128xf32>
      %c8_116 = arith.constant 8 : index
      %c0_117 = arith.constant 0 : index
      %237 = vector.load %arg11[%c8_116, %c0_117] : memref<16x128xf32, #tpu.memory_space<vmem>>, vector<8x128xf32>
      tpu.vector_store %arg11[%c8_116, %c0_117], %236 {strides = array<i32>} : memref<16x128xf32, #tpu.memory_space<vmem>>, vector<8x128xf32>,
    } else {
    }
    return
  }
  func.func @transform_0(%arg0: i32) -> (i32, i32) {
    %c0_i32 = arith.constant 0 : i32
    %c0_i32_0 = arith.constant 0 : i32
    return %c0_i32, %arg0 : i32, i32
  }
  func.func @transform_1(%arg0: i32) -> (i32, i32) {
    %c0_i32 = arith.constant 0 : i32
    %c0_i32_0 = arith.constant 0 : i32
    return %c0_i32, %arg0 : i32, i32
  }
  func.func @transform_2(%arg0: i32) -> (i32, i32) {
    %c0_i32 = arith.constant 0 : i32
    %c0_i32_0 = arith.constant 0 : i32
    return %arg0, %c0_i32 : i32, i32
  }
  func.func @transform_3(%arg0: i32) -> (i32, i32) {
    %c0_i32 = arith.constant 0 : i32
    %c0_i32_0 = arith.constant 0 : i32
    %c0_i32_1 = arith.constant 0 : i32
    return %c0_i32, %c0_i32_0 : i32, i32
  }
  func.func @transform_4(%arg0: i32) -> (i32, i32) {
    %c0_i32 = arith.constant 0 : i32
    %c0_i32_0 = arith.constant 0 : i32
    %c0_i32_1 = arith.constant 0 : i32
    return %c0_i32, %c0_i32_0 : i32, i32
  }
  func.func @transform_5(%arg0: i32) -> (i32, i32) {
    %c0_i32 = arith.constant 0 : i32
    %c0_i32_0 = arith.constant 0 : i32
    %c0_i32_1 = arith.constant 0 : i32
    return %c0_i32, %c0_i32_0 : i32, i32
  }
  func.func @transform_6(%arg0: i32) -> (i32, i32) {
    %c0_i32 = arith.constant 0 : i32
    %c0_i32_0 = arith.constant 0 : i32
    %c0_i32_1 = arith.constant 0 : i32
    return %c0_i32, %c0_i32_0 : i32, i32
  }
  func.func @transform_7(%arg0: i32) -> (i32, i32) {
    %c0_i32 = arith.constant 0 : i32
    %c0_i32_0 = arith.constant 0 : i32
    %c0_i32_1 = arith.constant 0 : i32
    return %c0_i32, %c0_i32_0 : i32, i32
  }
  func.func @transform_8(%arg0: i32) -> (i32, i32) {
    %c0_i32 = arith.constant 0 : i32
    %c0_i32_0 = arith.constant 0 : i32
    %c0_i32_1 = arith.constant 0 : i32
    return %c0_i32, %c0_i32_0 : i32, i32
  }
  func.func @transform_9(%arg0: i32) -> (i32, i32) {
    %c0_i32 = arith.constant 0 : i32
    %c0_i32_0 = arith.constant 0 : i32
    %c0_i32_1 = arith.constant 0 : i32
    return %c0_i32, %c0_i32_0 : i32, i32
  }
  func.func @transform_10(%arg0: i32) -> (i32, i32) {
    %c0_i32 = arith.constant 0 : i32
    %c0_i32_0 = arith.constant 0 : i32
    %c0_i32_1 = arith.constant 0 : i32
    return %c0_i32, %c0_i32_0 : i32, i32
  }
}

module attributes {stable_mosaic.version = 11 : i64} {
  func.func @_simsiam_kernel(%arg0: i32, %arg1: memref<8x1024xf32, #tpu.memory_space<vmem>>, %arg2: memref<8x1024xf32, #tpu.memory_space<vmem>>, %arg3: memref<1024x128xbf16, #tpu.memory_space<vmem>>, %arg4: memref<128x128xbf16, #tpu.memory_space<vmem>>, %arg5: memref<128x128xbf16, #tpu.memory_space<vmem>>, %arg6: memref<128x128xbf16, #tpu.memory_space<vmem>>, %arg7: memref<128x128xbf16, #tpu.memory_space<vmem>>, %arg8: memref<128x128xbf16, #tpu.memory_space<vmem>>, %arg9: memref<8x128xf32, #tpu.memory_space<vmem>>, %arg10: memref<16x128xf32, #tpu.memory_space<vmem>>, %arg11: memref<16x128xf32, #tpu.memory_space<vmem>>, %arg12: memref<2x8x128xf32, #tpu.memory_space<vmem>>) attributes {dimension_semantics = [#tpu.dimension_semantics<arbitrary>], iteration_bounds = array<i64: 1>, scalar_prefetch = 0 : i64, scratch_operands = 1 : i64, tpu.core_type = #tpu.core_type<tc>, window_params = [{transform_indices = @transform_0, window_bounds = array<i64: 8, 1024>}, {transform_indices = @transform_1, window_bounds = array<i64: 8, 1024>}, {transform_indices = @transform_2, window_bounds = array<i64: 1024, 128>}, {pipeline_mode = #tpu.pipeline_mode<synchronous>, transform_indices = @transform_3, window_bounds = array<i64: 128, 128>}, {pipeline_mode = #tpu.pipeline_mode<synchronous>, transform_indices = @transform_4, window_bounds = array<i64: 128, 128>}, {pipeline_mode = #tpu.pipeline_mode<synchronous>, transform_indices = @transform_5, window_bounds = array<i64: 128, 128>}, {pipeline_mode = #tpu.pipeline_mode<synchronous>, transform_indices = @transform_6, window_bounds = array<i64: 128, 128>}, {pipeline_mode = #tpu.pipeline_mode<synchronous>, transform_indices = @transform_7, window_bounds = array<i64: 128, 128>}, {pipeline_mode = #tpu.pipeline_mode<synchronous>, transform_indices = @transform_8, window_bounds = array<i64: 8, 128>}, {pipeline_mode = #tpu.pipeline_mode<synchronous>, transform_indices = @transform_9, window_bounds = array<i64: 16, 128>}, {pipeline_mode = #tpu.pipeline_mode<synchronous>, transform_indices = @transform_10, window_bounds = array<i64: 16, 128>}]} {
    %c0_i32 = arith.constant 0 : i32
    %0 = arith.cmpi eq, %arg0, %c0_i32 : i32
    %1 = arith.extui %0 : i1 to i32
    %c0_i32_0 = arith.constant 0 : i32
    %2 = arith.cmpi ne, %1, %c0_i32_0 : i32
    scf.if %2 {
      %cst_20 = arith.constant 0.000000e+00 : f32
      %25 = vector.broadcast %cst_20 : f32 to vector<2x8x128xf32>
      %c0_21 = arith.constant 0 : index
      %c0_22 = arith.constant 0 : index
      %c0_23 = arith.constant 0 : index
      %26 = vector.load %arg12[%c0_21, %c0_22, %c0_23] : memref<2x8x128xf32, #tpu.memory_space<vmem>>, vector<2x8x128xf32>
      tpu.vector_store %arg12[%c0_21, %c0_22, %c0_23], %25 {strides = array<i32>} : memref<2x8x128xf32, #tpu.memory_space<vmem>>, vector<2x8x128xf32>,
    } else {
    }
    %c0 = arith.constant 0 : index
    %c0_1 = arith.constant 0 : index
    %3 = vector.load %arg3[%c0, %c0_1] : memref<1024x128xbf16, #tpu.memory_space<vmem>>, vector<1024x128xbf16>
    %c0_2 = arith.constant 0 : index
    %c0_3 = arith.constant 0 : index
    %c0_4 = arith.constant 0 : index
    %4 = vector.load %arg12[%c0_2, %c0_3, %c0_4] : memref<2x8x128xf32, #tpu.memory_space<vmem>>, vector<1x8x128xf32>
    %5 = vector.shape_cast %4 : vector<1x8x128xf32> to vector<8x128xf32>
    %c0_5 = arith.constant 0 : index
    %c0_6 = arith.constant 0 : index
    %6 = vector.load %arg1[%c0_5, %c0_6] : memref<8x1024xf32, #tpu.memory_space<vmem>>, vector<8x1024xf32>
    %7 = arith.truncf %6 : vector<8x1024xf32> to vector<8x1024xbf16>
    %cst = arith.constant dense<0.000000e+00> : vector<8x128xf32>
    %8 = tpu.matmul %7, %3, %cst {dimension_numbers = #tpu.dot_dimension_numbers<[1], [0], [0], [1], [0, 0, 1, 1], [], []>} : vector<8x1024xbf16>, vector<1024x128xbf16>, vector<8x128xf32> -> vector<8x128xf32>
    %9 = arith.addf %5, %8 : vector<8x128xf32>
    %c0_7 = arith.constant 0 : index
    %c0_8 = arith.constant 0 : index
    %c0_9 = arith.constant 0 : index
    %10 = vector.load %arg12[%c0_7, %c0_8, %c0_9] : memref<2x8x128xf32, #tpu.memory_space<vmem>>, vector<1x8x128xf32>
    %11 = vector.shape_cast %10 : vector<1x8x128xf32> to vector<8x128xf32>
    %12 = vector.shape_cast %9 : vector<8x128xf32> to vector<1x8x128xf32>
    tpu.vector_store %arg12[%c0_7, %c0_8, %c0_9], %12 {strides = array<i32>} : memref<2x8x128xf32, #tpu.memory_space<vmem>>, vector<1x8x128xf32>,
    %c1 = arith.constant 1 : index
    %c0_10 = arith.constant 0 : index
    %c0_11 = arith.constant 0 : index
    %13 = vector.load %arg12[%c1, %c0_10, %c0_11] : memref<2x8x128xf32, #tpu.memory_space<vmem>>, vector<1x8x128xf32>
    %14 = vector.shape_cast %13 : vector<1x8x128xf32> to vector<8x128xf32>
    %c0_12 = arith.constant 0 : index
    %c0_13 = arith.constant 0 : index
    %15 = vector.load %arg2[%c0_12, %c0_13] : memref<8x1024xf32, #tpu.memory_space<vmem>>, vector<8x1024xf32>
    %16 = arith.truncf %15 : vector<8x1024xf32> to vector<8x1024xbf16>
    %cst_14 = arith.constant dense<0.000000e+00> : vector<8x128xf32>
    %17 = tpu.matmul %16, %3, %cst_14 {dimension_numbers = #tpu.dot_dimension_numbers<[1], [0], [0], [1], [0, 0, 1, 1], [], []>} : vector<8x1024xbf16>, vector<1024x128xbf16>, vector<8x128xf32> -> vector<8x128xf32>
    %18 = arith.addf %14, %17 : vector<8x128xf32>
    %c1_15 = arith.constant 1 : index
    %c0_16 = arith.constant 0 : index
    %c0_17 = arith.constant 0 : index
    %19 = vector.load %arg12[%c1_15, %c0_16, %c0_17] : memref<2x8x128xf32, #tpu.memory_space<vmem>>, vector<1x8x128xf32>
    %20 = vector.shape_cast %19 : vector<1x8x128xf32> to vector<8x128xf32>
    %21 = vector.shape_cast %18 : vector<8x128xf32> to vector<1x8x128xf32>
    tpu.vector_store %arg12[%c1_15, %c0_16, %c0_17], %21 {strides = array<i32>} : memref<2x8x128xf32, #tpu.memory_space<vmem>>, vector<1x8x128xf32>,
    %c0_i32_18 = arith.constant 0 : i32
    %22 = arith.cmpi eq, %arg0, %c0_i32_18 : i32
    %23 = arith.extui %22 : i1 to i32
    %c0_i32_19 = arith.constant 0 : i32
    %24 = arith.cmpi ne, %23, %c0_i32_19 : i32
    scf.if %24 {
      %c0_20 = arith.constant 0 : index
      %c0_21 = arith.constant 0 : index
      %25 = vector.load %arg9[%c0_20, %c0_21] : memref<8x128xf32, #tpu.memory_space<vmem>>, vector<1x128xf32>
      %c1_22 = arith.constant 1 : index
      %c0_23 = arith.constant 0 : index
      %26 = vector.load %arg9[%c1_22, %c0_23] : memref<8x128xf32, #tpu.memory_space<vmem>>, vector<1x128xf32>
      %c2 = arith.constant 2 : index
      %c0_24 = arith.constant 0 : index
      %27 = vector.load %arg9[%c2, %c0_24] : memref<8x128xf32, #tpu.memory_space<vmem>>, vector<1x128xf32>
      %c3 = arith.constant 3 : index
      %c0_25 = arith.constant 0 : index
      %28 = vector.load %arg9[%c3, %c0_25] : memref<8x128xf32, #tpu.memory_space<vmem>>, vector<1x128xf32>
      %c4 = arith.constant 4 : index
      %c0_26 = arith.constant 0 : index
      %29 = vector.load %arg9[%c4, %c0_26] : memref<8x128xf32, #tpu.memory_space<vmem>>, vector<1x128xf32>
      %c5 = arith.constant 5 : index
      %c0_27 = arith.constant 0 : index
      %30 = vector.load %arg9[%c5, %c0_27] : memref<8x128xf32, #tpu.memory_space<vmem>>, vector<1x128xf32>
      %c6 = arith.constant 6 : index
      %c0_28 = arith.constant 0 : index
      %31 = vector.load %arg9[%c6, %c0_28] : memref<8x128xf32, #tpu.memory_space<vmem>>, vector<1x128xf32>
      %c0_29 = arith.constant 0 : index
      %c0_30 = arith.constant 0 : index
      %c0_31 = arith.constant 0 : index
      %32 = vector.load %arg12[%c0_29, %c0_30, %c0_31] : memref<2x8x128xf32, #tpu.memory_space<vmem>>, vector<1x8x128xf32>
      %33 = vector.shape_cast %32 : vector<1x8x128xf32> to vector<8x128xf32>
      %34 = arith.truncf %33 : vector<8x128xf32> to vector<8x128xbf16>
      %c0_32 = arith.constant 0 : index
      %c0_33 = arith.constant 0 : index
      %35 = vector.load %arg4[%c0_32, %c0_33] : memref<128x128xbf16, #tpu.memory_space<vmem>>, vector<128x128xbf16>
      %cst_34 = arith.constant dense<0.000000e+00> : vector<8x128xf32>
      %36 = tpu.matmul %34, %35, %cst_34 {dimension_numbers = #tpu.dot_dimension_numbers<[1], [0], [0], [1], [0, 0, 1, 1], [], []>} : vector<8x128xbf16>, vector<128x128xbf16>, vector<8x128xf32> -> vector<8x128xf32>
      %cst_35 = arith.constant dense<0.000000e+00> : vector<128xf32>
      %37 = vector.multi_reduction <add>, %36, %cst_35 [0] : vector<8x128xf32> to vector<128xf32>
      %38 = vector.shape_cast %37 : vector<128xf32> to vector<1x128xf32>
      %cst_36 = arith.constant 8.000000e+00 : f32
      %39 = vector.broadcast %cst_36 : f32 to vector<1x128xf32>
      %40 = arith.divf %38, %39 : vector<1x128xf32>
      %41 = vector.broadcast %40 : vector<1x128xf32> to vector<8x128xf32>
      %42 = arith.subf %36, %41 : vector<8x128xf32>
      %43 = arith.mulf %42, %42 : vector<8x128xf32>
      %cst_37 = arith.constant dense<0.000000e+00> : vector<128xf32>
      %44 = vector.multi_reduction <add>, %43, %cst_37 [0] : vector<8x128xf32> to vector<128xf32>
      %45 = vector.shape_cast %44 : vector<128xf32> to vector<1x128xf32>
      %cst_38 = arith.constant 8.000000e+00 : f32
      %46 = vector.broadcast %cst_38 : f32 to vector<1x128xf32>
      %47 = arith.divf %45, %46 : vector<1x128xf32>
      %cst_39 = arith.constant 9.99999974E-6 : f32
      %48 = vector.broadcast %cst_39 : f32 to vector<1x128xf32>
      %49 = arith.addf %47, %48 : vector<1x128xf32>
      %50 = math.rsqrt %49 : vector<1x128xf32>
      %51 = vector.broadcast %50 : vector<1x128xf32> to vector<8x128xf32>
      %52 = arith.mulf %42, %51 : vector<8x128xf32>
      %53 = vector.broadcast %25 : vector<1x128xf32> to vector<8x128xf32>
      %54 = arith.mulf %52, %53 : vector<8x128xf32>
      %55 = vector.broadcast %26 : vector<1x128xf32> to vector<8x128xf32>
      %56 = arith.addf %54, %55 : vector<8x128xf32>
      %cst_40 = arith.constant 0.000000e+00 : f32
      %57 = vector.broadcast %cst_40 : f32 to vector<8x128xf32>
      %58 = arith.maximumf %56, %57 : vector<8x128xf32>
      %59 = arith.truncf %58 : vector<8x128xf32> to vector<8x128xbf16>
      %c0_41 = arith.constant 0 : index
      %c0_42 = arith.constant 0 : index
      %60 = vector.load %arg5[%c0_41, %c0_42] : memref<128x128xbf16, #tpu.memory_space<vmem>>, vector<128x128xbf16>
      %cst_43 = arith.constant dense<0.000000e+00> : vector<8x128xf32>
      %61 = tpu.matmul %59, %60, %cst_43 {dimension_numbers = #tpu.dot_dimension_numbers<[1], [0], [0], [1], [0, 0, 1, 1], [], []>} : vector<8x128xbf16>, vector<128x128xbf16>, vector<8x128xf32> -> vector<8x128xf32>
      %cst_44 = arith.constant dense<0.000000e+00> : vector<128xf32>
      %62 = vector.multi_reduction <add>, %61, %cst_44 [0] : vector<8x128xf32> to vector<128xf32>
      %63 = vector.shape_cast %62 : vector<128xf32> to vector<1x128xf32>
      %cst_45 = arith.constant 8.000000e+00 : f32
      %64 = vector.broadcast %cst_45 : f32 to vector<1x128xf32>
      %65 = arith.divf %63, %64 : vector<1x128xf32>
      %66 = vector.broadcast %65 : vector<1x128xf32> to vector<8x128xf32>
      %67 = arith.subf %61, %66 : vector<8x128xf32>
      %68 = arith.mulf %67, %67 : vector<8x128xf32>
      %cst_46 = arith.constant dense<0.000000e+00> : vector<128xf32>
      %69 = vector.multi_reduction <add>, %68, %cst_46 [0] : vector<8x128xf32> to vector<128xf32>
      %70 = vector.shape_cast %69 : vector<128xf32> to vector<1x128xf32>
      %cst_47 = arith.constant 8.000000e+00 : f32
      %71 = vector.broadcast %cst_47 : f32 to vector<1x128xf32>
      %72 = arith.divf %70, %71 : vector<1x128xf32>
      %cst_48 = arith.constant 9.99999974E-6 : f32
      %73 = vector.broadcast %cst_48 : f32 to vector<1x128xf32>
      %74 = arith.addf %72, %73 : vector<1x128xf32>
      %75 = math.rsqrt %74 : vector<1x128xf32>
      %76 = vector.broadcast %75 : vector<1x128xf32> to vector<8x128xf32>
      %77 = arith.mulf %67, %76 : vector<8x128xf32>
      %78 = vector.broadcast %27 : vector<1x128xf32> to vector<8x128xf32>
      %79 = arith.mulf %77, %78 : vector<8x128xf32>
      %80 = vector.broadcast %28 : vector<1x128xf32> to vector<8x128xf32>
      %81 = arith.addf %79, %80 : vector<8x128xf32>
      %cst_49 = arith.constant 0.000000e+00 : f32
      %82 = vector.broadcast %cst_49 : f32 to vector<8x128xf32>
      %83 = arith.maximumf %81, %82 : vector<8x128xf32>
      %84 = arith.truncf %83 : vector<8x128xf32> to vector<8x128xbf16>
      %c0_50 = arith.constant 0 : index
      %c0_51 = arith.constant 0 : index
      %85 = vector.load %arg6[%c0_50, %c0_51] : memref<128x128xbf16, #tpu.memory_space<vmem>>, vector<128x128xbf16>
      %cst_52 = arith.constant dense<0.000000e+00> : vector<8x128xf32>
      %86 = tpu.matmul %84, %85, %cst_52 {dimension_numbers = #tpu.dot_dimension_numbers<[1], [0], [0], [1], [0, 0, 1, 1], [], []>} : vector<8x128xbf16>, vector<128x128xbf16>, vector<8x128xf32> -> vector<8x128xf32>
      %cst_53 = arith.constant dense<0.000000e+00> : vector<128xf32>
      %87 = vector.multi_reduction <add>, %86, %cst_53 [0] : vector<8x128xf32> to vector<128xf32>
      %88 = vector.shape_cast %87 : vector<128xf32> to vector<1x128xf32>
      %cst_54 = arith.constant 8.000000e+00 : f32
      %89 = vector.broadcast %cst_54 : f32 to vector<1x128xf32>
      %90 = arith.divf %88, %89 : vector<1x128xf32>
      %91 = vector.broadcast %90 : vector<1x128xf32> to vector<8x128xf32>
      %92 = arith.subf %86, %91 : vector<8x128xf32>
      %93 = arith.mulf %92, %92 : vector<8x128xf32>
      %cst_55 = arith.constant dense<0.000000e+00> : vector<128xf32>
      %94 = vector.multi_reduction <add>, %93, %cst_55 [0] : vector<8x128xf32> to vector<128xf32>
      %95 = vector.shape_cast %94 : vector<128xf32> to vector<1x128xf32>
      %cst_56 = arith.constant 8.000000e+00 : f32
      %96 = vector.broadcast %cst_56 : f32 to vector<1x128xf32>
      %97 = arith.divf %95, %96 : vector<1x128xf32>
      %cst_57 = arith.constant 9.99999974E-6 : f32
      %98 = vector.broadcast %cst_57 : f32 to vector<1x128xf32>
      %99 = arith.addf %97, %98 : vector<1x128xf32>
      %100 = math.rsqrt %99 : vector<1x128xf32>
      %101 = vector.broadcast %100 : vector<1x128xf32> to vector<8x128xf32>
      %102 = arith.mulf %92, %101 : vector<8x128xf32>
      %c0_58 = arith.constant 0 : index
      %c0_59 = arith.constant 0 : index
      %103 = vector.load %arg10[%c0_58, %c0_59] : memref<16x128xf32, #tpu.memory_space<vmem>>, vector<8x128xf32>
      tpu.vector_store %arg10[%c0_58, %c0_59], %102 {strides = array<i32>} : memref<16x128xf32, #tpu.memory_space<vmem>>, vector<8x128xf32>,
      %104 = arith.truncf %102 : vector<8x128xf32> to vector<8x128xbf16>
      %c0_60 = arith.constant 0 : index
      %c0_61 = arith.constant 0 : index
      %105 = vector.load %arg7[%c0_60, %c0_61] : memref<128x128xbf16, #tpu.memory_space<vmem>>, vector<128x128xbf16>
      %cst_62 = arith.constant dense<0.000000e+00> : vector<8x128xf32>
      %106 = tpu.matmul %104, %105, %cst_62 {dimension_numbers = #tpu.dot_dimension_numbers<[1], [0], [0], [1], [0, 0, 1, 1], [], []>} : vector<8x128xbf16>, vector<128x128xbf16>, vector<8x128xf32> -> vector<8x128xf32>
      %cst_63 = arith.constant dense<0.000000e+00> : vector<128xf32>
      %107 = vector.multi_reduction <add>, %106, %cst_63 [0] : vector<8x128xf32> to vector<128xf32>
      %108 = vector.shape_cast %107 : vector<128xf32> to vector<1x128xf32>
      %cst_64 = arith.constant 8.000000e+00 : f32
      %109 = vector.broadcast %cst_64 : f32 to vector<1x128xf32>
      %110 = arith.divf %108, %109 : vector<1x128xf32>
      %111 = vector.broadcast %110 : vector<1x128xf32> to vector<8x128xf32>
      %112 = arith.subf %106, %111 : vector<8x128xf32>
      %113 = arith.mulf %112, %112 : vector<8x128xf32>
      %cst_65 = arith.constant dense<0.000000e+00> : vector<128xf32>
      %114 = vector.multi_reduction <add>, %113, %cst_65 [0] : vector<8x128xf32> to vector<128xf32>
      %115 = vector.shape_cast %114 : vector<128xf32> to vector<1x128xf32>
      %cst_66 = arith.constant 8.000000e+00 : f32
      %116 = vector.broadcast %cst_66 : f32 to vector<1x128xf32>
      %117 = arith.divf %115, %116 : vector<1x128xf32>
      %cst_67 = arith.constant 9.99999974E-6 : f32
      %118 = vector.broadcast %cst_67 : f32 to vector<1x128xf32>
      %119 = arith.addf %117, %118 : vector<1x128xf32>
      %120 = math.rsqrt %119 : vector<1x128xf32>
      %121 = vector.broadcast %120 : vector<1x128xf32> to vector<8x128xf32>
      %122 = arith.mulf %112, %121 : vector<8x128xf32>
      %123 = vector.broadcast %29 : vector<1x128xf32> to vector<8x128xf32>
      %124 = arith.mulf %122, %123 : vector<8x128xf32>
      %125 = vector.broadcast %30 : vector<1x128xf32> to vector<8x128xf32>
      %126 = arith.addf %124, %125 : vector<8x128xf32>
      %cst_68 = arith.constant 0.000000e+00 : f32
      %127 = vector.broadcast %cst_68 : f32 to vector<8x128xf32>
      %128 = arith.maximumf %126, %127 : vector<8x128xf32>
      %129 = arith.truncf %128 : vector<8x128xf32> to vector<8x128xbf16>
      %c0_69 = arith.constant 0 : index
      %c0_70 = arith.constant 0 : index
      %130 = vector.load %arg8[%c0_69, %c0_70] : memref<128x128xbf16, #tpu.memory_space<vmem>>, vector<128x128xbf16>
      %cst_71 = arith.constant dense<0.000000e+00> : vector<8x128xf32>
      %131 = tpu.matmul %129, %130, %cst_71 {dimension_numbers = #tpu.dot_dimension_numbers<[1], [0], [0], [1], [0, 0, 1, 1], [], []>} : vector<8x128xbf16>, vector<128x128xbf16>, vector<8x128xf32> -> vector<8x128xf32>
      %132 = vector.broadcast %31 : vector<1x128xf32> to vector<8x128xf32>
      %133 = arith.addf %131, %132 : vector<8x128xf32>
      %c0_72 = arith.constant 0 : index
      %c0_73 = arith.constant 0 : index
      %134 = vector.load %arg11[%c0_72, %c0_73] : memref<16x128xf32, #tpu.memory_space<vmem>>, vector<8x128xf32>
      tpu.vector_store %arg11[%c0_72, %c0_73], %133 {strides = array<i32>} : memref<16x128xf32, #tpu.memory_space<vmem>>, vector<8x128xf32>,
      %c1_74 = arith.constant 1 : index
      %c0_75 = arith.constant 0 : index
      %c0_76 = arith.constant 0 : index
      %135 = vector.load %arg12[%c1_74, %c0_75, %c0_76] : memref<2x8x128xf32, #tpu.memory_space<vmem>>, vector<1x8x128xf32>
      %136 = vector.shape_cast %135 : vector<1x8x128xf32> to vector<8x128xf32>
      %137 = arith.truncf %136 : vector<8x128xf32> to vector<8x128xbf16>
      %c0_77 = arith.constant 0 : index
      %c0_78 = arith.constant 0 : index
      %138 = vector.load %arg4[%c0_77, %c0_78] : memref<128x128xbf16, #tpu.memory_space<vmem>>, vector<128x128xbf16>
      %cst_79 = arith.constant dense<0.000000e+00> : vector<8x128xf32>
      %139 = tpu.matmul %137, %138, %cst_79 {dimension_numbers = #tpu.dot_dimension_numbers<[1], [0], [0], [1], [0, 0, 1, 1], [], []>} : vector<8x128xbf16>, vector<128x128xbf16>, vector<8x128xf32> -> vector<8x128xf32>
      %cst_80 = arith.constant dense<0.000000e+00> : vector<128xf32>
      %140 = vector.multi_reduction <add>, %139, %cst_80 [0] : vector<8x128xf32> to vector<128xf32>
      %141 = vector.shape_cast %140 : vector<128xf32> to vector<1x128xf32>
      %cst_81 = arith.constant 8.000000e+00 : f32
      %142 = vector.broadcast %cst_81 : f32 to vector<1x128xf32>
      %143 = arith.divf %141, %142 : vector<1x128xf32>
      %144 = vector.broadcast %143 : vector<1x128xf32> to vector<8x128xf32>
      %145 = arith.subf %139, %144 : vector<8x128xf32>
      %146 = arith.mulf %145, %145 : vector<8x128xf32>
      %cst_82 = arith.constant dense<0.000000e+00> : vector<128xf32>
      %147 = vector.multi_reduction <add>, %146, %cst_82 [0] : vector<8x128xf32> to vector<128xf32>
      %148 = vector.shape_cast %147 : vector<128xf32> to vector<1x128xf32>
      %cst_83 = arith.constant 8.000000e+00 : f32
      %149 = vector.broadcast %cst_83 : f32 to vector<1x128xf32>
      %150 = arith.divf %148, %149 : vector<1x128xf32>
      %cst_84 = arith.constant 9.99999974E-6 : f32
      %151 = vector.broadcast %cst_84 : f32 to vector<1x128xf32>
      %152 = arith.addf %150, %151 : vector<1x128xf32>
      %153 = math.rsqrt %152 : vector<1x128xf32>
      %154 = vector.broadcast %153 : vector<1x128xf32> to vector<8x128xf32>
      %155 = arith.mulf %145, %154 : vector<8x128xf32>
      %156 = vector.broadcast %25 : vector<1x128xf32> to vector<8x128xf32>
      %157 = arith.mulf %155, %156 : vector<8x128xf32>
      %158 = vector.broadcast %26 : vector<1x128xf32> to vector<8x128xf32>
      %159 = arith.addf %157, %158 : vector<8x128xf32>
      %cst_85 = arith.constant 0.000000e+00 : f32
      %160 = vector.broadcast %cst_85 : f32 to vector<8x128xf32>
      %161 = arith.maximumf %159, %160 : vector<8x128xf32>
      %162 = arith.truncf %161 : vector<8x128xf32> to vector<8x128xbf16>
      %c0_86 = arith.constant 0 : index
      %c0_87 = arith.constant 0 : index
      %163 = vector.load %arg5[%c0_86, %c0_87] : memref<128x128xbf16, #tpu.memory_space<vmem>>, vector<128x128xbf16>
      %cst_88 = arith.constant dense<0.000000e+00> : vector<8x128xf32>
      %164 = tpu.matmul %162, %163, %cst_88 {dimension_numbers = #tpu.dot_dimension_numbers<[1], [0], [0], [1], [0, 0, 1, 1], [], []>} : vector<8x128xbf16>, vector<128x128xbf16>, vector<8x128xf32> -> vector<8x128xf32>
      %cst_89 = arith.constant dense<0.000000e+00> : vector<128xf32>
      %165 = vector.multi_reduction <add>, %164, %cst_89 [0] : vector<8x128xf32> to vector<128xf32>
      %166 = vector.shape_cast %165 : vector<128xf32> to vector<1x128xf32>
      %cst_90 = arith.constant 8.000000e+00 : f32
      %167 = vector.broadcast %cst_90 : f32 to vector<1x128xf32>
      %168 = arith.divf %166, %167 : vector<1x128xf32>
      %169 = vector.broadcast %168 : vector<1x128xf32> to vector<8x128xf32>
      %170 = arith.subf %164, %169 : vector<8x128xf32>
      %171 = arith.mulf %170, %170 : vector<8x128xf32>
      %cst_91 = arith.constant dense<0.000000e+00> : vector<128xf32>
      %172 = vector.multi_reduction <add>, %171, %cst_91 [0] : vector<8x128xf32> to vector<128xf32>
      %173 = vector.shape_cast %172 : vector<128xf32> to vector<1x128xf32>
      %cst_92 = arith.constant 8.000000e+00 : f32
      %174 = vector.broadcast %cst_92 : f32 to vector<1x128xf32>
      %175 = arith.divf %173, %174 : vector<1x128xf32>
      %cst_93 = arith.constant 9.99999974E-6 : f32
      %176 = vector.broadcast %cst_93 : f32 to vector<1x128xf32>
      %177 = arith.addf %175, %176 : vector<1x128xf32>
      %178 = math.rsqrt %177 : vector<1x128xf32>
      %179 = vector.broadcast %178 : vector<1x128xf32> to vector<8x128xf32>
      %180 = arith.mulf %170, %179 : vector<8x128xf32>
      %181 = vector.broadcast %27 : vector<1x128xf32> to vector<8x128xf32>
      %182 = arith.mulf %180, %181 : vector<8x128xf32>
      %183 = vector.broadcast %28 : vector<1x128xf32> to vector<8x128xf32>
      %184 = arith.addf %182, %183 : vector<8x128xf32>
      %cst_94 = arith.constant 0.000000e+00 : f32
      %185 = vector.broadcast %cst_94 : f32 to vector<8x128xf32>
      %186 = arith.maximumf %184, %185 : vector<8x128xf32>
      %187 = arith.truncf %186 : vector<8x128xf32> to vector<8x128xbf16>
      %c0_95 = arith.constant 0 : index
      %c0_96 = arith.constant 0 : index
      %188 = vector.load %arg6[%c0_95, %c0_96] : memref<128x128xbf16, #tpu.memory_space<vmem>>, vector<128x128xbf16>
      %cst_97 = arith.constant dense<0.000000e+00> : vector<8x128xf32>
      %189 = tpu.matmul %187, %188, %cst_97 {dimension_numbers = #tpu.dot_dimension_numbers<[1], [0], [0], [1], [0, 0, 1, 1], [], []>} : vector<8x128xbf16>, vector<128x128xbf16>, vector<8x128xf32> -> vector<8x128xf32>
      %cst_98 = arith.constant dense<0.000000e+00> : vector<128xf32>
      %190 = vector.multi_reduction <add>, %189, %cst_98 [0] : vector<8x128xf32> to vector<128xf32>
      %191 = vector.shape_cast %190 : vector<128xf32> to vector<1x128xf32>
      %cst_99 = arith.constant 8.000000e+00 : f32
      %192 = vector.broadcast %cst_99 : f32 to vector<1x128xf32>
      %193 = arith.divf %191, %192 : vector<1x128xf32>
      %194 = vector.broadcast %193 : vector<1x128xf32> to vector<8x128xf32>
      %195 = arith.subf %189, %194 : vector<8x128xf32>
      %196 = arith.mulf %195, %195 : vector<8x128xf32>
      %cst_100 = arith.constant dense<0.000000e+00> : vector<128xf32>
      %197 = vector.multi_reduction <add>, %196, %cst_100 [0] : vector<8x128xf32> to vector<128xf32>
      %198 = vector.shape_cast %197 : vector<128xf32> to vector<1x128xf32>
      %cst_101 = arith.constant 8.000000e+00 : f32
      %199 = vector.broadcast %cst_101 : f32 to vector<1x128xf32>
      %200 = arith.divf %198, %199 : vector<1x128xf32>
      %cst_102 = arith.constant 9.99999974E-6 : f32
      %201 = vector.broadcast %cst_102 : f32 to vector<1x128xf32>
      %202 = arith.addf %200, %201 : vector<1x128xf32>
      %203 = math.rsqrt %202 : vector<1x128xf32>
      %204 = vector.broadcast %203 : vector<1x128xf32> to vector<8x128xf32>
      %205 = arith.mulf %195, %204 : vector<8x128xf32>
      %c8 = arith.constant 8 : index
      %c0_103 = arith.constant 0 : index
      %206 = vector.load %arg10[%c8, %c0_103] : memref<16x128xf32, #tpu.memory_space<vmem>>, vector<8x128xf32>
      tpu.vector_store %arg10[%c8, %c0_103], %205 {strides = array<i32>} : memref<16x128xf32, #tpu.memory_space<vmem>>, vector<8x128xf32>,
      %207 = arith.truncf %205 : vector<8x128xf32> to vector<8x128xbf16>
      %c0_104 = arith.constant 0 : index
      %c0_105 = arith.constant 0 : index
      %208 = vector.load %arg7[%c0_104, %c0_105] : memref<128x128xbf16, #tpu.memory_space<vmem>>, vector<128x128xbf16>
      %cst_106 = arith.constant dense<0.000000e+00> : vector<8x128xf32>
      %209 = tpu.matmul %207, %208, %cst_106 {dimension_numbers = #tpu.dot_dimension_numbers<[1], [0], [0], [1], [0, 0, 1, 1], [], []>} : vector<8x128xbf16>, vector<128x128xbf16>, vector<8x128xf32> -> vector<8x128xf32>
      %cst_107 = arith.constant dense<0.000000e+00> : vector<128xf32>
      %210 = vector.multi_reduction <add>, %209, %cst_107 [0] : vector<8x128xf32> to vector<128xf32>
      %211 = vector.shape_cast %210 : vector<128xf32> to vector<1x128xf32>
      %cst_108 = arith.constant 8.000000e+00 : f32
      %212 = vector.broadcast %cst_108 : f32 to vector<1x128xf32>
      %213 = arith.divf %211, %212 : vector<1x128xf32>
      %214 = vector.broadcast %213 : vector<1x128xf32> to vector<8x128xf32>
      %215 = arith.subf %209, %214 : vector<8x128xf32>
      %216 = arith.mulf %215, %215 : vector<8x128xf32>
      %cst_109 = arith.constant dense<0.000000e+00> : vector<128xf32>
      %217 = vector.multi_reduction <add>, %216, %cst_109 [0] : vector<8x128xf32> to vector<128xf32>
      %218 = vector.shape_cast %217 : vector<128xf32> to vector<1x128xf32>
      %cst_110 = arith.constant 8.000000e+00 : f32
      %219 = vector.broadcast %cst_110 : f32 to vector<1x128xf32>
      %220 = arith.divf %218, %219 : vector<1x128xf32>
      %cst_111 = arith.constant 9.99999974E-6 : f32
      %221 = vector.broadcast %cst_111 : f32 to vector<1x128xf32>
      %222 = arith.addf %220, %221 : vector<1x128xf32>
      %223 = math.rsqrt %222 : vector<1x128xf32>
      %224 = vector.broadcast %223 : vector<1x128xf32> to vector<8x128xf32>
      %225 = arith.mulf %215, %224 : vector<8x128xf32>
      %226 = vector.broadcast %29 : vector<1x128xf32> to vector<8x128xf32>
      %227 = arith.mulf %225, %226 : vector<8x128xf32>
      %228 = vector.broadcast %30 : vector<1x128xf32> to vector<8x128xf32>
      %229 = arith.addf %227, %228 : vector<8x128xf32>
      %cst_112 = arith.constant 0.000000e+00 : f32
      %230 = vector.broadcast %cst_112 : f32 to vector<8x128xf32>
      %231 = arith.maximumf %229, %230 : vector<8x128xf32>
      %232 = arith.truncf %231 : vector<8x128xf32> to vector<8x128xbf16>
      %c0_113 = arith.constant 0 : index
      %c0_114 = arith.constant 0 : index
      %233 = vector.load %arg8[%c0_113, %c0_114] : memref<128x128xbf16, #tpu.memory_space<vmem>>, vector<128x128xbf16>
      %cst_115 = arith.constant dense<0.000000e+00> : vector<8x128xf32>
      %234 = tpu.matmul %232, %233, %cst_115 {dimension_numbers = #tpu.dot_dimension_numbers<[1], [0], [0], [1], [0, 0, 1, 1], [], []>} : vector<8x128xbf16>, vector<128x128xbf16>, vector<8x128xf32> -> vector<8x128xf32>
      %235 = vector.broadcast %31 : vector<1x128xf32> to vector<8x128xf32>
      %236 = arith.addf %234, %235 : vector<8x128xf32>
      %c8_116 = arith.constant 8 : index
      %c0_117 = arith.constant 0 : index
      %237 = vector.load %arg11[%c8_116, %c0_117] : memref<16x128xf32, #tpu.memory_space<vmem>>, vector<8x128xf32>
      tpu.vector_store %arg11[%c8_116, %c0_117], %236 {strides = array<i32>} : memref<16x128xf32, #tpu.memory_space<vmem>>, vector<8x128xf32>,
    } else {
    }
    return
  }
  func.func @transform_0(%arg0: i32) -> (i32, i32) {
    %c0_i32 = arith.constant 0 : i32
    %c0_i32_0 = arith.constant 0 : i32
    return %c0_i32, %arg0 : i32, i32
  }
  func.func @transform_1(%arg0: i32) -> (i32, i32) {
    %c0_i32 = arith.constant 0 : i32
    %c0_i32_0 = arith.constant 0 : i32
    return %c0_i32, %arg0 : i32, i32
  }
  func.func @transform_2(%arg0: i32) -> (i32, i32) {
    %c0_i32 = arith.constant 0 : i32
    %c0_i32_0 = arith.constant 0 : i32
    return %arg0, %c0_i32 : i32, i32
  }
  func.func @transform_3(%arg0: i32) -> (i32, i32) {
    %c0_i32 = arith.constant 0 : i32
    %c0_i32_0 = arith.constant 0 : i32
    %c0_i32_1 = arith.constant 0 : i32
    return %c0_i32, %c0_i32_0 : i32, i32
  }
  func.func @transform_4(%arg0: i32) -> (i32, i32) {
    %c0_i32 = arith.constant 0 : i32
    %c0_i32_0 = arith.constant 0 : i32
    %c0_i32_1 = arith.constant 0 : i32
    return %c0_i32, %c0_i32_0 : i32, i32
  }
  func.func @transform_5(%arg0: i32) -> (i32, i32) {
    %c0_i32 = arith.constant 0 : i32
    %c0_i32_0 = arith.constant 0 : i32
    %c0_i32_1 = arith.constant 0 : i32
    return %c0_i32, %c0_i32_0 : i32, i32
  }
  func.func @transform_6(%arg0: i32) -> (i32, i32) {
    %c0_i32 = arith.constant 0 : i32
    %c0_i32_0 = arith.constant 0 : i32
    %c0_i32_1 = arith.constant 0 : i32
    return %c0_i32, %c0_i32_0 : i32, i32
  }
  func.func @transform_7(%arg0: i32) -> (i32, i32) {
    %c0_i32 = arith.constant 0 : i32
    %c0_i32_0 = arith.constant 0 : i32
    %c0_i32_1 = arith.constant 0 : i32
    return %c0_i32, %c0_i32_0 : i32, i32
  }
  func.func @transform_8(%arg0: i32) -> (i32, i32) {
    %c0_i32 = arith.constant 0 : i32
    %c0_i32_0 = arith.constant 0 : i32
    %c0_i32_1 = arith.constant 0 : i32
    return %c0_i32, %c0_i32_0 : i32, i32
  }
  func.func @transform_9(%arg0: i32) -> (i32, i32) {
    %c0_i32 = arith.constant 0 : i32
    %c0_i32_0 = arith.constant 0 : i32
    %c0_i32_1 = arith.constant 0 : i32
    return %c0_i32, %c0_i32_0 : i32, i32
  }
  func.func @transform_10(%arg0: i32) -> (i32, i32) {
    %c0_i32 = arith.constant 0 : i32
    %c0_i32_0 = arith.constant 0 : i32
    %c0_i32_1 = arith.constant 0 : i32
    return %c0_i32, %c0_i32_0 : i32, i32
  }
}

</mosaic_0001>

<llo_original>
// kernel: simsiam_forward.1
$region0: #{simsiam_forward.1}
  #allocation0 [shape = 'u32[]', space=smem, size = 0x4, offset = 0x4, fixed_abs, tag = 'smem constant byte address 0x4 - core index']
  #allocation1 [shape = 'u32[72,128]{1,0:T(1,128)}', space=vmem, size = 0x9000, scoped, tag = 'internal scratch']
  #allocation2 [shape = 'f32[2,8,128]{2,1,0:T(8,128)}', space=vmem, size = 0x2000, scoped, tag = 'scratch operand']
  %s0 = inlined_call_operand.vmem [shape: f32[8,1024], index: 0, kind: input, shape index: {}]
  %s1 = inlined_call_operand.vmem [shape: f32[8,1024], index: 1, kind: input, shape index: {}]
  %s2 = inlined_call_operand.vmem [shape: bf16[1024,128], index: 2, kind: input, shape index: {}]
  %s3 = inlined_call_operand.vmem [shape: bf16[128,128], index: 3, kind: input, shape index: {}]
  %s4 = inlined_call_operand.vmem [shape: bf16[128,128], index: 4, kind: input, shape index: {}]
  %s5 = inlined_call_operand.vmem [shape: bf16[128,128], index: 5, kind: input, shape index: {}]
  %s6 = inlined_call_operand.vmem [shape: bf16[128,128], index: 6, kind: input, shape index: {}]
  %s7 = inlined_call_operand.vmem [shape: bf16[128,128], index: 7, kind: input, shape index: {}]
  %s8 = inlined_call_operand.vmem [shape: f32[8,128], index: 8, kind: input, shape index: {}]
  %s9 = inlined_call_operand.vmem [shape: f32[16,128], index: 9, kind: output, shape index: {0}]
  %s10 = inlined_call_operand.vmem [shape: f32[16,128], index: 10, kind: output, shape index: {1}]
  %11 = xla_tuple %s9, %s10
  %s12 = sld [smem:[#allocation0]]
  $region62: #{simsiam_forward.1} parent=0
    _
  %s14 = ssub.s32 1, %s12
  %s15 = scalar_select 0, %s14, %s12
  // Predicated region
  $region2: #{simsiam_forward.1} parent=0 // pred_check
    _
  $region3: #{simsiam_forward.1} parent=0 // pred_check_branch
    %17 = sbr.rel (0) target = $region5
  $region4: #{simsiam_forward.1} parent=0 // pred_region
    _
  $region5: #{simsiam_forward.1} parent=0 // pred_fallthru
    _
  // Predicated region
  $region6: #{simsiam_forward.1} parent=0 // pred_check
    _
  $region7: #{simsiam_forward.1} parent=0 // pred_check_branch
    %19 = sbr.rel (0) target = $region9
  $region8: #{simsiam_forward.1} parent=0 // pred_region
    _
  $region9: #{simsiam_forward.1} parent=0 // pred_fallthru
    _
  // Predicated region
  $region10: #{simsiam_forward.1} parent=0 // pred_check
    _
  $region11: #{simsiam_forward.1} parent=0 // pred_check_branch
    %21 = sbr.rel (0) target = $region13
  $region12: #{simsiam_forward.1} parent=0 // pred_region
    _
  $region13: #{simsiam_forward.1} parent=0 // pred_fallthru
    _
  // Predicated region
  $region14: #{simsiam_forward.1} parent=0 // pred_check
    _
  $region15: #{simsiam_forward.1} parent=0 // pred_check_branch
    %23 = sbr.rel (0) target = $region17
  $region16: #{simsiam_forward.1} parent=0 // pred_region
    _
  $region17: #{simsiam_forward.1} parent=0 // pred_fallthru
    _
  // Predicated region
  $region18: #{simsiam_forward.1} parent=0 // pred_check
    _
  $region19: #{simsiam_forward.1} parent=0 // pred_check_branch
    %25 = sbr.rel (0) target = $region21
  $region20: #{simsiam_forward.1} parent=0 // pred_region
    _
  $region21: #{simsiam_forward.1} parent=0 // pred_fallthru
    _
  // Predicated region
  $region22: #{simsiam_forward.1} parent=0 // pred_check
    _
  $region23: #{simsiam_forward.1} parent=0 // pred_check_branch
    %27 = sbr.rel (0) target = $region25
  $region24: #{simsiam_forward.1} parent=0 // pred_region
    _
  $region25: #{simsiam_forward.1} parent=0 // pred_fallthru
    _
  // Predicated region
  $region26: #{simsiam_forward.1} parent=0 // pred_check
    _
  $region27: #{simsiam_forward.1} parent=0 // pred_check_branch
    %29 = sbr.rel (0) target = $region29
  $region28: #{simsiam_forward.1} parent=0 // pred_region
    _
  $region29: #{simsiam_forward.1} parent=0 // pred_fallthru
    _
  // Predicated region
  $region30: #{simsiam_forward.1} parent=0 // pred_check
    _
  $region31: #{simsiam_forward.1} parent=0 // pred_check_branch
    %31 = sbr.rel (0) target = $region33
  $region32: #{simsiam_forward.1} parent=0 // pred_region
    _
  $region33: #{simsiam_forward.1} parent=0 // pred_fallthru
    _
  // Predicated region
  $region34: #{simsiam_forward.1} parent=0 // pred_check
    _
  $region35: #{simsiam_forward.1} parent=0 // pred_check_branch
    %33 = sbr.rel (0) target = $region37
  $region36: #{simsiam_forward.1} parent=0 // pred_region
    _
  $region37: #{simsiam_forward.1} parent=0 // pred_fallthru
    _
  %p34 = scmp.eq.s32.totalorder 0, 0
  // Predicated region
  $region38: #{simsiam_forward.1} parent=0 // pred_check
    %p35 = pneg %p34
  $region39: #{simsiam_forward.1} parent=0 // pred_check_branch
    %37 = sbr.rel (%p35) target = $region41
  $region40: #{simsiam_forward.1} parent=0 // pred_region
    %38 = vst [vmem:[#allocation2] sm:$0xff] 0.0
    %39 = vst [vmem:[#allocation2 + $0x8] sm:$0xff] 0.0
  $region41: #{simsiam_forward.1} parent=0 // pred_fallthru
    _
  %v40 = vld [vmem:[%s2] sm:$0xf]
  %v41 = vld [vmem:[%s2 + $0x4] sm:$0xf]
  %v42 = vld [vmem:[%s2 + $0x8] sm:$0xf]
  %v43 = vld [vmem:[%s2 + $0xc] sm:$0xf]
  %v44 = vld [vmem:[%s2 + $0x10] sm:$0xf]
  %v45 = vld [vmem:[%s2 + $0x14] sm:$0xf]
  %v46 = vld [vmem:[%s2 + $0x18] sm:$0xf]
  %v47 = vld [vmem:[%s2 + $0x1c] sm:$0xf]
  %v48 = vld [vmem:[%s2 + $0x20] sm:$0xf]
  %v49 = vld [vmem:[%s2 + $0x24] sm:$0xf]
  %v50 = vld [vmem:[%s2 + $0x28] sm:$0xf]
  %v51 = vld [vmem:[%s2 + $0x2c] sm:$0xf]
  %v52 = vld [vmem:[%s2 + $0x30] sm:$0xf]
  %v53 = vld [vmem:[%s2 + $0x34] sm:$0xf]
  %v54 = vld [vmem:[%s2 + $0x38] sm:$0xf]
  %v55 = vld [vmem:[%s2 + $0x3c] sm:$0xf]
  %v56 = vld [vmem:[%s2 + $0x40] sm:$0xf]
  %v57 = vld [vmem:[%s2 + $0x44] sm:$0xf]
  %v58 = vld [vmem:[%s2 + $0x48] sm:$0xf]
  %v59 = vld [vmem:[%s2 + $0x4c] sm:$0xf]
  %v60 = vld [vmem:[%s2 + $0x50] sm:$0xf]
  %v61 = vld [vmem:[%s2 + $0x54] sm:$0xf]
  %v62 = vld [vmem:[%s2 + $0x58] sm:$0xf]
  %v63 = vld [vmem:[%s2 + $0x5c] sm:$0xf]
  %v64 = vld [vmem:[%s2 + $0x60] sm:$0xf]
  %v65 = vld [vmem:[%s2 + $0x64] sm:$0xf]
  %v66 = vld [vmem:[%s2 + $0x68] sm:$0xf]
  %v67 = vld [vmem:[%s2 + $0x6c] sm:$0xf]
  %v68 = vld [vmem:[%s2 + $0x70] sm:$0xf]
  %v69 = vld [vmem:[%s2 + $0x74] sm:$0xf]
  %v70 = vld [vmem:[%s2 + $0x78] sm:$0xf]
  %v71 = vld [vmem:[%s2 + $0x7c] sm:$0xf]
  %v72 = vld [vmem:[%s2 + $0x80] sm:$0xf]
  %v73 = vld [vmem:[%s2 + $0x84] sm:$0xf]
  %v74 = vld [vmem:[%s2 + $0x88] sm:$0xf]
  %v75 = vld [vmem:[%s2 + $0x8c] sm:$0xf]
  %v76 = vld [vmem:[%s2 + $0x90] sm:$0xf]
  %v77 = vld [vmem:[%s2 + $0x94] sm:$0xf]
  %v78 = vld [vmem:[%s2 + $0x98] sm:$0xf]
  %v79 = vld [vmem:[%s2 + $0x9c] sm:$0xf]
  %v80 = vld [vmem:[%s2 + $0xa0] sm:$0xf]
  %v81 = vld [vmem:[%s2 + $0xa4] sm:$0xf]
  %v82 = vld [vmem:[%s2 + $0xa8] sm:$0xf]
  %v83 = vld [vmem:[%s2 + $0xac] sm:$0xf]
  %v84 = vld [vmem:[%s2 + $0xb0] sm:$0xf]
  %v85 = vld [vmem:[%s2 + $0xb4] sm:$0xf]
  %v86 = vld [vmem:[%s2 + $0xb8] sm:$0xf]
  %v87 = vld [vmem:[%s2 + $0xbc] sm:$0xf]
  %v88 = vld [vmem:[%s2 + $0xc0] sm:$0xf]
  %v89 = vld [vmem:[%s2 + $0xc4] sm:$0xf]
  %v90 = vld [vmem:[%s2 + $0xc8] sm:$0xf]
  %v91 = vld [vmem:[%s2 + $0xcc] sm:$0xf]
  %v92 = vld [vmem:[%s2 + $0xd0] sm:$0xf]
  %v93 = vld [vmem:[%s2 + $0xd4] sm:$0xf]
  %v94 = vld [vmem:[%s2 + $0xd8] sm:$0xf]
  %v95 = vld [vmem:[%s2 + $0xdc] sm:$0xf]
  %v96 = vld [vmem:[%s2 + $0xe0] sm:$0xf]
  %v97 = vld [vmem:[%s2 + $0xe4] sm:$0xf]
  %v98 = vld [vmem:[%s2 + $0xe8] sm:$0xf]
  %v99 = vld [vmem:[%s2 + $0xec] sm:$0xf]
  %v100 = vld [vmem:[%s2 + $0xf0] sm:$0xf]
  %v101 = vld [vmem:[%s2 + $0xf4] sm:$0xf]
  %v102 = vld [vmem:[%s2 + $0xf8] sm:$0xf]
  %v103 = vld [vmem:[%s2 + $0xfc] sm:$0xf]
  %v104 = vld [vmem:[%s2 + $0x100] sm:$0xf]
  %v105 = vld [vmem:[%s2 + $0x104] sm:$0xf]
  %v106 = vld [vmem:[%s2 + $0x108] sm:$0xf]
  %v107 = vld [vmem:[%s2 + $0x10c] sm:$0xf]
  %v108 = vld [vmem:[%s2 + $0x110] sm:$0xf]
  %v109 = vld [vmem:[%s2 + $0x114] sm:$0xf]
  %v110 = vld [vmem:[%s2 + $0x118] sm:$0xf]
  %v111 = vld [vmem:[%s2 + $0x11c] sm:$0xf]
  %v112 = vld [vmem:[%s2 + $0x120] sm:$0xf]
  %v113 = vld [vmem:[%s2 + $0x124] sm:$0xf]
  %v114 = vld [vmem:[%s2 + $0x128] sm:$0xf]
  %v115 = vld [vmem:[%s2 + $0x12c] sm:$0xf]
  %v116 = vld [vmem:[%s2 + $0x130] sm:$0xf]
  %v117 = vld [vmem:[%s2 + $0x134] sm:$0xf]
  %v118 = vld [vmem:[%s2 + $0x138] sm:$0xf]
  %v119 = vld [vmem:[%s2 + $0x13c] sm:$0xf]
  %v120 = vld [vmem:[%s2 + $0x140] sm:$0xf]
  %v121 = vld [vmem:[%s2 + $0x144] sm:$0xf]
  %v122 = vld [vmem:[%s2 + $0x148] sm:$0xf]
  %v123 = vld [vmem:[%s2 + $0x14c] sm:$0xf]
  %v124 = vld [vmem:[%s2 + $0x150] sm:$0xf]
  %v125 = vld [vmem:[%s2 + $0x154] sm:$0xf]
  %v126 = vld [vmem:[%s2 + $0x158] sm:$0xf]
  %v127 = vld [vmem:[%s2 + $0x15c] sm:$0xf]
  %v128 = vld [vmem:[%s2 + $0x160] sm:$0xf]
  %v129 = vld [vmem:[%s2 + $0x164] sm:$0xf]
  %v130 = vld [vmem:[%s2 + $0x168] sm:$0xf]
  %v131 = vld [vmem:[%s2 + $0x16c] sm:$0xf]
  %v132 = vld [vmem:[%s2 + $0x170] sm:$0xf]
  %v133 = vld [vmem:[%s2 + $0x174] sm:$0xf]
  %v134 = vld [vmem:[%s2 + $0x178] sm:$0xf]
  %v135 = vld [vmem:[%s2 + $0x17c] sm:$0xf]
  %v136 = vld [vmem:[%s2 + $0x180] sm:$0xf]
  %v137 = vld [vmem:[%s2 + $0x184] sm:$0xf]
  %v138 = vld [vmem:[%s2 + $0x188] sm:$0xf]
  %v139 = vld [vmem:[%s2 + $0x18c] sm:$0xf]
  %v140 = vld [vmem:[%s2 + $0x190] sm:$0xf]
  %v141 = vld [vmem:[%s2 + $0x194] sm:$0xf]
  %v142 = vld [vmem:[%s2 + $0x198] sm:$0xf]
  %v143 = vld [vmem:[%s2 + $0x19c] sm:$0xf]
  %v144 = vld [vmem:[%s2 + $0x1a0] sm:$0xf]
  %v145 = vld [vmem:[%s2 + $0x1a4] sm:$0xf]
  %v146 = vld [vmem:[%s2 + $0x1a8] sm:$0xf]
  %v147 = vld [vmem:[%s2 + $0x1ac] sm:$0xf]
  %v148 = vld [vmem:[%s2 + $0x1b0] sm:$0xf]
  %v149 = vld [vmem:[%s2 + $0x1b4] sm:$0xf]
  %v150 = vld [vmem:[%s2 + $0x1b8] sm:$0xf]
  %v151 = vld [vmem:[%s2 + $0x1bc] sm:$0xf]
  %v152 = vld [vmem:[%s2 + $0x1c0] sm:$0xf]
  %v153 = vld [vmem:[%s2 + $0x1c4] sm:$0xf]
  %v154 = vld [vmem:[%s2 + $0x1c8] sm:$0xf]
  %v155 = vld [vmem:[%s2 + $0x1cc] sm:$0xf]
  %v156 = vld [vmem:[%s2 + $0x1d0] sm:$0xf]
  %v157 = vld [vmem:[%s2 + $0x1d4] sm:$0xf]
  %v158 = vld [vmem:[%s2 + $0x1d8] sm:$0xf]
  %v159 = vld [vmem:[%s2 + $0x1dc] sm:$0xf]
  %v160 = vld [vmem:[%s2 + $0x1e0] sm:$0xf]
  %v161 = vld [vmem:[%s2 + $0x1e4] sm:$0xf]
  %v162 = vld [vmem:[%s2 + $0x1e8] sm:$0xf]
  %v163 = vld [vmem:[%s2 + $0x1ec] sm:$0xf]
  %v164 = vld [vmem:[%s2 + $0x1f0] sm:$0xf]
  %v165 = vld [vmem:[%s2 + $0x1f4] sm:$0xf]
  %v166 = vld [vmem:[%s2 + $0x1f8] sm:$0xf]
  %v167 = vld [vmem:[%s2 + $0x1fc] sm:$0xf]
  %v168 = vld [vmem:[#allocation2] sm:$0xff]
  %v169 = vld [vmem:[%s0] sm:$0xff]
  %v170 = vld [vmem:[%s0 + $0x8] sm:$0xff]
  %v171 = vld [vmem:[%s0 + $0x10] sm:$0xff]
  %v172 = vld [vmem:[%s0 + $0x18] sm:$0xff]
  %v173 = vld [vmem:[%s0 + $0x20] sm:$0xff]
  %v174 = vld [vmem:[%s0 + $0x28] sm:$0xff]
  %v175 = vld [vmem:[%s0 + $0x30] sm:$0xff]
  %v176 = vld [vmem:[%s0 + $0x38] sm:$0xff]
  %v177 = vpack.c.bf16 %v169, %v169
  %v178 = vpack.c.bf16 %v170, %v170
  %v179 = vpack.c.bf16 %v171, %v171
  %v180 = vpack.c.bf16 %v172, %v172
  %v181 = vpack.c.bf16 %v173, %v173
  %v182 = vpack.c.bf16 %v174, %v174
  %v183 = vpack.c.bf16 %v175, %v175
  %v184 = vpack.c.bf16 %v176, %v176
  %v313 = vunpack.c.l.b16 %v40
  %v314 = vunpack.c.l.b16 %v41
  %v315 = vunpack.c.l.b16 %v42
  %v316 = vunpack.c.l.b16 %v43
  %v317 = vunpack.c.l.b16 %v44
  %v318 = vunpack.c.l.b16 %v45
  %v319 = vunpack.c.l.b16 %v46
  %v320 = vunpack.c.l.b16 %v47
  %v321 = vunpack.c.l.b16 %v48
  %v322 = vunpack.c.l.b16 %v49
  %v323 = vunpack.c.l.b16 %v50
  %v324 = vunpack.c.l.b16 %v51
  %v325 = vunpack.c.l.b16 %v52
  %v326 = vunpack.c.l.b16 %v53
  %v327 = vunpack.c.l.b16 %v54
  %v328 = vunpack.c.l.b16 %v55
  %v329 = vunpack.c.l.b16 %v56
  %v330 = vunpack.c.l.b16 %v57
  %v331 = vunpack.c.l.b16 %v58
  %v332 = vunpack.c.l.b16 %v59
  %v333 = vunpack.c.l.b16 %v60
  %v334 = vunpack.c.l.b16 %v61
  %v335 = vunpack.c.l.b16 %v62
  %v336 = vunpack.c.l.b16 %v63
  %v337 = vunpack.c.l.b16 %v64
  %v338 = vunpack.c.l.b16 %v65
  %v339 = vunpack.c.l.b16 %v66
  %v340 = vunpack.c.l.b16 %v67
  %v341 = vunpack.c.l.b16 %v68
  %v342 = vunpack.c.l.b16 %v69
  %v343 = vunpack.c.l.b16 %v70
  %v344 = vunpack.c.l.b16 %v71
  %v345 = vunpack.c.l.b16 %v72
  %v346 = vunpack.c.l.b16 %v73
  %v347 = vunpack.c.l.b16 %v74
  %v348 = vunpack.c.l.b16 %v75
  %v349 = vunpack.c.l.b16 %v76
  %v350 = vunpack.c.l.b16 %v77
  %v351 = vunpack.c.l.b16 %v78
  %v352 = vunpack.c.l.b16 %v79
  %v353 = vunpack.c.l.b16 %v80
  %v354 = vunpack.c.l.b16 %v81
  %v355 = vunpack.c.l.b16 %v82
  %v356 = vunpack.c.l.b16 %v83
  %v357 = vunpack.c.l.b16 %v84
  %v358 = vunpack.c.l.b16 %v85
  %v359 = vunpack.c.l.b16 %v86
  %v360 = vunpack.c.l.b16 %v87
  %v361 = vunpack.c.l.b16 %v88
  %v362 = vunpack.c.l.b16 %v89
  %v363 = vunpack.c.l.b16 %v90
  %v364 = vunpack.c.l.b16 %v91
  %v365 = vunpack.c.l.b16 %v92
  %v366 = vunpack.c.l.b16 %v93
  %v367 = vunpack.c.l.b16 %v94
  %v368 = vunpack.c.l.b16 %v95
  %v369 = vunpack.c.l.b16 %v96
  %v370 = vunpack.c.l.b16 %v97
  %v371 = vunpack.c.l.b16 %v98
  %v372 = vunpack.c.l.b16 %v99
  %v373 = vunpack.c.l.b16 %v100
  %v374 = vunpack.c.l.b16 %v101
  %v375 = vunpack.c.l.b16 %v102
  %v376 = vunpack.c.l.b16 %v103
  %v377 = vunpack.c.l.b16 %v104
  %v378 = vunpack.c.l.b16 %v105
  %v379 = vunpack.c.l.b16 %v106
  %v380 = vunpack.c.l.b16 %v107
  %v381 = vunpack.c.l.b16 %v108
  %v382 = vunpack.c.l.b16 %v109
  %v383 = vunpack.c.l.b16 %v110
  %v384 = vunpack.c.l.b16 %v111
  %v385 = vunpack.c.l.b16 %v112
  %v386 = vunpack.c.l.b16 %v113
  %v387 = vunpack.c.l.b16 %v114
  %v388 = vunpack.c.l.b16 %v115
  %v389 = vunpack.c.l.b16 %v116
  %v390 = vunpack.c.l.b16 %v117
  %v391 = vunpack.c.l.b16 %v118
  %v392 = vunpack.c.l.b16 %v119
  %v393 = vunpack.c.l.b16 %v120
  %v394 = vunpack.c.l.b16 %v121
  %v395 = vunpack.c.l.b16 %v122
  %v396 = vunpack.c.l.b16 %v123
  %v397 = vunpack.c.l.b16 %v124
  %v398 = vunpack.c.l.b16 %v125
  %v399 = vunpack.c.l.b16 %v126
  %v400 = vunpack.c.l.b16 %v127
  %v401 = vunpack.c.l.b16 %v128
  %v402 = vunpack.c.l.b16 %v129
  %v403 = vunpack.c.l.b16 %v130
  %v404 = vunpack.c.l.b16 %v131
  %v405 = vunpack.c.l.b16 %v132
  %v406 = vunpack.c.l.b16 %v133
  %v407 = vunpack.c.l.b16 %v134
  %v408 = vunpack.c.l.b16 %v135
  %v409 = vunpack.c.l.b16 %v136
  %v410 = vunpack.c.l.b16 %v137
  %v411 = vunpack.c.l.b16 %v138
  %v412 = vunpack.c.l.b16 %v139
  %v413 = vunpack.c.l.b16 %v140
  %v414 = vunpack.c.l.b16 %v141
  %v415 = vunpack.c.l.b16 %v142
  %v416 = vunpack.c.l.b16 %v143
  %v417 = vunpack.c.l.b16 %v144
  %v418 = vunpack.c.l.b16 %v145
  %v419 = vunpack.c.l.b16 %v146
  %v420 = vunpack.c.l.b16 %v147
  %v421 = vunpack.c.l.b16 %v148
  %v422 = vunpack.c.l.b16 %v149
  %v423 = vunpack.c.l.b16 %v150
  %v424 = vunpack.c.l.b16 %v151
  %v425 = vunpack.c.l.b16 %v152
  %v426 = vunpack.c.l.b16 %v153
  %v427 = vunpack.c.l.b16 %v154
  %v428 = vunpack.c.l.b16 %v155
  %v429 = vunpack.c.l.b16 %v156
  %v430 = vunpack.c.l.b16 %v157
  %v431 = vunpack.c.l.b16 %v158
  %v432 = vunpack.c.l.b16 %v159
  %v433 = vunpack.c.l.b16 %v160
  %v434 = vunpack.c.l.b16 %v161
  %v435 = vunpack.c.l.b16 %v162
  %v436 = vunpack.c.l.b16 %v163
  %v437 = vunpack.c.l.b16 %v164
  %v438 = vunpack.c.l.b16 %v165
  %v439 = vunpack.c.l.b16 %v166
  %v440 = vunpack.c.l.b16 %v167
  %v441 = vpack.c.b16 %v314, %v313
  %v442 = vpack.c.b16 %v316, %v315
  %v443 = vpack.c.b16 %v318, %v317
  %v444 = vpack.c.b16 %v320, %v319
  %v445 = vpack.c.b16 %v322, %v321
  %v446 = vpack.c.b16 %v324, %v323
  %v447 = vpack.c.b16 %v326, %v325
  %v448 = vpack.c.b16 %v328, %v327
  %v449 = vpack.c.b16 %v330, %v329
  %v450 = vpack.c.b16 %v332, %v331
  %v451 = vpack.c.b16 %v334, %v333
  %v452 = vpack.c.b16 %v336, %v335
  %v453 = vpack.c.b16 %v338, %v337
  %v454 = vpack.c.b16 %v340, %v339
  %v455 = vpack.c.b16 %v342, %v341
  %v456 = vpack.c.b16 %v344, %v343
  %v457 = vpack.c.b16 %v346, %v345
  %v458 = vpack.c.b16 %v348, %v347
  %v459 = vpack.c.b16 %v350, %v349
  %v460 = vpack.c.b16 %v352, %v351
  %v461 = vpack.c.b16 %v354, %v353
  %v462 = vpack.c.b16 %v356, %v355
  %v463 = vpack.c.b16 %v358, %v357
  %v464 = vpack.c.b16 %v360, %v359
  %v465 = vpack.c.b16 %v362, %v361
  %v466 = vpack.c.b16 %v364, %v363
  %v467 = vpack.c.b16 %v366, %v365
  %v468 = vpack.c.b16 %v368, %v367
  %v469 = vpack.c.b16 %v370, %v369
  %v470 = vpack.c.b16 %v372, %v371
  %v471 = vpack.c.b16 %v374, %v373
  %v472 = vpack.c.b16 %v376, %v375
  %v473 = vpack.c.b16 %v378, %v377
  %v474 = vpack.c.b16 %v380, %v379
  %v475 = vpack.c.b16 %v382, %v381
  %v476 = vpack.c.b16 %v384, %v383
  %v477 = vpack.c.b16 %v386, %v385
  %v478 = vpack.c.b16 %v388, %v387
  %v479 = vpack.c.b16 %v390, %v389
  %v480 = vpack.c.b16 %v392, %v391
  %v481 = vpack.c.b16 %v394, %v393
  %v482 = vpack.c.b16 %v396, %v395
  %v483 = vpack.c.b16 %v398, %v397
  %v484 = vpack.c.b16 %v400, %v399
  %v485 = vpack.c.b16 %v402, %v401
  %v486 = vpack.c.b16 %v404, %v403
  %v487 = vpack.c.b16 %v406, %v405
  %v488 = vpack.c.b16 %v408, %v407
  %v489 = vpack.c.b16 %v410, %v409
  %v490 = vpack.c.b16 %v412, %v411
  %v491 = vpack.c.b16 %v414, %v413
  %v492 = vpack.c.b16 %v416, %v415
  %v493 = vpack.c.b16 %v418, %v417
  %v494 = vpack.c.b16 %v420, %v419
  %v495 = vpack.c.b16 %v422, %v421
  %v496 = vpack.c.b16 %v424, %v423
  %v497 = vpack.c.b16 %v426, %v425
  %v498 = vpack.c.b16 %v428, %v427
  %v499 = vpack.c.b16 %v430, %v429
  %v500 = vpack.c.b16 %v432, %v431
  %v501 = vpack.c.b16 %v434, %v433
  %v502 = vpack.c.b16 %v436, %v435
  %v503 = vpack.c.b16 %v438, %v437
  %v504 = vpack.c.b16 %v440, %v439
  %569 = vmatpush.bf16.msra.mxu0 %v448
  %570 = vmatpush.bf16.msra.mxu0 %v447
  %571 = vmatpush.bf16.msra.mxu0 %v446
  %572 = vmatpush.bf16.msra.mxu0 %v445
  %573 = vmatpush.bf16.msra.mxu0 %v444
  %574 = vmatpush.bf16.msra.mxu0 %v443
  %575 = vmatpush.bf16.msra.mxu0 %v442
  %576 = vmatpush.bf16.msra.mxu0 %v441
  %577 = vmatmul.bf16.gmra.mxu0 %v177
  %v578 = vpop.f32.mrf.mxu0
  %v579 = vadd.f32 0.0, %v578
  %v580 = vpop.f32.mrf.mxu0
  %581 = vdwg.mxu0
  %582 = vmatpush.bf16.msra.mxu0 %v456
  %583 = vmatpush.bf16.msra.mxu0 %v455
  %584 = vmatpush.bf16.msra.mxu0 %v454
  %585 = vmatpush.bf16.msra.mxu0 %v453
  %586 = vmatpush.bf16.msra.mxu0 %v452
  %587 = vmatpush.bf16.msra.mxu0 %v451
  %588 = vmatpush.bf16.msra.mxu0 %v450
  %589 = vmatpush.bf16.msra.mxu0 %v449
  %590 = vmatmul.bf16.gmra.mxu0 %v178
  %v591 = vpop.f32.mrf.mxu0
  %v592 = vadd.f32 %v579, %v591
  %v593 = vpop.f32.mrf.mxu0
  %594 = vdwg.mxu0
  %595 = vmatpush.bf16.msra.mxu0 %v464
  %596 = vmatpush.bf16.msra.mxu0 %v463
  %597 = vmatpush.bf16.msra.mxu0 %v462
  %598 = vmatpush.bf16.msra.mxu0 %v461
  %599 = vmatpush.bf16.msra.mxu0 %v460
  %600 = vmatpush.bf16.msra.mxu0 %v459
  %601 = vmatpush.bf16.msra.mxu0 %v458
  %602 = vmatpush.bf16.msra.mxu0 %v457
  %603 = vmatmul.bf16.gmra.mxu0 %v179
  %v604 = vpop.f32.mrf.mxu0
  %v605 = vadd.f32 %v592, %v604
  %v606 = vpop.f32.mrf.mxu0
  %607 = vdwg.mxu0
  %608 = vmatpush.bf16.msra.mxu0 %v472
  %609 = vmatpush.bf16.msra.mxu0 %v471
  %610 = vmatpush.bf16.msra.mxu0 %v470
  %611 = vmatpush.bf16.msra.mxu0 %v469
  %612 = vmatpush.bf16.msra.mxu0 %v468
  %613 = vmatpush.bf16.msra.mxu0 %v467
  %614 = vmatpush.bf16.msra.mxu0 %v466
  %615 = vmatpush.bf16.msra.mxu0 %v465
  %616 = vmatmul.bf16.gmra.mxu0 %v180
  %v617 = vpop.f32.mrf.mxu0
  %v618 = vadd.f32 %v605, %v617
  %v619 = vpop.f32.mrf.mxu0
  %620 = vdwg.mxu0
  %621 = vmatpush.bf16.msra.mxu0 %v480
  %622 = vmatpush.bf16.msra.mxu0 %v479
  %623 = vmatpush.bf16.msra.mxu0 %v478
  %624 = vmatpush.bf16.msra.mxu0 %v477
  %625 = vmatpush.bf16.msra.mxu0 %v476
  %626 = vmatpush.bf16.msra.mxu0 %v475
  %627 = vmatpush.bf16.msra.mxu0 %v474
  %628 = vmatpush.bf16.msra.mxu0 %v473
  %629 = vmatmul.bf16.gmra.mxu0 %v181
  %v630 = vpop.f32.mrf.mxu0
  %v631 = vadd.f32 %v618, %v630
  %v632 = vpop.f32.mrf.mxu0
  %633 = vdwg.mxu0
  %634 = vmatpush.bf16.msra.mxu0 %v488
  %635 = vmatpush.bf16.msra.mxu0 %v487
  %636 = vmatpush.bf16.msra.mxu0 %v486
  %637 = vmatpush.bf16.msra.mxu0 %v485
  %638 = vmatpush.bf16.msra.mxu0 %v484
  %639 = vmatpush.bf16.msra.mxu0 %v483
  %640 = vmatpush.bf16.msra.mxu0 %v482
  %641 = vmatpush.bf16.msra.mxu0 %v481
  %642 = vmatmul.bf16.gmra.mxu0 %v182
  %v643 = vpop.f32.mrf.mxu0
  %v644 = vadd.f32 %v631, %v643
  %v645 = vpop.f32.mrf.mxu0
  %646 = vdwg.mxu0
  %647 = vmatpush.bf16.msra.mxu0 %v496
  %648 = vmatpush.bf16.msra.mxu0 %v495
  %649 = vmatpush.bf16.msra.mxu0 %v494
  %650 = vmatpush.bf16.msra.mxu0 %v493
  %651 = vmatpush.bf16.msra.mxu0 %v492
  %652 = vmatpush.bf16.msra.mxu0 %v491
  %653 = vmatpush.bf16.msra.mxu0 %v490
  %654 = vmatpush.bf16.msra.mxu0 %v489
  %655 = vmatmul.bf16.gmra.mxu0 %v183
  %v656 = vpop.f32.mrf.mxu0
  %v657 = vadd.f32 %v644, %v656
  %v658 = vpop.f32.mrf.mxu0
  %659 = vdwg.mxu0
  %660 = vmatpush.bf16.msra.mxu0 %v504
  %661 = vmatpush.bf16.msra.mxu0 %v503
  %662 = vmatpush.bf16.msra.mxu0 %v502
  %663 = vmatpush.bf16.msra.mxu0 %v501
  %664 = vmatpush.bf16.msra.mxu0 %v500
  %665 = vmatpush.bf16.msra.mxu0 %v499
  %666 = vmatpush.bf16.msra.mxu0 %v498
  %667 = vmatpush.bf16.msra.mxu0 %v497
  %668 = vmatmul.bf16.gmra.mxu0 %v184
  %v669 = vpop.f32.mrf.mxu0
  %v670 = vadd.f32 %v657, %v669
  %v671 = vpop.f32.mrf.mxu0
  %672 = vdwg.mxu0
  %v673 = vadd.f32 %v168, %v670
  %674 = vst [vmem:[#allocation2] sm:$0xff] %v673
  %s675 = scalar_lea.vmem [#allocation2], 8
  %v676 = vld [vmem:[%s675] sm:$0xff]
  %v677 = vld [vmem:[%s1] sm:$0xff]
  %v678 = vld [vmem:[%s1 + $0x8] sm:$0xff]
  %v679 = vld [vmem:[%s1 + $0x10] sm:$0xff]
  %v680 = vld [vmem:[%s1 + $0x18] sm:$0xff]
  %v681 = vld [vmem:[%s1 + $0x20] sm:$0xff]
  %v682 = vld [vmem:[%s1 + $0x28] sm:$0xff]
  %v683 = vld [vmem:[%s1 + $0x30] sm:$0xff]
  %v684 = vld [vmem:[%s1 + $0x38] sm:$0xff]
  %v685 = vpack.c.bf16 %v677, %v677
  %v686 = vpack.c.bf16 %v678, %v678
  %v687 = vpack.c.bf16 %v679, %v679
  %v688 = vpack.c.bf16 %v680, %v680
  %v689 = vpack.c.bf16 %v681, %v681
  %v690 = vpack.c.bf16 %v682, %v682
  %v691 = vpack.c.bf16 %v683, %v683
  %v692 = vpack.c.bf16 %v684, %v684
  %693 = vmatpush.bf16.msra.mxu0 %v448
  %694 = vmatpush.bf16.msra.mxu0 %v447
  %695 = vmatpush.bf16.msra.mxu0 %v446
  %696 = vmatpush.bf16.msra.mxu0 %v445
  %697 = vmatpush.bf16.msra.mxu0 %v444
  %698 = vmatpush.bf16.msra.mxu0 %v443
  %699 = vmatpush.bf16.msra.mxu0 %v442
  %700 = vmatpush.bf16.msra.mxu0 %v441
  %701 = vmatmul.bf16.gmra.mxu0 %v685
  %v702 = vpop.f32.mrf.mxu0
  %v703 = vadd.f32 0.0, %v702
  %v704 = vpop.f32.mrf.mxu0
  %705 = vdwg.mxu0
  %706 = vmatpush.bf16.msra.mxu0 %v456
  %707 = vmatpush.bf16.msra.mxu0 %v455
  %708 = vmatpush.bf16.msra.mxu0 %v454
  %709 = vmatpush.bf16.msra.mxu0 %v453
  %710 = vmatpush.bf16.msra.mxu0 %v452
  %711 = vmatpush.bf16.msra.mxu0 %v451
  %712 = vmatpush.bf16.msra.mxu0 %v450
  %713 = vmatpush.bf16.msra.mxu0 %v449
  %714 = vmatmul.bf16.gmra.mxu0 %v686
  %v715 = vpop.f32.mrf.mxu0
  %v716 = vadd.f32 %v703, %v715
  %v717 = vpop.f32.mrf.mxu0
  %718 = vdwg.mxu0
  %719 = vmatpush.bf16.msra.mxu0 %v464
  %720 = vmatpush.bf16.msra.mxu0 %v463
  %721 = vmatpush.bf16.msra.mxu0 %v462
  %722 = vmatpush.bf16.msra.mxu0 %v461
  %723 = vmatpush.bf16.msra.mxu0 %v460
  %724 = vmatpush.bf16.msra.mxu0 %v459
  %725 = vmatpush.bf16.msra.mxu0 %v458
  %726 = vmatpush.bf16.msra.mxu0 %v457
  %727 = vmatmul.bf16.gmra.mxu0 %v687
  %v728 = vpop.f32.mrf.mxu0
  %v729 = vadd.f32 %v716, %v728
  %v730 = vpop.f32.mrf.mxu0
  %731 = vdwg.mxu0
  %732 = vmatpush.bf16.msra.mxu0 %v472
  %733 = vmatpush.bf16.msra.mxu0 %v471
  %734 = vmatpush.bf16.msra.mxu0 %v470
  %735 = vmatpush.bf16.msra.mxu0 %v469
  %736 = vmatpush.bf16.msra.mxu0 %v468
  %737 = vmatpush.bf16.msra.mxu0 %v467
  %738 = vmatpush.bf16.msra.mxu0 %v466
  %739 = vmatpush.bf16.msra.mxu0 %v465
  %740 = vmatmul.bf16.gmra.mxu0 %v688
  %v741 = vpop.f32.mrf.mxu0
  %v742 = vadd.f32 %v729, %v741
  %v743 = vpop.f32.mrf.mxu0
  %744 = vdwg.mxu0
  %745 = vmatpush.bf16.msra.mxu0 %v480
  %746 = vmatpush.bf16.msra.mxu0 %v479
  %747 = vmatpush.bf16.msra.mxu0 %v478
  %748 = vmatpush.bf16.msra.mxu0 %v477
  %749 = vmatpush.bf16.msra.mxu0 %v476
  %750 = vmatpush.bf16.msra.mxu0 %v475
  %751 = vmatpush.bf16.msra.mxu0 %v474
  %752 = vmatpush.bf16.msra.mxu0 %v473
  %753 = vmatmul.bf16.gmra.mxu0 %v689
  %v754 = vpop.f32.mrf.mxu0
  %v755 = vadd.f32 %v742, %v754
  %v756 = vpop.f32.mrf.mxu0
  %757 = vdwg.mxu0
  %758 = vmatpush.bf16.msra.mxu0 %v488
  %759 = vmatpush.bf16.msra.mxu0 %v487
  %760 = vmatpush.bf16.msra.mxu0 %v486
  %761 = vmatpush.bf16.msra.mxu0 %v485
  %762 = vmatpush.bf16.msra.mxu0 %v484
  %763 = vmatpush.bf16.msra.mxu0 %v483
  %764 = vmatpush.bf16.msra.mxu0 %v482
  %765 = vmatpush.bf16.msra.mxu0 %v481
  %766 = vmatmul.bf16.gmra.mxu0 %v690
  %v767 = vpop.f32.mrf.mxu0
  %v768 = vadd.f32 %v755, %v767
  %v769 = vpop.f32.mrf.mxu0
  %770 = vdwg.mxu0
  %771 = vmatpush.bf16.msra.mxu0 %v496
  %772 = vmatpush.bf16.msra.mxu0 %v495
  %773 = vmatpush.bf16.msra.mxu0 %v494
  %774 = vmatpush.bf16.msra.mxu0 %v493
  %775 = vmatpush.bf16.msra.mxu0 %v492
  %776 = vmatpush.bf16.msra.mxu0 %v491
  %777 = vmatpush.bf16.msra.mxu0 %v490
  %778 = vmatpush.bf16.msra.mxu0 %v489
  %779 = vmatmul.bf16.gmra.mxu0 %v691
  %v780 = vpop.f32.mrf.mxu0
  %v781 = vadd.f32 %v768, %v780
  %v782 = vpop.f32.mrf.mxu0
  %783 = vdwg.mxu0
  %784 = vmatpush.bf16.msra.mxu0 %v504
  %785 = vmatpush.bf16.msra.mxu0 %v503
  %786 = vmatpush.bf16.msra.mxu0 %v502
  %787 = vmatpush.bf16.msra.mxu0 %v501
  %788 = vmatpush.bf16.msra.mxu0 %v500
  %789 = vmatpush.bf16.msra.mxu0 %v499
  %790 = vmatpush.bf16.msra.mxu0 %v498
  %791 = vmatpush.bf16.msra.mxu0 %v497
  %792 = vmatmul.bf16.gmra.mxu0 %v692
  %v793 = vpop.f32.mrf.mxu0
  %v794 = vadd.f32 %v781, %v793
  %v795 = vpop.f32.mrf.mxu0
  %796 = vdwg.mxu0
  %v797 = vadd.f32 %v676, %v794
  %798 = vst [vmem:[%s675] sm:$0xff] %v797
  // Predicated region
  $region42: #{simsiam_forward.1} parent=0 // pred_check
    %p799 = pneg %p34
  $region43: #{simsiam_forward.1} parent=0 // pred_check_branch
    %801 = sbr.rel (%p799) target = $region45
  $region44: #{simsiam_forward.1} parent=0 // pred_region
    %v802 = vld [vmem:[%s8] sm:$0x1]
    %v803 = vld [vmem:[%s8 + $0x1] sm:$0x1]
    %v804 = vld [vmem:[%s8 + $0x2] sm:$0x1]
    %v805 = vld [vmem:[%s8 + $0x3] sm:$0x1]
    %v806 = vld [vmem:[%s8 + $0x4] sm:$0x1]
    %v807 = vld [vmem:[%s8 + $0x5] sm:$0x1]
    %v808 = vld [vmem:[%s8 + $0x6] sm:$0x1]
    %v809 = vld [vmem:[#allocation2] sm:$0xff]
    %v810 = vpack.c.bf16 %v809, %v809
    %v811 = vld [vmem:[%s3] sm:$0xf]
    %v812 = vld [vmem:[%s3 + $0x4] sm:$0xf]
    %v813 = vld [vmem:[%s3 + $0x8] sm:$0xf]
    %v814 = vld [vmem:[%s3 + $0xc] sm:$0xf]
    %v815 = vld [vmem:[%s3 + $0x10] sm:$0xf]
    %v816 = vld [vmem:[%s3 + $0x14] sm:$0xf]
    %v817 = vld [vmem:[%s3 + $0x18] sm:$0xf]
    %v818 = vld [vmem:[%s3 + $0x1c] sm:$0xf]
    %v819 = vld [vmem:[%s3 + $0x20] sm:$0xf]
    %v820 = vld [vmem:[%s3 + $0x24] sm:$0xf]
    %v821 = vld [vmem:[%s3 + $0x28] sm:$0xf]
    %v822 = vld [vmem:[%s3 + $0x2c] sm:$0xf]
    %v823 = vld [vmem:[%s3 + $0x30] sm:$0xf]
    %v824 = vld [vmem:[%s3 + $0x34] sm:$0xf]
    %v825 = vld [vmem:[%s3 + $0x38] sm:$0xf]
    %v826 = vld [vmem:[%s3 + $0x3c] sm:$0xf]
    %v843 = vunpack.c.l.b16 %v811
    %v844 = vunpack.c.l.b16 %v812
    %v845 = vunpack.c.l.b16 %v813
    %v846 = vunpack.c.l.b16 %v814
    %v847 = vunpack.c.l.b16 %v815
    %v848 = vunpack.c.l.b16 %v816
    %v849 = vunpack.c.l.b16 %v817
    %v850 = vunpack.c.l.b16 %v818
    %v851 = vunpack.c.l.b16 %v819
    %v852 = vunpack.c.l.b16 %v820
    %v853 = vunpack.c.l.b16 %v821
    %v854 = vunpack.c.l.b16 %v822
    %v855 = vunpack.c.l.b16 %v823
    %v856 = vunpack.c.l.b16 %v824
    %v857 = vunpack.c.l.b16 %v825
    %v858 = vunpack.c.l.b16 %v826
    %v859 = vpack.c.b16 %v844, %v843
    %v860 = vpack.c.b16 %v846, %v845
    %v861 = vpack.c.b16 %v848, %v847
    %v862 = vpack.c.b16 %v850, %v849
    %v863 = vpack.c.b16 %v852, %v851
    %v864 = vpack.c.b16 %v854, %v853
    %v865 = vpack.c.b16 %v856, %v855
    %v866 = vpack.c.b16 %v858, %v857
    %875 = vmatpush.bf16.msra.mxu0 %v866
    %876 = vmatpush.bf16.msra.mxu0 %v865
    %877 = vmatpush.bf16.msra.mxu0 %v864
    %878 = vmatpush.bf16.msra.mxu0 %v863
    %879 = vmatpush.bf16.msra.mxu0 %v862
    %880 = vmatpush.bf16.msra.mxu0 %v861
    %881 = vmatpush.bf16.msra.mxu0 %v860
    %882 = vmatpush.bf16.msra.mxu0 %v859
    %883 = vmatmul.bf16.gmra.mxu0 %v810
    %v884 = vpop.f32.mrf.mxu0
    %v885 = vadd.f32 0.0, %v884
    %v886 = vpop.f32.mrf.mxu0
    %887 = vdwg.mxu0
    %v888 = vrot.slane %v885, 4
    %v889 = vadd.f32 %v885, %v888
    %v890 = vrot.slane %v889, 2
    %v891 = vadd.f32 %v889, %v890
    %v892 = vrot.slane %v891, 1
    %v893 = vadd.f32 %v891, %v892
    %v894 = vrcp.pop 8.0
    %v895 = vmul.f32 8.0, %v894
    %v896 = vsub.f32 1.0, %v895
    %v897 = vmul.f32 %v894, %v896
    %v898 = vadd.f32 %v894, %v897
    %vm899 = vweird.f32 %v894
    %v900 = vsel %vm899, %v894, %v898
    %v901 = vmul.f32 %v893, %v900
    %v902 = vsub.f32 %v885, %v901
    %v903 = vmul.f32 %v902, %v902
    %v904 = vrot.slane %v903, 4
    %v905 = vadd.f32 %v903, %v904
    %v906 = vrot.slane %v905, 2
    %v907 = vadd.f32 %v905, %v906
    %v908 = vrot.slane %v907, 1
    %v909 = vadd.f32 %v907, %v908
    %v910 = vmul.f32 %v909, %v900
    %v911 = vadd.f32 %v910, 1e-05
    %v912 = vrsqrt.pop %v911
    %v913 = vmul.f32 %v912, %v911
    %v914 = vmul.f32 %v913, %v912
    %v915 = vmul.f32 0.5, %v914
    %v916 = vsub.f32 1.5, %v915
    %v917 = vmul.f32 %v912, %v916
    %vm918 = vweird.f32 %v911
    %vm919 = vweird.f32 %v912
    %vm920 = vmor %vm918, %vm919
    %v921 = vsel %vm920, %v912, %v917
    %v922 = vmul.f32 %v902, %v921
    %v923 = vperm.slane %v802, 0
    %v924 = vmul.f32 %v922, %v923
    %v925 = vperm.slane %v803, 0
    %v926 = vadd.f32 %v924, %v925
    %v927 = vmax.f32 %v926, 0.0
    %v928 = vpack.c.bf16 %v927, %v927
    %v929 = vld [vmem:[%s4] sm:$0xf]
    %v930 = vld [vmem:[%s4 + $0x4] sm:$0xf]
    %v931 = vld [vmem:[%s4 + $0x8] sm:$0xf]
    %v932 = vld [vmem:[%s4 + $0xc] sm:$0xf]
    %v933 = vld [vmem:[%s4 + $0x10] sm:$0xf]
    %v934 = vld [vmem:[%s4 + $0x14] sm:$0xf]
    %v935 = vld [vmem:[%s4 + $0x18] sm:$0xf]
    %v936 = vld [vmem:[%s4 + $0x1c] sm:$0xf]
    %v937 = vld [vmem:[%s4 + $0x20] sm:$0xf]
    %v938 = vld [vmem:[%s4 + $0x24] sm:$0xf]
    %v939 = vld [vmem:[%s4 + $0x28] sm:$0xf]
    %v940 = vld [vmem:[%s4 + $0x2c] sm:$0xf]
    %v941 = vld [vmem:[%s4 + $0x30] sm:$0xf]
    %v942 = vld [vmem:[%s4 + $0x34] sm:$0xf]
    %v943 = vld [vmem:[%s4 + $0x38] sm:$0xf]
    %v944 = vld [vmem:[%s4 + $0x3c] sm:$0xf]
    %v961 = vunpack.c.l.b16 %v929
    %v962 = vunpack.c.l.b16 %v930
    %v963 = vunpack.c.l.b16 %v931
    %v964 = vunpack.c.l.b16 %v932
    %v965 = vunpack.c.l.b16 %v933
    %v966 = vunpack.c.l.b16 %v934
    %v967 = vunpack.c.l.b16 %v935
    %v968 = vunpack.c.l.b16 %v936
    %v969 = vunpack.c.l.b16 %v937
    %v970 = vunpack.c.l.b16 %v938
    %v971 = vunpack.c.l.b16 %v939
    %v972 = vunpack.c.l.b16 %v940
    %v973 = vunpack.c.l.b16 %v941
    %v974 = vunpack.c.l.b16 %v942
    %v975 = vunpack.c.l.b16 %v943
    %v976 = vunpack.c.l.b16 %v944
    %v977 = vpack.c.b16 %v962, %v961
    %v978 = vpack.c.b16 %v964, %v963
    %v979 = vpack.c.b16 %v966, %v965
    %v980 = vpack.c.b16 %v968, %v967
    %v981 = vpack.c.b16 %v970, %v969
    %v982 = vpack.c.b16 %v972, %v971
    %v983 = vpack.c.b16 %v974, %v973
    %v984 = vpack.c.b16 %v976, %v975
    %993 = vmatpush.bf16.msra.mxu0 %v984
    %994 = vmatpush.bf16.msra.mxu0 %v983
    %995 = vmatpush.bf16.msra.mxu0 %v982
    %996 = vmatpush.bf16.msra.mxu0 %v981
    %997 = vmatpush.bf16.msra.mxu0 %v980
    %998 = vmatpush.bf16.msra.mxu0 %v979
    %999 = vmatpush.bf16.msra.mxu0 %v978
    %1000 = vmatpush.bf16.msra.mxu0 %v977
    %1001 = vmatmul.bf16.gmra.mxu0 %v928
    %v1002 = vpop.f32.mrf.mxu0
    %v1003 = vadd.f32 0.0, %v1002
    %v1004 = vpop.f32.mrf.mxu0
    %1005 = vdwg.mxu0
    %v1006 = vrot.slane %v1003, 4
    %v1007 = vadd.f32 %v1003, %v1006
    %v1008 = vrot.slane %v1007, 2
    %v1009 = vadd.f32 %v1007, %v1008
    %v1010 = vrot.slane %v1009, 1
    %v1011 = vadd.f32 %v1009, %v1010
    %v1012 = vmul.f32 %v1011, %v900
    %v1013 = vsub.f32 %v1003, %v1012
    %v1014 = vmul.f32 %v1013, %v1013
    %v1015 = vrot.slane %v1014, 4
    %v1016 = vadd.f32 %v1014, %v1015
    %v1017 = vrot.slane %v1016, 2
    %v1018 = vadd.f32 %v1016, %v1017
    %v1019 = vrot.slane %v1018, 1
    %v1020 = vadd.f32 %v1018, %v1019
    %v1021 = vmul.f32 %v1020, %v900
    %v1022 = vadd.f32 %v1021, 1e-05
    %v1023 = vrsqrt.pop %v1022
    %v1024 = vmul.f32 %v1023, %v1022
    %v1025 = vmul.f32 %v1024, %v1023
    %v1026 = vmul.f32 0.5, %v1025
    %v1027 = vsub.f32 1.5, %v1026
    %v1028 = vmul.f32 %v1023, %v1027
    %vm1029 = vweird.f32 %v1022
    %vm1030 = vweird.f32 %v1023
    %vm1031 = vmor %vm1029, %vm1030
    %v1032 = vsel %vm1031, %v1023, %v1028
    %v1033 = vmul.f32 %v1013, %v1032
    %v1034 = vperm.slane %v804, 0
    %v1035 = vmul.f32 %v1033, %v1034
    %v1036 = vperm.slane %v805, 0
    %v1037 = vadd.f32 %v1035, %v1036
    %v1038 = vmax.f32 %v1037, 0.0
    %v1039 = vpack.c.bf16 %v1038, %v1038
    %v1040 = vld [vmem:[%s5] sm:$0xf]
    %v1041 = vld [vmem:[%s5 + $0x4] sm:$0xf]
    %v1042 = vld [vmem:[%s5 + $0x8] sm:$0xf]
    %v1043 = vld [vmem:[%s5 + $0xc] sm:$0xf]
    %v1044 = vld [vmem:[%s5 + $0x10] sm:$0xf]
    %v1045 = vld [vmem:[%s5 + $0x14] sm:$0xf]
    %v1046 = vld [vmem:[%s5 + $0x18] sm:$0xf]
    %v1047 = vld [vmem:[%s5 + $0x1c] sm:$0xf]
    %v1048 = vld [vmem:[%s5 + $0x20] sm:$0xf]
    %v1049 = vld [vmem:[%s5 + $0x24] sm:$0xf]
    %v1050 = vld [vmem:[%s5 + $0x28] sm:$0xf]
    %v1051 = vld [vmem:[%s5 + $0x2c] sm:$0xf]
    %v1052 = vld [vmem:[%s5 + $0x30] sm:$0xf]
    %v1053 = vld [vmem:[%s5 + $0x34] sm:$0xf]
    %v1054 = vld [vmem:[%s5 + $0x38] sm:$0xf]
    %v1055 = vld [vmem:[%s5 + $0x3c] sm:$0xf]
    %v1072 = vunpack.c.l.b16 %v1040
    %v1073 = vunpack.c.l.b16 %v1041
    %v1074 = vunpack.c.l.b16 %v1042
    %v1075 = vunpack.c.l.b16 %v1043
    %v1076 = vunpack.c.l.b16 %v1044
    %v1077 = vunpack.c.l.b16 %v1045
    %v1078 = vunpack.c.l.b16 %v1046
    %v1079 = vunpack.c.l.b16 %v1047
    %v1080 = vunpack.c.l.b16 %v1048
    %v1081 = vunpack.c.l.b16 %v1049
    %v1082 = vunpack.c.l.b16 %v1050
    %v1083 = vunpack.c.l.b16 %v1051
    %v1084 = vunpack.c.l.b16 %v1052
    %v1085 = vunpack.c.l.b16 %v1053
    %v1086 = vunpack.c.l.b16 %v1054
    %v1087 = vunpack.c.l.b16 %v1055
    %v1088 = vpack.c.b16 %v1073, %v1072
    %v1089 = vpack.c.b16 %v1075, %v1074
    %v1090 = vpack.c.b16 %v1077, %v1076
    %v1091 = vpack.c.b16 %v1079, %v1078
    %v1092 = vpack.c.b16 %v1081, %v1080
    %v1093 = vpack.c.b16 %v1083, %v1082
    %v1094 = vpack.c.b16 %v1085, %v1084
    %v1095 = vpack.c.b16 %v1087, %v1086
    %1104 = vmatpush.bf16.msra.mxu0 %v1095
    %1105 = vmatpush.bf16.msra.mxu0 %v1094
    %1106 = vmatpush.bf16.msra.mxu0 %v1093
    %1107 = vmatpush.bf16.msra.mxu0 %v1092
    %1108 = vmatpush.bf16.msra.mxu0 %v1091
    %1109 = vmatpush.bf16.msra.mxu0 %v1090
    %1110 = vmatpush.bf16.msra.mxu0 %v1089
    %1111 = vmatpush.bf16.msra.mxu0 %v1088
    %1112 = vmatmul.bf16.gmra.mxu0 %v1039
    %v1113 = vpop.f32.mrf.mxu0
    %v1114 = vadd.f32 0.0, %v1113
    %v1115 = vpop.f32.mrf.mxu0
    %1116 = vdwg.mxu0
    %v1117 = vrot.slane %v1114, 4
    %v1118 = vadd.f32 %v1114, %v1117
    %v1119 = vrot.slane %v1118, 2
    %v1120 = vadd.f32 %v1118, %v1119
    %v1121 = vrot.slane %v1120, 1
    %v1122 = vadd.f32 %v1120, %v1121
    %v1123 = vmul.f32 %v1122, %v900
    %v1124 = vsub.f32 %v1114, %v1123
    %v1125 = vmul.f32 %v1124, %v1124
    %v1126 = vrot.slane %v1125, 4
    %v1127 = vadd.f32 %v1125, %v1126
    %v1128 = vrot.slane %v1127, 2
    %v1129 = vadd.f32 %v1127, %v1128
    %v1130 = vrot.slane %v1129, 1
    %v1131 = vadd.f32 %v1129, %v1130
    %v1132 = vmul.f32 %v1131, %v900
    %v1133 = vadd.f32 %v1132, 1e-05
    %v1134 = vrsqrt.pop %v1133
    %v1135 = vmul.f32 %v1134, %v1133
    %v1136 = vmul.f32 %v1135, %v1134
    %v1137 = vmul.f32 0.5, %v1136
    %v1138 = vsub.f32 1.5, %v1137
    %v1139 = vmul.f32 %v1134, %v1138
    %vm1140 = vweird.f32 %v1133
    %vm1141 = vweird.f32 %v1134
    %vm1142 = vmor %vm1140, %vm1141
    %v1143 = vsel %vm1142, %v1134, %v1139
    %v1144 = vmul.f32 %v1124, %v1143
    %1145 = vst [vmem:[%s9] sm:$0xff] %v1144
    %v1146 = vpack.c.bf16 %v1144, %v1144
    %v1147 = vld [vmem:[%s6] sm:$0xf]
    %v1148 = vld [vmem:[%s6 + $0x4] sm:$0xf]
    %v1149 = vld [vmem:[%s6 + $0x8] sm:$0xf]
    %v1150 = vld [vmem:[%s6 + $0xc] sm:$0xf]
    %v1151 = vld [vmem:[%s6 + $0x10] sm:$0xf]
    %v1152 = vld [vmem:[%s6 + $0x14] sm:$0xf]
    %v1153 = vld [vmem:[%s6 + $0x18] sm:$0xf]
    %v1154 = vld [vmem:[%s6 + $0x1c] sm:$0xf]
    %v1155 = vld [vmem:[%s6 + $0x20] sm:$0xf]
    %v1156 = vld [vmem:[%s6 + $0x24] sm:$0xf]
    %v1157 = vld [vmem:[%s6 + $0x28] sm:$0xf]
    %v1158 = vld [vmem:[%s6 + $0x2c] sm:$0xf]
    %v1159 = vld [vmem:[%s6 + $0x30] sm:$0xf]
    %v1160 = vld [vmem:[%s6 + $0x34] sm:$0xf]
    %v1161 = vld [vmem:[%s6 + $0x38] sm:$0xf]
    %v1162 = vld [vmem:[%s6 + $0x3c] sm:$0xf]
    %v1179 = vunpack.c.l.b16 %v1147
    %v1180 = vunpack.c.l.b16 %v1148
    %v1181 = vunpack.c.l.b16 %v1149
    %v1182 = vunpack.c.l.b16 %v1150
    %v1183 = vunpack.c.l.b16 %v1151
    %v1184 = vunpack.c.l.b16 %v1152
    %v1185 = vunpack.c.l.b16 %v1153
    %v1186 = vunpack.c.l.b16 %v1154
    %v1187 = vunpack.c.l.b16 %v1155
    %v1188 = vunpack.c.l.b16 %v1156
    %v1189 = vunpack.c.l.b16 %v1157
    %v1190 = vunpack.c.l.b16 %v1158
    %v1191 = vunpack.c.l.b16 %v1159
    %v1192 = vunpack.c.l.b16 %v1160
    %v1193 = vunpack.c.l.b16 %v1161
    %v1194 = vunpack.c.l.b16 %v1162
    %v1195 = vpack.c.b16 %v1180, %v1179
    %v1196 = vpack.c.b16 %v1182, %v1181
    %v1197 = vpack.c.b16 %v1184, %v1183
    %v1198 = vpack.c.b16 %v1186, %v1185
    %v1199 = vpack.c.b16 %v1188, %v1187
    %v1200 = vpack.c.b16 %v1190, %v1189
    %v1201 = vpack.c.b16 %v1192, %v1191
    %v1202 = vpack.c.b16 %v1194, %v1193
    %1211 = vmatpush.bf16.msra.mxu0 %v1202
    %1212 = vmatpush.bf16.msra.mxu0 %v1201
    %1213 = vmatpush.bf16.msra.mxu0 %v1200
    %1214 = vmatpush.bf16.msra.mxu0 %v1199
    %1215 = vmatpush.bf16.msra.mxu0 %v1198
    %1216 = vmatpush.bf16.msra.mxu0 %v1197
    %1217 = vmatpush.bf16.msra.mxu0 %v1196
    %1218 = vmatpush.bf16.msra.mxu0 %v1195
    %1219 = vmatmul.bf16.gmra.mxu0 %v1146
    %v1220 = vpop.f32.mrf.mxu0
    %v1221 = vadd.f32 0.0, %v1220
    %v1222 = vpop.f32.mrf.mxu0
    %1223 = vdwg.mxu0
    %v1224 = vrot.slane %v1221, 4
    %v1225 = vadd.f32 %v1221, %v1224
    %v1226 = vrot.slane %v1225, 2
    %v1227 = vadd.f32 %v1225, %v1226
    %v1228 = vrot.slane %v1227, 1
    %v1229 = vadd.f32 %v1227, %v1228
    %v1230 = vmul.f32 %v1229, %v900
    %v1231 = vsub.f32 %v1221, %v1230
    %v1232 = vmul.f32 %v1231, %v1231
    %v1233 = vrot.slane %v1232, 4
    %v1234 = vadd.f32 %v1232, %v1233
    %v1235 = vrot.slane %v1234, 2
    %v1236 = vadd.f32 %v1234, %v1235
    %v1237 = vrot.slane %v1236, 1
    %v1238 = vadd.f32 %v1236, %v1237
    %v1239 = vmul.f32 %v1238, %v900
    %v1240 = vadd.f32 %v1239, 1e-05
    %v1241 = vrsqrt.pop %v1240
    %v1242 = vmul.f32 %v1241, %v1240
    %v1243 = vmul.f32 %v1242, %v1241
    %v1244 = vmul.f32 0.5, %v1243
    %v1245 = vsub.f32 1.5, %v1244
    %v1246 = vmul.f32 %v1241, %v1245
    %vm1247 = vweird.f32 %v1240
    %vm1248 = vweird.f32 %v1241
    %vm1249 = vmor %vm1247, %vm1248
    %v1250 = vsel %vm1249, %v1241, %v1246
    %v1251 = vmul.f32 %v1231, %v1250
    %v1252 = vperm.slane %v806, 0
    %v1253 = vmul.f32 %v1251, %v1252
    %v1254 = vperm.slane %v807, 0
    %v1255 = vadd.f32 %v1253, %v1254
    %v1256 = vmax.f32 %v1255, 0.0
    %v1257 = vpack.c.bf16 %v1256, %v1256
    %v1258 = vld [vmem:[%s7] sm:$0xf]
    %v1259 = vld [vmem:[%s7 + $0x4] sm:$0xf]
    %v1260 = vld [vmem:[%s7 + $0x8] sm:$0xf]
    %v1261 = vld [vmem:[%s7 + $0xc] sm:$0xf]
    %v1262 = vld [vmem:[%s7 + $0x10] sm:$0xf]
    %v1263 = vld [vmem:[%s7 + $0x14] sm:$0xf]
    %v1264 = vld [vmem:[%s7 + $0x18] sm:$0xf]
    %v1265 = vld [vmem:[%s7 + $0x1c] sm:$0xf]
    %v1266 = vld [vmem:[%s7 + $0x20] sm:$0xf]
    %v1267 = vld [vmem:[%s7 + $0x24] sm:$0xf]
    %v1268 = vld [vmem:[%s7 + $0x28] sm:$0xf]
    %v1269 = vld [vmem:[%s7 + $0x2c] sm:$0xf]
    %v1270 = vld [vmem:[%s7 + $0x30] sm:$0xf]
    %v1271 = vld [vmem:[%s7 + $0x34] sm:$0xf]
    %v1272 = vld [vmem:[%s7 + $0x38] sm:$0xf]
    %v1273 = vld [vmem:[%s7 + $0x3c] sm:$0xf]
    %v1274 = vperm.slane %v808, 0
    %v1291 = vunpack.c.l.b16 %v1258
    %v1292 = vunpack.c.l.b16 %v1259
    %v1293 = vunpack.c.l.b16 %v1260
    %v1294 = vunpack.c.l.b16 %v1261
    %v1295 = vunpack.c.l.b16 %v1262
    %v1296 = vunpack.c.l.b16 %v1263
    %v1297 = vunpack.c.l.b16 %v1264
    %v1298 = vunpack.c.l.b16 %v1265
    %v1299 = vunpack.c.l.b16 %v1266
    %v1300 = vunpack.c.l.b16 %v1267
    %v1301 = vunpack.c.l.b16 %v1268
    %v1302 = vunpack.c.l.b16 %v1269
    %v1303 = vunpack.c.l.b16 %v1270
    %v1304 = vunpack.c.l.b16 %v1271
    %v1305 = vunpack.c.l.b16 %v1272
    %v1306 = vunpack.c.l.b16 %v1273
    %v1307 = vpack.c.b16 %v1292, %v1291
    %v1308 = vpack.c.b16 %v1294, %v1293
    %v1309 = vpack.c.b16 %v1296, %v1295
    %v1310 = vpack.c.b16 %v1298, %v1297
    %v1311 = vpack.c.b16 %v1300, %v1299
    %v1312 = vpack.c.b16 %v1302, %v1301
    %v1313 = vpack.c.b16 %v1304, %v1303
    %v1314 = vpack.c.b16 %v1306, %v1305
    %1323 = vmatpush.bf16.msra.mxu0 %v1314
    %1324 = vmatpush.bf16.msra.mxu0 %v1313
    %1325 = vmatpush.bf16.msra.mxu0 %v1312
    %1326 = vmatpush.bf16.msra.mxu0 %v1311
    %1327 = vmatpush.bf16.msra.mxu0 %v1310
    %1328 = vmatpush.bf16.msra.mxu0 %v1309
    %1329 = vmatpush.bf16.msra.mxu0 %v1308
    %1330 = vmatpush.bf16.msra.mxu0 %v1307
    %1331 = vmatmul.bf16.gmra.mxu0 %v1257
    %v1332 = vpop.f32.mrf.mxu0
    %v1333 = vadd.f32 %v1274, %v1332
    %v1334 = vpop.f32.mrf.mxu0
    %1335 = vdwg.mxu0
    %1336 = vst [vmem:[%s10] sm:$0xff] %v1333
    %v1337 = vld [vmem:[%s675] sm:$0xff]
    %v1338 = vpack.c.bf16 %v1337, %v1337
    %v1339 = vld [vmem:[%s3] sm:$0xf]
    %v1340 = vld [vmem:[%s3 + $0x4] sm:$0xf]
    %v1341 = vld [vmem:[%s3 + $0x8] sm:$0xf]
    %v1342 = vld [vmem:[%s3 + $0xc] sm:$0xf]
    %v1343 = vld [vmem:[%s3 + $0x10] sm:$0xf]
    %v1344 = vld [vmem:[%s3 + $0x14] sm:$0xf]
    %v1345 = vld [vmem:[%s3 + $0x18] sm:$0xf]
    %v1346 = vld [vmem:[%s3 + $0x1c] sm:$0xf]
    %v1347 = vld [vmem:[%s3 + $0x20] sm:$0xf]
    %v1348 = vld [vmem:[%s3 + $0x24] sm:$0xf]
    %v1349 = vld [vmem:[%s3 + $0x28] sm:$0xf]
    %v1350 = vld [vmem:[%s3 + $0x2c] sm:$0xf]
    %v1351 = vld [vmem:[%s3 + $0x30] sm:$0xf]
    %v1352 = vld [vmem:[%s3 + $0x34] sm:$0xf]
    %v1353 = vld [vmem:[%s3 + $0x38] sm:$0xf]
    %v1354 = vld [vmem:[%s3 + $0x3c] sm:$0xf]
    %v1371 = vunpack.c.l.b16 %v1339
    %v1372 = vunpack.c.l.b16 %v1340
    %v1373 = vunpack.c.l.b16 %v1341
    %v1374 = vunpack.c.l.b16 %v1342
    %v1375 = vunpack.c.l.b16 %v1343
    %v1376 = vunpack.c.l.b16 %v1344
    %v1377 = vunpack.c.l.b16 %v1345
    %v1378 = vunpack.c.l.b16 %v1346
    %v1379 = vunpack.c.l.b16 %v1347
    %v1380 = vunpack.c.l.b16 %v1348
    %v1381 = vunpack.c.l.b16 %v1349
    %v1382 = vunpack.c.l.b16 %v1350
    %v1383 = vunpack.c.l.b16 %v1351
    %v1384 = vunpack.c.l.b16 %v1352
    %v1385 = vunpack.c.l.b16 %v1353
    %v1386 = vunpack.c.l.b16 %v1354
    %v1387 = vpack.c.b16 %v1372, %v1371
    %v1388 = vpack.c.b16 %v1374, %v1373
    %v1389 = vpack.c.b16 %v1376, %v1375
    %v1390 = vpack.c.b16 %v1378, %v1377
    %v1391 = vpack.c.b16 %v1380, %v1379
    %v1392 = vpack.c.b16 %v1382, %v1381
    %v1393 = vpack.c.b16 %v1384, %v1383
    %v1394 = vpack.c.b16 %v1386, %v1385
    %1403 = vmatpush.bf16.msra.mxu0 %v1394
    %1404 = vmatpush.bf16.msra.mxu0 %v1393
    %1405 = vmatpush.bf16.msra.mxu0 %v1392
    %1406 = vmatpush.bf16.msra.mxu0 %v1391
    %1407 = vmatpush.bf16.msra.mxu0 %v1390
    %1408 = vmatpush.bf16.msra.mxu0 %v1389
    %1409 = vmatpush.bf16.msra.mxu0 %v1388
    %1410 = vmatpush.bf16.msra.mxu0 %v1387
    %1411 = vmatmul.bf16.gmra.mxu0 %v1338
    %v1412 = vpop.f32.mrf.mxu0
    %v1413 = vadd.f32 0.0, %v1412
    %v1414 = vpop.f32.mrf.mxu0
    %1415 = vdwg.mxu0
    %v1416 = vrot.slane %v1413, 4
    %v1417 = vadd.f32 %v1413, %v1416
    %v1418 = vrot.slane %v1417, 2
    %v1419 = vadd.f32 %v1417, %v1418
    %v1420 = vrot.slane %v1419, 1
    %v1421 = vadd.f32 %v1419, %v1420
    %v1422 = vmul.f32 %v1421, %v900
    %v1423 = vsub.f32 %v1413, %v1422
    %v1424 = vmul.f32 %v1423, %v1423
    %v1425 = vrot.slane %v1424, 4
    %v1426 = vadd.f32 %v1424, %v1425
    %v1427 = vrot.slane %v1426, 2
    %v1428 = vadd.f32 %v1426, %v1427
    %v1429 = vrot.slane %v1428, 1
    %v1430 = vadd.f32 %v1428, %v1429
    %v1431 = vmul.f32 %v1430, %v900
    %v1432 = vadd.f32 %v1431, 1e-05
    %v1433 = vrsqrt.pop %v1432
    %v1434 = vmul.f32 %v1433, %v1432
    %v1435 = vmul.f32 %v1434, %v1433
    %v1436 = vmul.f32 0.5, %v1435
    %v1437 = vsub.f32 1.5, %v1436
    %v1438 = vmul.f32 %v1433, %v1437
    %vm1439 = vweird.f32 %v1432
    %vm1440 = vweird.f32 %v1433
    %vm1441 = vmor %vm1439, %vm1440
    %v1442 = vsel %vm1441, %v1433, %v1438
    %v1443 = vmul.f32 %v1423, %v1442
    %v1444 = vmul.f32 %v1443, %v923
    %v1445 = vadd.f32 %v1444, %v925
    %v1446 = vmax.f32 %v1445, 0.0
    %v1447 = vpack.c.bf16 %v1446, %v1446
    %v1448 = vld [vmem:[%s4] sm:$0xf]
    %v1449 = vld [vmem:[%s4 + $0x4] sm:$0xf]
    %v1450 = vld [vmem:[%s4 + $0x8] sm:$0xf]
    %v1451 = vld [vmem:[%s4 + $0xc] sm:$0xf]
    %v1452 = vld [vmem:[%s4 + $0x10] sm:$0xf]
    %v1453 = vld [vmem:[%s4 + $0x14] sm:$0xf]
    %v1454 = vld [vmem:[%s4 + $0x18] sm:$0xf]
    %v1455 = vld [vmem:[%s4 + $0x1c] sm:$0xf]
    %v1456 = vld [vmem:[%s4 + $0x20] sm:$0xf]
    %v1457 = vld [vmem:[%s4 + $0x24] sm:$0xf]
    %v1458 = vld [vmem:[%s4 + $0x28] sm:$0xf]
    %v1459 = vld [vmem:[%s4 + $0x2c] sm:$0xf]
    %v1460 = vld [vmem:[%s4 + $0x30] sm:$0xf]
    %v1461 = vld [vmem:[%s4 + $0x34] sm:$0xf]
    %v1462 = vld [vmem:[%s4 + $0x38] sm:$0xf]
    %v1463 = vld [vmem:[%s4 + $0x3c] sm:$0xf]
    %v1480 = vunpack.c.l.b16 %v1448
    %v1481 = vunpack.c.l.b16 %v1449
    %v1482 = vunpack.c.l.b16 %v1450
    %v1483 = vunpack.c.l.b16 %v1451
    %v1484 = vunpack.c.l.b16 %v1452
    %v1485 = vunpack.c.l.b16 %v1453
    %v1486 = vunpack.c.l.b16 %v1454
    %v1487 = vunpack.c.l.b16 %v1455
    %v1488 = vunpack.c.l.b16 %v1456
    %v1489 = vunpack.c.l.b16 %v1457
    %v1490 = vunpack.c.l.b16 %v1458
    %v1491 = vunpack.c.l.b16 %v1459
    %v1492 = vunpack.c.l.b16 %v1460
    %v1493 = vunpack.c.l.b16 %v1461
    %v1494 = vunpack.c.l.b16 %v1462
    %v1495 = vunpack.c.l.b16 %v1463
    %v1496 = vpack.c.b16 %v1481, %v1480
    %v1497 = vpack.c.b16 %v1483, %v1482
    %v1498 = vpack.c.b16 %v1485, %v1484
    %v1499 = vpack.c.b16 %v1487, %v1486
    %v1500 = vpack.c.b16 %v1489, %v1488
    %v1501 = vpack.c.b16 %v1491, %v1490
    %v1502 = vpack.c.b16 %v1493, %v1492
    %v1503 = vpack.c.b16 %v1495, %v1494
    %1512 = vmatpush.bf16.msra.mxu0 %v1503
    %1513 = vmatpush.bf16.msra.mxu0 %v1502
    %1514 = vmatpush.bf16.msra.mxu0 %v1501
    %1515 = vmatpush.bf16.msra.mxu0 %v1500
    %1516 = vmatpush.bf16.msra.mxu0 %v1499
    %1517 = vmatpush.bf16.msra.mxu0 %v1498
    %1518 = vmatpush.bf16.msra.mxu0 %v1497
    %1519 = vmatpush.bf16.msra.mxu0 %v1496
    %1520 = vmatmul.bf16.gmra.mxu0 %v1447
    %v1521 = vpop.f32.mrf.mxu0
    %v1522 = vadd.f32 0.0, %v1521
    %v1523 = vpop.f32.mrf.mxu0
    %1524 = vdwg.mxu0
    %v1525 = vrot.slane %v1522, 4
    %v1526 = vadd.f32 %v1522, %v1525
    %v1527 = vrot.slane %v1526, 2
    %v1528 = vadd.f32 %v1526, %v1527
    %v1529 = vrot.slane %v1528, 1
    %v1530 = vadd.f32 %v1528, %v1529
    %v1531 = vmul.f32 %v1530, %v900
    %v1532 = vsub.f32 %v1522, %v1531
    %v1533 = vmul.f32 %v1532, %v1532
    %v1534 = vrot.slane %v1533, 4
    %v1535 = vadd.f32 %v1533, %v1534
    %v1536 = vrot.slane %v1535, 2
    %v1537 = vadd.f32 %v1535, %v1536
    %v1538 = vrot.slane %v1537, 1
    %v1539 = vadd.f32 %v1537, %v1538
    %v1540 = vmul.f32 %v1539, %v900
    %v1541 = vadd.f32 %v1540, 1e-05
    %v1542 = vrsqrt.pop %v1541
    %v1543 = vmul.f32 %v1542, %v1541
    %v1544 = vmul.f32 %v1543, %v1542
    %v1545 = vmul.f32 0.5, %v1544
    %v1546 = vsub.f32 1.5, %v1545
    %v1547 = vmul.f32 %v1542, %v1546
    %vm1548 = vweird.f32 %v1541
    %vm1549 = vweird.f32 %v1542
    %vm1550 = vmor %vm1548, %vm1549
    %v1551 = vsel %vm1550, %v1542, %v1547
    %v1552 = vmul.f32 %v1532, %v1551
    %v1553 = vmul.f32 %v1552, %v1034
    %v1554 = vadd.f32 %v1553, %v1036
    %v1555 = vmax.f32 %v1554, 0.0
    %v1556 = vpack.c.bf16 %v1555, %v1555
    %v1557 = vld [vmem:[%s5] sm:$0xf]
    %v1558 = vld [vmem:[%s5 + $0x4] sm:$0xf]
    %v1559 = vld [vmem:[%s5 + $0x8] sm:$0xf]
    %v1560 = vld [vmem:[%s5 + $0xc] sm:$0xf]
    %v1561 = vld [vmem:[%s5 + $0x10] sm:$0xf]
    %v1562 = vld [vmem:[%s5 + $0x14] sm:$0xf]
    %v1563 = vld [vmem:[%s5 + $0x18] sm:$0xf]
    %v1564 = vld [vmem:[%s5 + $0x1c] sm:$0xf]
    %v1565 = vld [vmem:[%s5 + $0x20] sm:$0xf]
    %v1566 = vld [vmem:[%s5 + $0x24] sm:$0xf]
    %v1567 = vld [vmem:[%s5 + $0x28] sm:$0xf]
    %v1568 = vld [vmem:[%s5 + $0x2c] sm:$0xf]
    %v1569 = vld [vmem:[%s5 + $0x30] sm:$0xf]
    %v1570 = vld [vmem:[%s5 + $0x34] sm:$0xf]
    %v1571 = vld [vmem:[%s5 + $0x38] sm:$0xf]
    %v1572 = vld [vmem:[%s5 + $0x3c] sm:$0xf]
    %v1589 = vunpack.c.l.b16 %v1557
    %v1590 = vunpack.c.l.b16 %v1558
    %v1591 = vunpack.c.l.b16 %v1559
    %v1592 = vunpack.c.l.b16 %v1560
    %v1593 = vunpack.c.l.b16 %v1561
    %v1594 = vunpack.c.l.b16 %v1562
    %v1595 = vunpack.c.l.b16 %v1563
    %v1596 = vunpack.c.l.b16 %v1564
    %v1597 = vunpack.c.l.b16 %v1565
    %v1598 = vunpack.c.l.b16 %v1566
    %v1599 = vunpack.c.l.b16 %v1567
    %v1600 = vunpack.c.l.b16 %v1568
    %v1601 = vunpack.c.l.b16 %v1569
    %v1602 = vunpack.c.l.b16 %v1570
    %v1603 = vunpack.c.l.b16 %v1571
    %v1604 = vunpack.c.l.b16 %v1572
    %v1605 = vpack.c.b16 %v1590, %v1589
    %v1606 = vpack.c.b16 %v1592, %v1591
    %v1607 = vpack.c.b16 %v1594, %v1593
    %v1608 = vpack.c.b16 %v1596, %v1595
    %v1609 = vpack.c.b16 %v1598, %v1597
    %v1610 = vpack.c.b16 %v1600, %v1599
    %v1611 = vpack.c.b16 %v1602, %v1601
    %v1612 = vpack.c.b16 %v1604, %v1603
    %1621 = vmatpush.bf16.msra.mxu0 %v1612
    %1622 = vmatpush.bf16.msra.mxu0 %v1611
    %1623 = vmatpush.bf16.msra.mxu0 %v1610
    %1624 = vmatpush.bf16.msra.mxu0 %v1609
    %1625 = vmatpush.bf16.msra.mxu0 %v1608
    %1626 = vmatpush.bf16.msra.mxu0 %v1607
    %1627 = vmatpush.bf16.msra.mxu0 %v1606
    %1628 = vmatpush.bf16.msra.mxu0 %v1605
    %1629 = vmatmul.bf16.gmra.mxu0 %v1556
    %v1630 = vpop.f32.mrf.mxu0
    %v1631 = vadd.f32 0.0, %v1630
    %v1632 = vpop.f32.mrf.mxu0
    %1633 = vdwg.mxu0
    %v1634 = vrot.slane %v1631, 4
    %v1635 = vadd.f32 %v1631, %v1634
    %v1636 = vrot.slane %v1635, 2
    %v1637 = vadd.f32 %v1635, %v1636
    %v1638 = vrot.slane %v1637, 1
    %v1639 = vadd.f32 %v1637, %v1638
    %v1640 = vmul.f32 %v1639, %v900
    %v1641 = vsub.f32 %v1631, %v1640
    %v1642 = vmul.f32 %v1641, %v1641
    %v1643 = vrot.slane %v1642, 4
    %v1644 = vadd.f32 %v1642, %v1643
    %v1645 = vrot.slane %v1644, 2
    %v1646 = vadd.f32 %v1644, %v1645
    %v1647 = vrot.slane %v1646, 1
    %v1648 = vadd.f32 %v1646, %v1647
    %v1649 = vmul.f32 %v1648, %v900
    %v1650 = vadd.f32 %v1649, 1e-05
    %v1651 = vrsqrt.pop %v1650
    %v1652 = vmul.f32 %v1651, %v1650
    %v1653 = vmul.f32 %v1652, %v1651
    %v1654 = vmul.f32 0.5, %v1653
    %v1655 = vsub.f32 1.5, %v1654
    %v1656 = vmul.f32 %v1651, %v1655
    %vm1657 = vweird.f32 %v1650
    %vm1658 = vweird.f32 %v1651
    %vm1659 = vmor %vm1657, %vm1658
    %v1660 = vsel %vm1659, %v1651, %v1656
    %v1661 = vmul.f32 %v1641, %v1660
    %1662 = vst [vmem:[%s9 + $0x8] sm:$0xff] %v1661
    %v1663 = vpack.c.bf16 %v1661, %v1661
    %v1664 = vld [vmem:[%s6] sm:$0xf]
    %v1665 = vld [vmem:[%s6 + $0x4] sm:$0xf]
    %v1666 = vld [vmem:[%s6 + $0x8] sm:$0xf]
    %v1667 = vld [vmem:[%s6 + $0xc] sm:$0xf]
    %v1668 = vld [vmem:[%s6 + $0x10] sm:$0xf]
    %v1669 = vld [vmem:[%s6 + $0x14] sm:$0xf]
    %v1670 = vld [vmem:[%s6 + $0x18] sm:$0xf]
    %v1671 = vld [vmem:[%s6 + $0x1c] sm:$0xf]
    %v1672 = vld [vmem:[%s6 + $0x20] sm:$0xf]
    %v1673 = vld [vmem:[%s6 + $0x24] sm:$0xf]
    %v1674 = vld [vmem:[%s6 + $0x28] sm:$0xf]
    %v1675 = vld [vmem:[%s6 + $0x2c] sm:$0xf]
    %v1676 = vld [vmem:[%s6 + $0x30] sm:$0xf]
    %v1677 = vld [vmem:[%s6 + $0x34] sm:$0xf]
    %v1678 = vld [vmem:[%s6 + $0x38] sm:$0xf]
    %v1679 = vld [vmem:[%s6 + $0x3c] sm:$0xf]
    %v1696 = vunpack.c.l.b16 %v1664
    %v1697 = vunpack.c.l.b16 %v1665
    %v1698 = vunpack.c.l.b16 %v1666
    %v1699 = vunpack.c.l.b16 %v1667
    %v1700 = vunpack.c.l.b16 %v1668
    %v1701 = vunpack.c.l.b16 %v1669
    %v1702 = vunpack.c.l.b16 %v1670
    %v1703 = vunpack.c.l.b16 %v1671
    %v1704 = vunpack.c.l.b16 %v1672
    %v1705 = vunpack.c.l.b16 %v1673
    %v1706 = vunpack.c.l.b16 %v1674
    %v1707 = vunpack.c.l.b16 %v1675
    %v1708 = vunpack.c.l.b16 %v1676
    %v1709 = vunpack.c.l.b16 %v1677
    %v1710 = vunpack.c.l.b16 %v1678
    %v1711 = vunpack.c.l.b16 %v1679
    %v1712 = vpack.c.b16 %v1697, %v1696
    %v1713 = vpack.c.b16 %v1699, %v1698
    %v1714 = vpack.c.b16 %v1701, %v1700
    %v1715 = vpack.c.b16 %v1703, %v1702
    %v1716 = vpack.c.b16 %v1705, %v1704
    %v1717 = vpack.c.b16 %v1707, %v1706
    %v1718 = vpack.c.b16 %v1709, %v1708
    %v1719 = vpack.c.b16 %v1711, %v1710
    %1728 = vmatpush.bf16.msra.mxu0 %v1719
    %1729 = vmatpush.bf16.msra.mxu0 %v1718
    %1730 = vmatpush.bf16.msra.mxu0 %v1717
    %1731 = vmatpush.bf16.msra.mxu0 %v1716
    %1732 = vmatpush.bf16.msra.mxu0 %v1715
    %1733 = vmatpush.bf16.msra.mxu0 %v1714
    %1734 = vmatpush.bf16.msra.mxu0 %v1713
    %1735 = vmatpush.bf16.msra.mxu0 %v1712
    %1736 = vmatmul.bf16.gmra.mxu0 %v1663
    %v1737 = vpop.f32.mrf.mxu0
    %v1738 = vadd.f32 0.0, %v1737
    %v1739 = vpop.f32.mrf.mxu0
    %1740 = vdwg.mxu0
    %v1741 = vrot.slane %v1738, 4
    %v1742 = vadd.f32 %v1738, %v1741
    %v1743 = vrot.slane %v1742, 2
    %v1744 = vadd.f32 %v1742, %v1743
    %v1745 = vrot.slane %v1744, 1
    %v1746 = vadd.f32 %v1744, %v1745
    %v1747 = vmul.f32 %v1746, %v900
    %v1748 = vsub.f32 %v1738, %v1747
    %v1749 = vmul.f32 %v1748, %v1748
    %v1750 = vrot.slane %v1749, 4
    %v1751 = vadd.f32 %v1749, %v1750
    %v1752 = vrot.slane %v1751, 2
    %v1753 = vadd.f32 %v1751, %v1752
    %v1754 = vrot.slane %v1753, 1
    %v1755 = vadd.f32 %v1753, %v1754
    %v1756 = vmul.f32 %v1755, %v900
    %v1757 = vadd.f32 %v1756, 1e-05
    %v1758 = vrsqrt.pop %v1757
    %v1759 = vmul.f32 %v1758, %v1757
    %v1760 = vmul.f32 %v1759, %v1758
    %v1761 = vmul.f32 0.5, %v1760
    %v1762 = vsub.f32 1.5, %v1761
    %v1763 = vmul.f32 %v1758, %v1762
    %vm1764 = vweird.f32 %v1757
    %vm1765 = vweird.f32 %v1758
    %vm1766 = vmor %vm1764, %vm1765
    %v1767 = vsel %vm1766, %v1758, %v1763
    %v1768 = vmul.f32 %v1748, %v1767
    %v1769 = vmul.f32 %v1768, %v1252
    %v1770 = vadd.f32 %v1769, %v1254
    %v1771 = vmax.f32 %v1770, 0.0
    %v1772 = vpack.c.bf16 %v1771, %v1771
    %v1773 = vld [vmem:[%s7] sm:$0xf]
    %v1774 = vld [vmem:[%s7 + $0x4] sm:$0xf]
    %v1775 = vld [vmem:[%s7 + $0x8] sm:$0xf]
    %v1776 = vld [vmem:[%s7 + $0xc] sm:$0xf]
    %v1777 = vld [vmem:[%s7 + $0x10] sm:$0xf]
    %v1778 = vld [vmem:[%s7 + $0x14] sm:$0xf]
    %v1779 = vld [vmem:[%s7 + $0x18] sm:$0xf]
    %v1780 = vld [vmem:[%s7 + $0x1c] sm:$0xf]
    %v1781 = vld [vmem:[%s7 + $0x20] sm:$0xf]
    %v1782 = vld [vmem:[%s7 + $0x24] sm:$0xf]
    %v1783 = vld [vmem:[%s7 + $0x28] sm:$0xf]
    %v1784 = vld [vmem:[%s7 + $0x2c] sm:$0xf]
    %v1785 = vld [vmem:[%s7 + $0x30] sm:$0xf]
    %v1786 = vld [vmem:[%s7 + $0x34] sm:$0xf]
    %v1787 = vld [vmem:[%s7 + $0x38] sm:$0xf]
    %v1788 = vld [vmem:[%s7 + $0x3c] sm:$0xf]
    %v1805 = vunpack.c.l.b16 %v1773
    %v1806 = vunpack.c.l.b16 %v1774
    %v1807 = vunpack.c.l.b16 %v1775
    %v1808 = vunpack.c.l.b16 %v1776
    %v1809 = vunpack.c.l.b16 %v1777
    %v1810 = vunpack.c.l.b16 %v1778
    %v1811 = vunpack.c.l.b16 %v1779
    %v1812 = vunpack.c.l.b16 %v1780
    %v1813 = vunpack.c.l.b16 %v1781
    %v1814 = vunpack.c.l.b16 %v1782
    %v1815 = vunpack.c.l.b16 %v1783
    %v1816 = vunpack.c.l.b16 %v1784
    %v1817 = vunpack.c.l.b16 %v1785
    %v1818 = vunpack.c.l.b16 %v1786
    %v1819 = vunpack.c.l.b16 %v1787
    %v1820 = vunpack.c.l.b16 %v1788
    %v1821 = vpack.c.b16 %v1806, %v1805
    %v1822 = vpack.c.b16 %v1808, %v1807
    %v1823 = vpack.c.b16 %v1810, %v1809
    %v1824 = vpack.c.b16 %v1812, %v1811
    %v1825 = vpack.c.b16 %v1814, %v1813
    %v1826 = vpack.c.b16 %v1816, %v1815
    %v1827 = vpack.c.b16 %v1818, %v1817
    %v1828 = vpack.c.b16 %v1820, %v1819
    %1837 = vmatpush.bf16.msra.mxu0 %v1828
    %1838 = vmatpush.bf16.msra.mxu0 %v1827
    %1839 = vmatpush.bf16.msra.mxu0 %v1826
    %1840 = vmatpush.bf16.msra.mxu0 %v1825
    %1841 = vmatpush.bf16.msra.mxu0 %v1824
    %1842 = vmatpush.bf16.msra.mxu0 %v1823
    %1843 = vmatpush.bf16.msra.mxu0 %v1822
    %1844 = vmatpush.bf16.msra.mxu0 %v1821
    %1845 = vmatmul.bf16.gmra.mxu0 %v1772
    %v1846 = vpop.f32.mrf.mxu0
    %v1847 = vadd.f32 %v1274, %v1846
    %v1848 = vpop.f32.mrf.mxu0
    %1849 = vdwg.mxu0
    %1850 = vst [vmem:[%s10 + $0x8] sm:$0xff] %v1847
  $region45: #{simsiam_forward.1} parent=0 // pred_fallthru
    _
  // Predicated region
  $region46: #{simsiam_forward.1} parent=0 // pred_check
    _
  $region47: #{simsiam_forward.1} parent=0 // pred_check_branch
    %1852 = sbr.rel (0) target = $region49
  $region48: #{simsiam_forward.1} parent=0 // pred_region
    _
  $region49: #{simsiam_forward.1} parent=0 // pred_fallthru
    _
  // Predicated region
  $region50: #{simsiam_forward.1} parent=0 // pred_check
    _
  $region51: #{simsiam_forward.1} parent=0 // pred_check_branch
    %1854 = sbr.rel (0) target = $region53
  $region52: #{simsiam_forward.1} parent=0 // pred_region
    _
  $region53: #{simsiam_forward.1} parent=0 // pred_fallthru
    _
  // Predicated region
  $region54: #{simsiam_forward.1} parent=0 // pred_check
    _
  $region55: #{simsiam_forward.1} parent=0 // pred_check_branch
    %1856 = sbr.rel (0) target = $region57
  $region56: #{simsiam_forward.1} parent=0 // pred_region
    _
  $region57: #{simsiam_forward.1} parent=0 // pred_fallthru
    _
  // Predicated region
  $region58: #{simsiam_forward.1} parent=0 // pred_check
    _
  $region59: #{simsiam_forward.1} parent=0 // pred_check_branch
    %1858 = sbr.rel (0) target = $region61
  $region60: #{simsiam_forward.1} parent=0 // pred_region
    _
  $region61: #{simsiam_forward.1} parent=0 // pred_fallthru
    _

// kernel: simsiam_forward.1
$region0: #{simsiam_forward.1}
  #allocation0 [shape = 'u32[]', space=smem, size = 0x4, offset = 0x4, fixed_abs, tag = 'smem constant byte address 0x4 - core index']
  #allocation1 [shape = 'u32[72,128]{1,0:T(1,128)}', space=vmem, size = 0x9000, scoped, tag = 'internal scratch']
  #allocation2 [shape = 'f32[2,8,128]{2,1,0:T(8,128)}', space=vmem, size = 0x2000, scoped, tag = 'scratch operand']
  %s0 = inlined_call_operand.vmem [shape: f32[8,1024], index: 0, kind: input, shape index: {}]
  %s1 = inlined_call_operand.vmem [shape: f32[8,1024], index: 1, kind: input, shape index: {}]
  %s2 = inlined_call_operand.vmem [shape: bf16[1024,128], index: 2, kind: input, shape index: {}]
  %s3 = inlined_call_operand.vmem [shape: bf16[128,128], index: 3, kind: input, shape index: {}]
  %s4 = inlined_call_operand.vmem [shape: bf16[128,128], index: 4, kind: input, shape index: {}]
  %s5 = inlined_call_operand.vmem [shape: bf16[128,128], index: 5, kind: input, shape index: {}]
  %s6 = inlined_call_operand.vmem [shape: bf16[128,128], index: 6, kind: input, shape index: {}]
  %s7 = inlined_call_operand.vmem [shape: bf16[128,128], index: 7, kind: input, shape index: {}]
  %s8 = inlined_call_operand.vmem [shape: f32[8,128], index: 8, kind: input, shape index: {}]
  %s9 = inlined_call_operand.vmem [shape: f32[16,128], index: 9, kind: output, shape index: {0}]
  %s10 = inlined_call_operand.vmem [shape: f32[16,128], index: 10, kind: output, shape index: {1}]
  %11 = xla_tuple %s9, %s10
  %s12 = sld [smem:[#allocation0]]
  $region62: #{simsiam_forward.1} parent=0
    _
  %s14 = ssub.s32 1, %s12
  %s15 = scalar_select 0, %s14, %s12
  // Predicated region
  $region2: #{simsiam_forward.1} parent=0 // pred_check
    _
  $region3: #{simsiam_forward.1} parent=0 // pred_check_branch
    %17 = sbr.rel (0) target = $region5
  $region4: #{simsiam_forward.1} parent=0 // pred_region
    _
  $region5: #{simsiam_forward.1} parent=0 // pred_fallthru
    _
  // Predicated region
  $region6: #{simsiam_forward.1} parent=0 // pred_check
    _
  $region7: #{simsiam_forward.1} parent=0 // pred_check_branch
    %19 = sbr.rel (0) target = $region9
  $region8: #{simsiam_forward.1} parent=0 // pred_region
    _
  $region9: #{simsiam_forward.1} parent=0 // pred_fallthru
    _
  // Predicated region
  $region10: #{simsiam_forward.1} parent=0 // pred_check
    _
  $region11: #{simsiam_forward.1} parent=0 // pred_check_branch
    %21 = sbr.rel (0) target = $region13
  $region12: #{simsiam_forward.1} parent=0 // pred_region
    _
  $region13: #{simsiam_forward.1} parent=0 // pred_fallthru
    _
  // Predicated region
  $region14: #{simsiam_forward.1} parent=0 // pred_check
    _
  $region15: #{simsiam_forward.1} parent=0 // pred_check_branch
    %23 = sbr.rel (0) target = $region17
  $region16: #{simsiam_forward.1} parent=0 // pred_region
    _
  $region17: #{simsiam_forward.1} parent=0 // pred_fallthru
    _
  // Predicated region
  $region18: #{simsiam_forward.1} parent=0 // pred_check
    _
  $region19: #{simsiam_forward.1} parent=0 // pred_check_branch
    %25 = sbr.rel (0) target = $region21
  $region20: #{simsiam_forward.1} parent=0 // pred_region
    _
  $region21: #{simsiam_forward.1} parent=0 // pred_fallthru
    _
  // Predicated region
  $region22: #{simsiam_forward.1} parent=0 // pred_check
    _
  $region23: #{simsiam_forward.1} parent=0 // pred_check_branch
    %27 = sbr.rel (0) target = $region25
  $region24: #{simsiam_forward.1} parent=0 // pred_region
    _
  $region25: #{simsiam_forward.1} parent=0 // pred_fallthru
    _
  // Predicated region
  $region26: #{simsiam_forward.1} parent=0 // pred_check
    _
  $region27: #{simsiam_forward.1} parent=0 // pred_check_branch
    %29 = sbr.rel (0) target = $region29
  $region28: #{simsiam_forward.1} parent=0 // pred_region
    _
  $region29: #{simsiam_forward.1} parent=0 // pred_fallthru
    _
  // Predicated region
  $region30: #{simsiam_forward.1} parent=0 // pred_check
    _
  $region31: #{simsiam_forward.1} parent=0 // pred_check_branch
    %31 = sbr.rel (0) target = $region33
  $region32: #{simsiam_forward.1} parent=0 // pred_region
    _
  $region33: #{simsiam_forward.1} parent=0 // pred_fallthru
    _
  // Predicated region
  $region34: #{simsiam_forward.1} parent=0 // pred_check
    _
  $region35: #{simsiam_forward.1} parent=0 // pred_check_branch
    %33 = sbr.rel (0) target = $region37
  $region36: #{simsiam_forward.1} parent=0 // pred_region
    _
  $region37: #{simsiam_forward.1} parent=0 // pred_fallthru
    _
  %p34 = scmp.eq.s32.totalorder 0, 0
  // Predicated region
  $region38: #{simsiam_forward.1} parent=0 // pred_check
    %p35 = pneg %p34
  $region39: #{simsiam_forward.1} parent=0 // pred_check_branch
    %37 = sbr.rel (%p35) target = $region41
  $region40: #{simsiam_forward.1} parent=0 // pred_region
    %38 = vst [vmem:[#allocation2] sm:$0xff] 0.0
    %39 = vst [vmem:[#allocation2 + $0x8] sm:$0xff] 0.0
  $region41: #{simsiam_forward.1} parent=0 // pred_fallthru
    _
  %v40 = vld [vmem:[%s2] sm:$0xf]
  %v41 = vld [vmem:[%s2 + $0x4] sm:$0xf]
  %v42 = vld [vmem:[%s2 + $0x8] sm:$0xf]
  %v43 = vld [vmem:[%s2 + $0xc] sm:$0xf]
  %v44 = vld [vmem:[%s2 + $0x10] sm:$0xf]
  %v45 = vld [vmem:[%s2 + $0x14] sm:$0xf]
  %v46 = vld [vmem:[%s2 + $0x18] sm:$0xf]
  %v47 = vld [vmem:[%s2 + $0x1c] sm:$0xf]
  %v48 = vld [vmem:[%s2 + $0x20] sm:$0xf]
  %v49 = vld [vmem:[%s2 + $0x24] sm:$0xf]
  %v50 = vld [vmem:[%s2 + $0x28] sm:$0xf]
  %v51 = vld [vmem:[%s2 + $0x2c] sm:$0xf]
  %v52 = vld [vmem:[%s2 + $0x30] sm:$0xf]
  %v53 = vld [vmem:[%s2 + $0x34] sm:$0xf]
  %v54 = vld [vmem:[%s2 + $0x38] sm:$0xf]
  %v55 = vld [vmem:[%s2 + $0x3c] sm:$0xf]
  %v56 = vld [vmem:[%s2 + $0x40] sm:$0xf]
  %v57 = vld [vmem:[%s2 + $0x44] sm:$0xf]
  %v58 = vld [vmem:[%s2 + $0x48] sm:$0xf]
  %v59 = vld [vmem:[%s2 + $0x4c] sm:$0xf]
  %v60 = vld [vmem:[%s2 + $0x50] sm:$0xf]
  %v61 = vld [vmem:[%s2 + $0x54] sm:$0xf]
  %v62 = vld [vmem:[%s2 + $0x58] sm:$0xf]
  %v63 = vld [vmem:[%s2 + $0x5c] sm:$0xf]
  %v64 = vld [vmem:[%s2 + $0x60] sm:$0xf]
  %v65 = vld [vmem:[%s2 + $0x64] sm:$0xf]
  %v66 = vld [vmem:[%s2 + $0x68] sm:$0xf]
  %v67 = vld [vmem:[%s2 + $0x6c] sm:$0xf]
  %v68 = vld [vmem:[%s2 + $0x70] sm:$0xf]
  %v69 = vld [vmem:[%s2 + $0x74] sm:$0xf]
  %v70 = vld [vmem:[%s2 + $0x78] sm:$0xf]
  %v71 = vld [vmem:[%s2 + $0x7c] sm:$0xf]
  %v72 = vld [vmem:[%s2 + $0x80] sm:$0xf]
  %v73 = vld [vmem:[%s2 + $0x84] sm:$0xf]
  %v74 = vld [vmem:[%s2 + $0x88] sm:$0xf]
  %v75 = vld [vmem:[%s2 + $0x8c] sm:$0xf]
  %v76 = vld [vmem:[%s2 + $0x90] sm:$0xf]
  %v77 = vld [vmem:[%s2 + $0x94] sm:$0xf]
  %v78 = vld [vmem:[%s2 + $0x98] sm:$0xf]
  %v79 = vld [vmem:[%s2 + $0x9c] sm:$0xf]
  %v80 = vld [vmem:[%s2 + $0xa0] sm:$0xf]
  %v81 = vld [vmem:[%s2 + $0xa4] sm:$0xf]
  %v82 = vld [vmem:[%s2 + $0xa8] sm:$0xf]
  %v83 = vld [vmem:[%s2 + $0xac] sm:$0xf]
  %v84 = vld [vmem:[%s2 + $0xb0] sm:$0xf]
  %v85 = vld [vmem:[%s2 + $0xb4] sm:$0xf]
  %v86 = vld [vmem:[%s2 + $0xb8] sm:$0xf]
  %v87 = vld [vmem:[%s2 + $0xbc] sm:$0xf]
  %v88 = vld [vmem:[%s2 + $0xc0] sm:$0xf]
  %v89 = vld [vmem:[%s2 + $0xc4] sm:$0xf]
  %v90 = vld [vmem:[%s2 + $0xc8] sm:$0xf]
  %v91 = vld [vmem:[%s2 + $0xcc] sm:$0xf]
  %v92 = vld [vmem:[%s2 + $0xd0] sm:$0xf]
  %v93 = vld [vmem:[%s2 + $0xd4] sm:$0xf]
  %v94 = vld [vmem:[%s2 + $0xd8] sm:$0xf]
  %v95 = vld [vmem:[%s2 + $0xdc] sm:$0xf]
  %v96 = vld [vmem:[%s2 + $0xe0] sm:$0xf]
  %v97 = vld [vmem:[%s2 + $0xe4] sm:$0xf]
  %v98 = vld [vmem:[%s2 + $0xe8] sm:$0xf]
  %v99 = vld [vmem:[%s2 + $0xec] sm:$0xf]
  %v100 = vld [vmem:[%s2 + $0xf0] sm:$0xf]
  %v101 = vld [vmem:[%s2 + $0xf4] sm:$0xf]
  %v102 = vld [vmem:[%s2 + $0xf8] sm:$0xf]
  %v103 = vld [vmem:[%s2 + $0xfc] sm:$0xf]
  %v104 = vld [vmem:[%s2 + $0x100] sm:$0xf]
  %v105 = vld [vmem:[%s2 + $0x104] sm:$0xf]
  %v106 = vld [vmem:[%s2 + $0x108] sm:$0xf]
  %v107 = vld [vmem:[%s2 + $0x10c] sm:$0xf]
  %v108 = vld [vmem:[%s2 + $0x110] sm:$0xf]
  %v109 = vld [vmem:[%s2 + $0x114] sm:$0xf]
  %v110 = vld [vmem:[%s2 + $0x118] sm:$0xf]
  %v111 = vld [vmem:[%s2 + $0x11c] sm:$0xf]
  %v112 = vld [vmem:[%s2 + $0x120] sm:$0xf]
  %v113 = vld [vmem:[%s2 + $0x124] sm:$0xf]
  %v114 = vld [vmem:[%s2 + $0x128] sm:$0xf]
  %v115 = vld [vmem:[%s2 + $0x12c] sm:$0xf]
  %v116 = vld [vmem:[%s2 + $0x130] sm:$0xf]
  %v117 = vld [vmem:[%s2 + $0x134] sm:$0xf]
  %v118 = vld [vmem:[%s2 + $0x138] sm:$0xf]
  %v119 = vld [vmem:[%s2 + $0x13c] sm:$0xf]
  %v120 = vld [vmem:[%s2 + $0x140] sm:$0xf]
  %v121 = vld [vmem:[%s2 + $0x144] sm:$0xf]
  %v122 = vld [vmem:[%s2 + $0x148] sm:$0xf]
  %v123 = vld [vmem:[%s2 + $0x14c] sm:$0xf]
  %v124 = vld [vmem:[%s2 + $0x150] sm:$0xf]
  %v125 = vld [vmem:[%s2 + $0x154] sm:$0xf]
  %v126 = vld [vmem:[%s2 + $0x158] sm:$0xf]
  %v127 = vld [vmem:[%s2 + $0x15c] sm:$0xf]
  %v128 = vld [vmem:[%s2 + $0x160] sm:$0xf]
  %v129 = vld [vmem:[%s2 + $0x164] sm:$0xf]
  %v130 = vld [vmem:[%s2 + $0x168] sm:$0xf]
  %v131 = vld [vmem:[%s2 + $0x16c] sm:$0xf]
  %v132 = vld [vmem:[%s2 + $0x170] sm:$0xf]
  %v133 = vld [vmem:[%s2 + $0x174] sm:$0xf]
  %v134 = vld [vmem:[%s2 + $0x178] sm:$0xf]
  %v135 = vld [vmem:[%s2 + $0x17c] sm:$0xf]
  %v136 = vld [vmem:[%s2 + $0x180] sm:$0xf]
  %v137 = vld [vmem:[%s2 + $0x184] sm:$0xf]
  %v138 = vld [vmem:[%s2 + $0x188] sm:$0xf]
  %v139 = vld [vmem:[%s2 + $0x18c] sm:$0xf]
  %v140 = vld [vmem:[%s2 + $0x190] sm:$0xf]
  %v141 = vld [vmem:[%s2 + $0x194] sm:$0xf]
  %v142 = vld [vmem:[%s2 + $0x198] sm:$0xf]
  %v143 = vld [vmem:[%s2 + $0x19c] sm:$0xf]
  %v144 = vld [vmem:[%s2 + $0x1a0] sm:$0xf]
  %v145 = vld [vmem:[%s2 + $0x1a4] sm:$0xf]
  %v146 = vld [vmem:[%s2 + $0x1a8] sm:$0xf]
  %v147 = vld [vmem:[%s2 + $0x1ac] sm:$0xf]
  %v148 = vld [vmem:[%s2 + $0x1b0] sm:$0xf]
  %v149 = vld [vmem:[%s2 + $0x1b4] sm:$0xf]
  %v150 = vld [vmem:[%s2 + $0x1b8] sm:$0xf]
  %v151 = vld [vmem:[%s2 + $0x1bc] sm:$0xf]
  %v152 = vld [vmem:[%s2 + $0x1c0] sm:$0xf]
  %v153 = vld [vmem:[%s2 + $0x1c4] sm:$0xf]
  %v154 = vld [vmem:[%s2 + $0x1c8] sm:$0xf]
  %v155 = vld [vmem:[%s2 + $0x1cc] sm:$0xf]
  %v156 = vld [vmem:[%s2 + $0x1d0] sm:$0xf]
  %v157 = vld [vmem:[%s2 + $0x1d4] sm:$0xf]
  %v158 = vld [vmem:[%s2 + $0x1d8] sm:$0xf]
  %v159 = vld [vmem:[%s2 + $0x1dc] sm:$0xf]
  %v160 = vld [vmem:[%s2 + $0x1e0] sm:$0xf]
  %v161 = vld [vmem:[%s2 + $0x1e4] sm:$0xf]
  %v162 = vld [vmem:[%s2 + $0x1e8] sm:$0xf]
  %v163 = vld [vmem:[%s2 + $0x1ec] sm:$0xf]
  %v164 = vld [vmem:[%s2 + $0x1f0] sm:$0xf]
  %v165 = vld [vmem:[%s2 + $0x1f4] sm:$0xf]
  %v166 = vld [vmem:[%s2 + $0x1f8] sm:$0xf]
  %v167 = vld [vmem:[%s2 + $0x1fc] sm:$0xf]
  %v168 = vld [vmem:[#allocation2] sm:$0xff]
  %v169 = vld [vmem:[%s0] sm:$0xff]
  %v170 = vld [vmem:[%s0 + $0x8] sm:$0xff]
  %v171 = vld [vmem:[%s0 + $0x10] sm:$0xff]
  %v172 = vld [vmem:[%s0 + $0x18] sm:$0xff]
  %v173 = vld [vmem:[%s0 + $0x20] sm:$0xff]
  %v174 = vld [vmem:[%s0 + $0x28] sm:$0xff]
  %v175 = vld [vmem:[%s0 + $0x30] sm:$0xff]
  %v176 = vld [vmem:[%s0 + $0x38] sm:$0xff]
  %v177 = vpack.c.bf16 %v169, %v169
  %v178 = vpack.c.bf16 %v170, %v170
  %v179 = vpack.c.bf16 %v171, %v171
  %v180 = vpack.c.bf16 %v172, %v172
  %v181 = vpack.c.bf16 %v173, %v173
  %v182 = vpack.c.bf16 %v174, %v174
  %v183 = vpack.c.bf16 %v175, %v175
  %v184 = vpack.c.bf16 %v176, %v176
  %v313 = vunpack.c.l.b16 %v40
  %v314 = vunpack.c.l.b16 %v41
  %v315 = vunpack.c.l.b16 %v42
  %v316 = vunpack.c.l.b16 %v43
  %v317 = vunpack.c.l.b16 %v44
  %v318 = vunpack.c.l.b16 %v45
  %v319 = vunpack.c.l.b16 %v46
  %v320 = vunpack.c.l.b16 %v47
  %v321 = vunpack.c.l.b16 %v48
  %v322 = vunpack.c.l.b16 %v49
  %v323 = vunpack.c.l.b16 %v50
  %v324 = vunpack.c.l.b16 %v51
  %v325 = vunpack.c.l.b16 %v52
  %v326 = vunpack.c.l.b16 %v53
  %v327 = vunpack.c.l.b16 %v54
  %v328 = vunpack.c.l.b16 %v55
  %v329 = vunpack.c.l.b16 %v56
  %v330 = vunpack.c.l.b16 %v57
  %v331 = vunpack.c.l.b16 %v58
  %v332 = vunpack.c.l.b16 %v59
  %v333 = vunpack.c.l.b16 %v60
  %v334 = vunpack.c.l.b16 %v61
  %v335 = vunpack.c.l.b16 %v62
  %v336 = vunpack.c.l.b16 %v63
  %v337 = vunpack.c.l.b16 %v64
  %v338 = vunpack.c.l.b16 %v65
  %v339 = vunpack.c.l.b16 %v66
  %v340 = vunpack.c.l.b16 %v67
  %v341 = vunpack.c.l.b16 %v68
  %v342 = vunpack.c.l.b16 %v69
  %v343 = vunpack.c.l.b16 %v70
  %v344 = vunpack.c.l.b16 %v71
  %v345 = vunpack.c.l.b16 %v72
  %v346 = vunpack.c.l.b16 %v73
  %v347 = vunpack.c.l.b16 %v74
  %v348 = vunpack.c.l.b16 %v75
  %v349 = vunpack.c.l.b16 %v76
  %v350 = vunpack.c.l.b16 %v77
  %v351 = vunpack.c.l.b16 %v78
  %v352 = vunpack.c.l.b16 %v79
  %v353 = vunpack.c.l.b16 %v80
  %v354 = vunpack.c.l.b16 %v81
  %v355 = vunpack.c.l.b16 %v82
  %v356 = vunpack.c.l.b16 %v83
  %v357 = vunpack.c.l.b16 %v84
  %v358 = vunpack.c.l.b16 %v85
  %v359 = vunpack.c.l.b16 %v86
  %v360 = vunpack.c.l.b16 %v87
  %v361 = vunpack.c.l.b16 %v88
  %v362 = vunpack.c.l.b16 %v89
  %v363 = vunpack.c.l.b16 %v90
  %v364 = vunpack.c.l.b16 %v91
  %v365 = vunpack.c.l.b16 %v92
  %v366 = vunpack.c.l.b16 %v93
  %v367 = vunpack.c.l.b16 %v94
  %v368 = vunpack.c.l.b16 %v95
  %v369 = vunpack.c.l.b16 %v96
  %v370 = vunpack.c.l.b16 %v97
  %v371 = vunpack.c.l.b16 %v98
  %v372 = vunpack.c.l.b16 %v99
  %v373 = vunpack.c.l.b16 %v100
  %v374 = vunpack.c.l.b16 %v101
  %v375 = vunpack.c.l.b16 %v102
  %v376 = vunpack.c.l.b16 %v103
  %v377 = vunpack.c.l.b16 %v104
  %v378 = vunpack.c.l.b16 %v105
  %v379 = vunpack.c.l.b16 %v106
  %v380 = vunpack.c.l.b16 %v107
  %v381 = vunpack.c.l.b16 %v108
  %v382 = vunpack.c.l.b16 %v109
  %v383 = vunpack.c.l.b16 %v110
  %v384 = vunpack.c.l.b16 %v111
  %v385 = vunpack.c.l.b16 %v112
  %v386 = vunpack.c.l.b16 %v113
  %v387 = vunpack.c.l.b16 %v114
  %v388 = vunpack.c.l.b16 %v115
  %v389 = vunpack.c.l.b16 %v116
  %v390 = vunpack.c.l.b16 %v117
  %v391 = vunpack.c.l.b16 %v118
  %v392 = vunpack.c.l.b16 %v119
  %v393 = vunpack.c.l.b16 %v120
  %v394 = vunpack.c.l.b16 %v121
  %v395 = vunpack.c.l.b16 %v122
  %v396 = vunpack.c.l.b16 %v123
  %v397 = vunpack.c.l.b16 %v124
  %v398 = vunpack.c.l.b16 %v125
  %v399 = vunpack.c.l.b16 %v126
  %v400 = vunpack.c.l.b16 %v127
  %v401 = vunpack.c.l.b16 %v128
  %v402 = vunpack.c.l.b16 %v129
  %v403 = vunpack.c.l.b16 %v130
  %v404 = vunpack.c.l.b16 %v131
  %v405 = vunpack.c.l.b16 %v132
  %v406 = vunpack.c.l.b16 %v133
  %v407 = vunpack.c.l.b16 %v134
  %v408 = vunpack.c.l.b16 %v135
  %v409 = vunpack.c.l.b16 %v136
  %v410 = vunpack.c.l.b16 %v137
  %v411 = vunpack.c.l.b16 %v138
  %v412 = vunpack.c.l.b16 %v139
  %v413 = vunpack.c.l.b16 %v140
  %v414 = vunpack.c.l.b16 %v141
  %v415 = vunpack.c.l.b16 %v142
  %v416 = vunpack.c.l.b16 %v143
  %v417 = vunpack.c.l.b16 %v144
  %v418 = vunpack.c.l.b16 %v145
  %v419 = vunpack.c.l.b16 %v146
  %v420 = vunpack.c.l.b16 %v147
  %v421 = vunpack.c.l.b16 %v148
  %v422 = vunpack.c.l.b16 %v149
  %v423 = vunpack.c.l.b16 %v150
  %v424 = vunpack.c.l.b16 %v151
  %v425 = vunpack.c.l.b16 %v152
  %v426 = vunpack.c.l.b16 %v153
  %v427 = vunpack.c.l.b16 %v154
  %v428 = vunpack.c.l.b16 %v155
  %v429 = vunpack.c.l.b16 %v156
  %v430 = vunpack.c.l.b16 %v157
  %v431 = vunpack.c.l.b16 %v158
  %v432 = vunpack.c.l.b16 %v159
  %v433 = vunpack.c.l.b16 %v160
  %v434 = vunpack.c.l.b16 %v161
  %v435 = vunpack.c.l.b16 %v162
  %v436 = vunpack.c.l.b16 %v163
  %v437 = vunpack.c.l.b16 %v164
  %v438 = vunpack.c.l.b16 %v165
  %v439 = vunpack.c.l.b16 %v166
  %v440 = vunpack.c.l.b16 %v167
  %v441 = vpack.c.b16 %v314, %v313
  %v442 = vpack.c.b16 %v316, %v315
  %v443 = vpack.c.b16 %v318, %v317
  %v444 = vpack.c.b16 %v320, %v319
  %v445 = vpack.c.b16 %v322, %v321
  %v446 = vpack.c.b16 %v324, %v323
  %v447 = vpack.c.b16 %v326, %v325
  %v448 = vpack.c.b16 %v328, %v327
  %v449 = vpack.c.b16 %v330, %v329
  %v450 = vpack.c.b16 %v332, %v331
  %v451 = vpack.c.b16 %v334, %v333
  %v452 = vpack.c.b16 %v336, %v335
  %v453 = vpack.c.b16 %v338, %v337
  %v454 = vpack.c.b16 %v340, %v339
  %v455 = vpack.c.b16 %v342, %v341
  %v456 = vpack.c.b16 %v344, %v343
  %v457 = vpack.c.b16 %v346, %v345
  %v458 = vpack.c.b16 %v348, %v347
  %v459 = vpack.c.b16 %v350, %v349
  %v460 = vpack.c.b16 %v352, %v351
  %v461 = vpack.c.b16 %v354, %v353
  %v462 = vpack.c.b16 %v356, %v355
  %v463 = vpack.c.b16 %v358, %v357
  %v464 = vpack.c.b16 %v360, %v359
  %v465 = vpack.c.b16 %v362, %v361
  %v466 = vpack.c.b16 %v364, %v363
  %v467 = vpack.c.b16 %v366, %v365
  %v468 = vpack.c.b16 %v368, %v367
  %v469 = vpack.c.b16 %v370, %v369
  %v470 = vpack.c.b16 %v372, %v371
  %v471 = vpack.c.b16 %v374, %v373
  %v472 = vpack.c.b16 %v376, %v375
  %v473 = vpack.c.b16 %v378, %v377
  %v474 = vpack.c.b16 %v380, %v379
  %v475 = vpack.c.b16 %v382, %v381
  %v476 = vpack.c.b16 %v384, %v383
  %v477 = vpack.c.b16 %v386, %v385
  %v478 = vpack.c.b16 %v388, %v387
  %v479 = vpack.c.b16 %v390, %v389
  %v480 = vpack.c.b16 %v392, %v391
  %v481 = vpack.c.b16 %v394, %v393
  %v482 = vpack.c.b16 %v396, %v395
  %v483 = vpack.c.b16 %v398, %v397
  %v484 = vpack.c.b16 %v400, %v399
  %v485 = vpack.c.b16 %v402, %v401
  %v486 = vpack.c.b16 %v404, %v403
  %v487 = vpack.c.b16 %v406, %v405
  %v488 = vpack.c.b16 %v408, %v407
  %v489 = vpack.c.b16 %v410, %v409
  %v490 = vpack.c.b16 %v412, %v411
  %v491 = vpack.c.b16 %v414, %v413
  %v492 = vpack.c.b16 %v416, %v415
  %v493 = vpack.c.b16 %v418, %v417
  %v494 = vpack.c.b16 %v420, %v419
  %v495 = vpack.c.b16 %v422, %v421
  %v496 = vpack.c.b16 %v424, %v423
  %v497 = vpack.c.b16 %v426, %v425
  %v498 = vpack.c.b16 %v428, %v427
  %v499 = vpack.c.b16 %v430, %v429
  %v500 = vpack.c.b16 %v432, %v431
  %v501 = vpack.c.b16 %v434, %v433
  %v502 = vpack.c.b16 %v436, %v435
  %v503 = vpack.c.b16 %v438, %v437
  %v504 = vpack.c.b16 %v440, %v439
  %569 = vmatpush.bf16.msra.mxu0 %v448
  %570 = vmatpush.bf16.msra.mxu0 %v447
  %571 = vmatpush.bf16.msra.mxu0 %v446
  %572 = vmatpush.bf16.msra.mxu0 %v445
  %573 = vmatpush.bf16.msra.mxu0 %v444
  %574 = vmatpush.bf16.msra.mxu0 %v443
  %575 = vmatpush.bf16.msra.mxu0 %v442
  %576 = vmatpush.bf16.msra.mxu0 %v441
  %577 = vmatmul.bf16.gmra.mxu0 %v177
  %v578 = vpop.f32.mrf.mxu0
  %v579 = vadd.f32 0.0, %v578
  %v580 = vpop.f32.mrf.mxu0
  %581 = vdwg.mxu0
  %582 = vmatpush.bf16.msra.mxu0 %v456
  %583 = vmatpush.bf16.msra.mxu0 %v455
  %584 = vmatpush.bf16.msra.mxu0 %v454
  %585 = vmatpush.bf16.msra.mxu0 %v453
  %586 = vmatpush.bf16.msra.mxu0 %v452
  %587 = vmatpush.bf16.msra.mxu0 %v451
  %588 = vmatpush.bf16.msra.mxu0 %v450
  %589 = vmatpush.bf16.msra.mxu0 %v449
  %590 = vmatmul.bf16.gmra.mxu0 %v178
  %v591 = vpop.f32.mrf.mxu0
  %v592 = vadd.f32 %v579, %v591
  %v593 = vpop.f32.mrf.mxu0
  %594 = vdwg.mxu0
  %595 = vmatpush.bf16.msra.mxu0 %v464
  %596 = vmatpush.bf16.msra.mxu0 %v463
  %597 = vmatpush.bf16.msra.mxu0 %v462
  %598 = vmatpush.bf16.msra.mxu0 %v461
  %599 = vmatpush.bf16.msra.mxu0 %v460
  %600 = vmatpush.bf16.msra.mxu0 %v459
  %601 = vmatpush.bf16.msra.mxu0 %v458
  %602 = vmatpush.bf16.msra.mxu0 %v457
  %603 = vmatmul.bf16.gmra.mxu0 %v179
  %v604 = vpop.f32.mrf.mxu0
  %v605 = vadd.f32 %v592, %v604
  %v606 = vpop.f32.mrf.mxu0
  %607 = vdwg.mxu0
  %608 = vmatpush.bf16.msra.mxu0 %v472
  %609 = vmatpush.bf16.msra.mxu0 %v471
  %610 = vmatpush.bf16.msra.mxu0 %v470
  %611 = vmatpush.bf16.msra.mxu0 %v469
  %612 = vmatpush.bf16.msra.mxu0 %v468
  %613 = vmatpush.bf16.msra.mxu0 %v467
  %614 = vmatpush.bf16.msra.mxu0 %v466
  %615 = vmatpush.bf16.msra.mxu0 %v465
  %616 = vmatmul.bf16.gmra.mxu0 %v180
  %v617 = vpop.f32.mrf.mxu0
  %v618 = vadd.f32 %v605, %v617
  %v619 = vpop.f32.mrf.mxu0
  %620 = vdwg.mxu0
  %621 = vmatpush.bf16.msra.mxu0 %v480
  %622 = vmatpush.bf16.msra.mxu0 %v479
  %623 = vmatpush.bf16.msra.mxu0 %v478
  %624 = vmatpush.bf16.msra.mxu0 %v477
  %625 = vmatpush.bf16.msra.mxu0 %v476
  %626 = vmatpush.bf16.msra.mxu0 %v475
  %627 = vmatpush.bf16.msra.mxu0 %v474
  %628 = vmatpush.bf16.msra.mxu0 %v473
  %629 = vmatmul.bf16.gmra.mxu0 %v181
  %v630 = vpop.f32.mrf.mxu0
  %v631 = vadd.f32 %v618, %v630
  %v632 = vpop.f32.mrf.mxu0
  %633 = vdwg.mxu0
  %634 = vmatpush.bf16.msra.mxu0 %v488
  %635 = vmatpush.bf16.msra.mxu0 %v487
  %636 = vmatpush.bf16.msra.mxu0 %v486
  %637 = vmatpush.bf16.msra.mxu0 %v485
  %638 = vmatpush.bf16.msra.mxu0 %v484
  %639 = vmatpush.bf16.msra.mxu0 %v483
  %640 = vmatpush.bf16.msra.mxu0 %v482
  %641 = vmatpush.bf16.msra.mxu0 %v481
  %642 = vmatmul.bf16.gmra.mxu0 %v182
  %v643 = vpop.f32.mrf.mxu0
  %v644 = vadd.f32 %v631, %v643
  %v645 = vpop.f32.mrf.mxu0
  %646 = vdwg.mxu0
  %647 = vmatpush.bf16.msra.mxu0 %v496
  %648 = vmatpush.bf16.msra.mxu0 %v495
  %649 = vmatpush.bf16.msra.mxu0 %v494
  %650 = vmatpush.bf16.msra.mxu0 %v493
  %651 = vmatpush.bf16.msra.mxu0 %v492
  %652 = vmatpush.bf16.msra.mxu0 %v491
  %653 = vmatpush.bf16.msra.mxu0 %v490
  %654 = vmatpush.bf16.msra.mxu0 %v489
  %655 = vmatmul.bf16.gmra.mxu0 %v183
  %v656 = vpop.f32.mrf.mxu0
  %v657 = vadd.f32 %v644, %v656
  %v658 = vpop.f32.mrf.mxu0
  %659 = vdwg.mxu0
  %660 = vmatpush.bf16.msra.mxu0 %v504
  %661 = vmatpush.bf16.msra.mxu0 %v503
  %662 = vmatpush.bf16.msra.mxu0 %v502
  %663 = vmatpush.bf16.msra.mxu0 %v501
  %664 = vmatpush.bf16.msra.mxu0 %v500
  %665 = vmatpush.bf16.msra.mxu0 %v499
  %666 = vmatpush.bf16.msra.mxu0 %v498
  %667 = vmatpush.bf16.msra.mxu0 %v497
  %668 = vmatmul.bf16.gmra.mxu0 %v184
  %v669 = vpop.f32.mrf.mxu0
  %v670 = vadd.f32 %v657, %v669
  %v671 = vpop.f32.mrf.mxu0
  %672 = vdwg.mxu0
  %v673 = vadd.f32 %v168, %v670
  %674 = vst [vmem:[#allocation2] sm:$0xff] %v673
  %s675 = scalar_lea.vmem [#allocation2], 8
  %v676 = vld [vmem:[%s675] sm:$0xff]
  %v677 = vld [vmem:[%s1] sm:$0xff]
  %v678 = vld [vmem:[%s1 + $0x8] sm:$0xff]
  %v679 = vld [vmem:[%s1 + $0x10] sm:$0xff]
  %v680 = vld [vmem:[%s1 + $0x18] sm:$0xff]
  %v681 = vld [vmem:[%s1 + $0x20] sm:$0xff]
  %v682 = vld [vmem:[%s1 + $0x28] sm:$0xff]
  %v683 = vld [vmem:[%s1 + $0x30] sm:$0xff]
  %v684 = vld [vmem:[%s1 + $0x38] sm:$0xff]
  %v685 = vpack.c.bf16 %v677, %v677
  %v686 = vpack.c.bf16 %v678, %v678
  %v687 = vpack.c.bf16 %v679, %v679
  %v688 = vpack.c.bf16 %v680, %v680
  %v689 = vpack.c.bf16 %v681, %v681
  %v690 = vpack.c.bf16 %v682, %v682
  %v691 = vpack.c.bf16 %v683, %v683
  %v692 = vpack.c.bf16 %v684, %v684
  %693 = vmatpush.bf16.msra.mxu0 %v448
  %694 = vmatpush.bf16.msra.mxu0 %v447
  %695 = vmatpush.bf16.msra.mxu0 %v446
  %696 = vmatpush.bf16.msra.mxu0 %v445
  %697 = vmatpush.bf16.msra.mxu0 %v444
  %698 = vmatpush.bf16.msra.mxu0 %v443
  %699 = vmatpush.bf16.msra.mxu0 %v442
  %700 = vmatpush.bf16.msra.mxu0 %v441
  %701 = vmatmul.bf16.gmra.mxu0 %v685
  %v702 = vpop.f32.mrf.mxu0
  %v703 = vadd.f32 0.0, %v702
  %v704 = vpop.f32.mrf.mxu0
  %705 = vdwg.mxu0
  %706 = vmatpush.bf16.msra.mxu0 %v456
  %707 = vmatpush.bf16.msra.mxu0 %v455
  %708 = vmatpush.bf16.msra.mxu0 %v454
  %709 = vmatpush.bf16.msra.mxu0 %v453
  %710 = vmatpush.bf16.msra.mxu0 %v452
  %711 = vmatpush.bf16.msra.mxu0 %v451
  %712 = vmatpush.bf16.msra.mxu0 %v450
  %713 = vmatpush.bf16.msra.mxu0 %v449
  %714 = vmatmul.bf16.gmra.mxu0 %v686
  %v715 = vpop.f32.mrf.mxu0
  %v716 = vadd.f32 %v703, %v715
  %v717 = vpop.f32.mrf.mxu0
  %718 = vdwg.mxu0
  %719 = vmatpush.bf16.msra.mxu0 %v464
  %720 = vmatpush.bf16.msra.mxu0 %v463
  %721 = vmatpush.bf16.msra.mxu0 %v462
  %722 = vmatpush.bf16.msra.mxu0 %v461
  %723 = vmatpush.bf16.msra.mxu0 %v460
  %724 = vmatpush.bf16.msra.mxu0 %v459
  %725 = vmatpush.bf16.msra.mxu0 %v458
  %726 = vmatpush.bf16.msra.mxu0 %v457
  %727 = vmatmul.bf16.gmra.mxu0 %v687
  %v728 = vpop.f32.mrf.mxu0
  %v729 = vadd.f32 %v716, %v728
  %v730 = vpop.f32.mrf.mxu0
  %731 = vdwg.mxu0
  %732 = vmatpush.bf16.msra.mxu0 %v472
  %733 = vmatpush.bf16.msra.mxu0 %v471
  %734 = vmatpush.bf16.msra.mxu0 %v470
  %735 = vmatpush.bf16.msra.mxu0 %v469
  %736 = vmatpush.bf16.msra.mxu0 %v468
  %737 = vmatpush.bf16.msra.mxu0 %v467
  %738 = vmatpush.bf16.msra.mxu0 %v466
  %739 = vmatpush.bf16.msra.mxu0 %v465
  %740 = vmatmul.bf16.gmra.mxu0 %v688
  %v741 = vpop.f32.mrf.mxu0
  %v742 = vadd.f32 %v729, %v741
  %v743 = vpop.f32.mrf.mxu0
  %744 = vdwg.mxu0
  %745 = vmatpush.bf16.msra.mxu0 %v480
  %746 = vmatpush.bf16.msra.mxu0 %v479
  %747 = vmatpush.bf16.msra.mxu0 %v478
  %748 = vmatpush.bf16.msra.mxu0 %v477
  %749 = vmatpush.bf16.msra.mxu0 %v476
  %750 = vmatpush.bf16.msra.mxu0 %v475
  %751 = vmatpush.bf16.msra.mxu0 %v474
  %752 = vmatpush.bf16.msra.mxu0 %v473
  %753 = vmatmul.bf16.gmra.mxu0 %v689
  %v754 = vpop.f32.mrf.mxu0
  %v755 = vadd.f32 %v742, %v754
  %v756 = vpop.f32.mrf.mxu0
  %757 = vdwg.mxu0
  %758 = vmatpush.bf16.msra.mxu0 %v488
  %759 = vmatpush.bf16.msra.mxu0 %v487
  %760 = vmatpush.bf16.msra.mxu0 %v486
  %761 = vmatpush.bf16.msra.mxu0 %v485
  %762 = vmatpush.bf16.msra.mxu0 %v484
  %763 = vmatpush.bf16.msra.mxu0 %v483
  %764 = vmatpush.bf16.msra.mxu0 %v482
  %765 = vmatpush.bf16.msra.mxu0 %v481
  %766 = vmatmul.bf16.gmra.mxu0 %v690
  %v767 = vpop.f32.mrf.mxu0
  %v768 = vadd.f32 %v755, %v767
  %v769 = vpop.f32.mrf.mxu0
  %770 = vdwg.mxu0
  %771 = vmatpush.bf16.msra.mxu0 %v496
  %772 = vmatpush.bf16.msra.mxu0 %v495
  %773 = vmatpush.bf16.msra.mxu0 %v494
  %774 = vmatpush.bf16.msra.mxu0 %v493
  %775 = vmatpush.bf16.msra.mxu0 %v492
  %776 = vmatpush.bf16.msra.mxu0 %v491
  %777 = vmatpush.bf16.msra.mxu0 %v490
  %778 = vmatpush.bf16.msra.mxu0 %v489
  %779 = vmatmul.bf16.gmra.mxu0 %v691
  %v780 = vpop.f32.mrf.mxu0
  %v781 = vadd.f32 %v768, %v780
  %v782 = vpop.f32.mrf.mxu0
  %783 = vdwg.mxu0
  %784 = vmatpush.bf16.msra.mxu0 %v504
  %785 = vmatpush.bf16.msra.mxu0 %v503
  %786 = vmatpush.bf16.msra.mxu0 %v502
  %787 = vmatpush.bf16.msra.mxu0 %v501
  %788 = vmatpush.bf16.msra.mxu0 %v500
  %789 = vmatpush.bf16.msra.mxu0 %v499
  %790 = vmatpush.bf16.msra.mxu0 %v498
  %791 = vmatpush.bf16.msra.mxu0 %v497
  %792 = vmatmul.bf16.gmra.mxu0 %v692
  %v793 = vpop.f32.mrf.mxu0
  %v794 = vadd.f32 %v781, %v793
  %v795 = vpop.f32.mrf.mxu0
  %796 = vdwg.mxu0
  %v797 = vadd.f32 %v676, %v794
  %798 = vst [vmem:[%s675] sm:$0xff] %v797
  // Predicated region
  $region42: #{simsiam_forward.1} parent=0 // pred_check
    %p799 = pneg %p34
  $region43: #{simsiam_forward.1} parent=0 // pred_check_branch
    %801 = sbr.rel (%p799) target = $region45
  $region44: #{simsiam_forward.1} parent=0 // pred_region
    %v802 = vld [vmem:[%s8] sm:$0x1]
    %v803 = vld [vmem:[%s8 + $0x1] sm:$0x1]
    %v804 = vld [vmem:[%s8 + $0x2] sm:$0x1]
    %v805 = vld [vmem:[%s8 + $0x3] sm:$0x1]
    %v806 = vld [vmem:[%s8 + $0x4] sm:$0x1]
    %v807 = vld [vmem:[%s8 + $0x5] sm:$0x1]
    %v808 = vld [vmem:[%s8 + $0x6] sm:$0x1]
    %v809 = vld [vmem:[#allocation2] sm:$0xff]
    %v810 = vpack.c.bf16 %v809, %v809
    %v811 = vld [vmem:[%s3] sm:$0xf]
    %v812 = vld [vmem:[%s3 + $0x4] sm:$0xf]
    %v813 = vld [vmem:[%s3 + $0x8] sm:$0xf]
    %v814 = vld [vmem:[%s3 + $0xc] sm:$0xf]
    %v815 = vld [vmem:[%s3 + $0x10] sm:$0xf]
    %v816 = vld [vmem:[%s3 + $0x14] sm:$0xf]
    %v817 = vld [vmem:[%s3 + $0x18] sm:$0xf]
    %v818 = vld [vmem:[%s3 + $0x1c] sm:$0xf]
    %v819 = vld [vmem:[%s3 + $0x20] sm:$0xf]
    %v820 = vld [vmem:[%s3 + $0x24] sm:$0xf]
    %v821 = vld [vmem:[%s3 + $0x28] sm:$0xf]
    %v822 = vld [vmem:[%s3 + $0x2c] sm:$0xf]
    %v823 = vld [vmem:[%s3 + $0x30] sm:$0xf]
    %v824 = vld [vmem:[%s3 + $0x34] sm:$0xf]
    %v825 = vld [vmem:[%s3 + $0x38] sm:$0xf]
    %v826 = vld [vmem:[%s3 + $0x3c] sm:$0xf]
    %v843 = vunpack.c.l.b16 %v811
    %v844 = vunpack.c.l.b16 %v812
    %v845 = vunpack.c.l.b16 %v813
    %v846 = vunpack.c.l.b16 %v814
    %v847 = vunpack.c.l.b16 %v815
    %v848 = vunpack.c.l.b16 %v816
    %v849 = vunpack.c.l.b16 %v817
    %v850 = vunpack.c.l.b16 %v818
    %v851 = vunpack.c.l.b16 %v819
    %v852 = vunpack.c.l.b16 %v820
    %v853 = vunpack.c.l.b16 %v821
    %v854 = vunpack.c.l.b16 %v822
    %v855 = vunpack.c.l.b16 %v823
    %v856 = vunpack.c.l.b16 %v824
    %v857 = vunpack.c.l.b16 %v825
    %v858 = vunpack.c.l.b16 %v826
    %v859 = vpack.c.b16 %v844, %v843
    %v860 = vpack.c.b16 %v846, %v845
    %v861 = vpack.c.b16 %v848, %v847
    %v862 = vpack.c.b16 %v850, %v849
    %v863 = vpack.c.b16 %v852, %v851
    %v864 = vpack.c.b16 %v854, %v853
    %v865 = vpack.c.b16 %v856, %v855
    %v866 = vpack.c.b16 %v858, %v857
    %875 = vmatpush.bf16.msra.mxu0 %v866
    %876 = vmatpush.bf16.msra.mxu0 %v865
    %877 = vmatpush.bf16.msra.mxu0 %v864
    %878 = vmatpush.bf16.msra.mxu0 %v863
    %879 = vmatpush.bf16.msra.mxu0 %v862
    %880 = vmatpush.bf16.msra.mxu0 %v861
    %881 = vmatpush.bf16.msra.mxu0 %v860
    %882 = vmatpush.bf16.msra.mxu0 %v859
    %883 = vmatmul.bf16.gmra.mxu0 %v810
    %v884 = vpop.f32.mrf.mxu0
    %v885 = vadd.f32 0.0, %v884
    %v886 = vpop.f32.mrf.mxu0
    %887 = vdwg.mxu0
    %v888 = vrot.slane %v885, 4
    %v889 = vadd.f32 %v885, %v888
    %v890 = vrot.slane %v889, 2
    %v891 = vadd.f32 %v889, %v890
    %v892 = vrot.slane %v891, 1
    %v893 = vadd.f32 %v891, %v892
    %v894 = vrcp.pop 8.0
    %v895 = vmul.f32 8.0, %v894
    %v896 = vsub.f32 1.0, %v895
    %v897 = vmul.f32 %v894, %v896
    %v898 = vadd.f32 %v894, %v897
    %vm899 = vweird.f32 %v894
    %v900 = vsel %vm899, %v894, %v898
    %v901 = vmul.f32 %v893, %v900
    %v902 = vsub.f32 %v885, %v901
    %v903 = vmul.f32 %v902, %v902
    %v904 = vrot.slane %v903, 4
    %v905 = vadd.f32 %v903, %v904
    %v906 = vrot.slane %v905, 2
    %v907 = vadd.f32 %v905, %v906
    %v908 = vrot.slane %v907, 1
    %v909 = vadd.f32 %v907, %v908
    %v910 = vmul.f32 %v909, %v900
    %v911 = vadd.f32 %v910, 1e-05
    %v912 = vrsqrt.pop %v911
    %v913 = vmul.f32 %v912, %v911
    %v914 = vmul.f32 %v913, %v912
    %v915 = vmul.f32 0.5, %v914
    %v916 = vsub.f32 1.5, %v915
    %v917 = vmul.f32 %v912, %v916
    %vm918 = vweird.f32 %v911
    %vm919 = vweird.f32 %v912
    %vm920 = vmor %vm918, %vm919
    %v921 = vsel %vm920, %v912, %v917
    %v922 = vmul.f32 %v902, %v921
    %v923 = vperm.slane %v802, 0
    %v924 = vmul.f32 %v922, %v923
    %v925 = vperm.slane %v803, 0
    %v926 = vadd.f32 %v924, %v925
    %v927 = vmax.f32 %v926, 0.0
    %v928 = vpack.c.bf16 %v927, %v927
    %v929 = vld [vmem:[%s4] sm:$0xf]
    %v930 = vld [vmem:[%s4 + $0x4] sm:$0xf]
    %v931 = vld [vmem:[%s4 + $0x8] sm:$0xf]
    %v932 = vld [vmem:[%s4 + $0xc] sm:$0xf]
    %v933 = vld [vmem:[%s4 + $0x10] sm:$0xf]
    %v934 = vld [vmem:[%s4 + $0x14] sm:$0xf]
    %v935 = vld [vmem:[%s4 + $0x18] sm:$0xf]
    %v936 = vld [vmem:[%s4 + $0x1c] sm:$0xf]
    %v937 = vld [vmem:[%s4 + $0x20] sm:$0xf]
    %v938 = vld [vmem:[%s4 + $0x24] sm:$0xf]
    %v939 = vld [vmem:[%s4 + $0x28] sm:$0xf]
    %v940 = vld [vmem:[%s4 + $0x2c] sm:$0xf]
    %v941 = vld [vmem:[%s4 + $0x30] sm:$0xf]
    %v942 = vld [vmem:[%s4 + $0x34] sm:$0xf]
    %v943 = vld [vmem:[%s4 + $0x38] sm:$0xf]
    %v944 = vld [vmem:[%s4 + $0x3c] sm:$0xf]
    %v961 = vunpack.c.l.b16 %v929
    %v962 = vunpack.c.l.b16 %v930
    %v963 = vunpack.c.l.b16 %v931
    %v964 = vunpack.c.l.b16 %v932
    %v965 = vunpack.c.l.b16 %v933
    %v966 = vunpack.c.l.b16 %v934
    %v967 = vunpack.c.l.b16 %v935
    %v968 = vunpack.c.l.b16 %v936
    %v969 = vunpack.c.l.b16 %v937
    %v970 = vunpack.c.l.b16 %v938
    %v971 = vunpack.c.l.b16 %v939
    %v972 = vunpack.c.l.b16 %v940
    %v973 = vunpack.c.l.b16 %v941
    %v974 = vunpack.c.l.b16 %v942
    %v975 = vunpack.c.l.b16 %v943
    %v976 = vunpack.c.l.b16 %v944
    %v977 = vpack.c.b16 %v962, %v961
    %v978 = vpack.c.b16 %v964, %v963
    %v979 = vpack.c.b16 %v966, %v965
    %v980 = vpack.c.b16 %v968, %v967
    %v981 = vpack.c.b16 %v970, %v969
    %v982 = vpack.c.b16 %v972, %v971
    %v983 = vpack.c.b16 %v974, %v973
    %v984 = vpack.c.b16 %v976, %v975
    %993 = vmatpush.bf16.msra.mxu0 %v984
    %994 = vmatpush.bf16.msra.mxu0 %v983
    %995 = vmatpush.bf16.msra.mxu0 %v982
    %996 = vmatpush.bf16.msra.mxu0 %v981
    %997 = vmatpush.bf16.msra.mxu0 %v980
    %998 = vmatpush.bf16.msra.mxu0 %v979
    %999 = vmatpush.bf16.msra.mxu0 %v978
    %1000 = vmatpush.bf16.msra.mxu0 %v977
    %1001 = vmatmul.bf16.gmra.mxu0 %v928
    %v1002 = vpop.f32.mrf.mxu0
    %v1003 = vadd.f32 0.0, %v1002
    %v1004 = vpop.f32.mrf.mxu0
    %1005 = vdwg.mxu0
    %v1006 = vrot.slane %v1003, 4
    %v1007 = vadd.f32 %v1003, %v1006
    %v1008 = vrot.slane %v1007, 2
    %v1009 = vadd.f32 %v1007, %v1008
    %v1010 = vrot.slane %v1009, 1
    %v1011 = vadd.f32 %v1009, %v1010
    %v1012 = vmul.f32 %v1011, %v900
    %v1013 = vsub.f32 %v1003, %v1012
    %v1014 = vmul.f32 %v1013, %v1013
    %v1015 = vrot.slane %v1014, 4
    %v1016 = vadd.f32 %v1014, %v1015
    %v1017 = vrot.slane %v1016, 2
    %v1018 = vadd.f32 %v1016, %v1017
    %v1019 = vrot.slane %v1018, 1
    %v1020 = vadd.f32 %v1018, %v1019
    %v1021 = vmul.f32 %v1020, %v900
    %v1022 = vadd.f32 %v1021, 1e-05
    %v1023 = vrsqrt.pop %v1022
    %v1024 = vmul.f32 %v1023, %v1022
    %v1025 = vmul.f32 %v1024, %v1023
    %v1026 = vmul.f32 0.5, %v1025
    %v1027 = vsub.f32 1.5, %v1026
    %v1028 = vmul.f32 %v1023, %v1027
    %vm1029 = vweird.f32 %v1022
    %vm1030 = vweird.f32 %v1023
    %vm1031 = vmor %vm1029, %vm1030
    %v1032 = vsel %vm1031, %v1023, %v1028
    %v1033 = vmul.f32 %v1013, %v1032
    %v1034 = vperm.slane %v804, 0
    %v1035 = vmul.f32 %v1033, %v1034
    %v1036 = vperm.slane %v805, 0
    %v1037 = vadd.f32 %v1035, %v1036
    %v1038 = vmax.f32 %v1037, 0.0
    %v1039 = vpack.c.bf16 %v1038, %v1038
    %v1040 = vld [vmem:[%s5] sm:$0xf]
    %v1041 = vld [vmem:[%s5 + $0x4] sm:$0xf]
    %v1042 = vld [vmem:[%s5 + $0x8] sm:$0xf]
    %v1043 = vld [vmem:[%s5 + $0xc] sm:$0xf]
    %v1044 = vld [vmem:[%s5 + $0x10] sm:$0xf]
    %v1045 = vld [vmem:[%s5 + $0x14] sm:$0xf]
    %v1046 = vld [vmem:[%s5 + $0x18] sm:$0xf]
    %v1047 = vld [vmem:[%s5 + $0x1c] sm:$0xf]
    %v1048 = vld [vmem:[%s5 + $0x20] sm:$0xf]
    %v1049 = vld [vmem:[%s5 + $0x24] sm:$0xf]
    %v1050 = vld [vmem:[%s5 + $0x28] sm:$0xf]
    %v1051 = vld [vmem:[%s5 + $0x2c] sm:$0xf]
    %v1052 = vld [vmem:[%s5 + $0x30] sm:$0xf]
    %v1053 = vld [vmem:[%s5 + $0x34] sm:$0xf]
    %v1054 = vld [vmem:[%s5 + $0x38] sm:$0xf]
    %v1055 = vld [vmem:[%s5 + $0x3c] sm:$0xf]
    %v1072 = vunpack.c.l.b16 %v1040
    %v1073 = vunpack.c.l.b16 %v1041
    %v1074 = vunpack.c.l.b16 %v1042
    %v1075 = vunpack.c.l.b16 %v1043
    %v1076 = vunpack.c.l.b16 %v1044
    %v1077 = vunpack.c.l.b16 %v1045
    %v1078 = vunpack.c.l.b16 %v1046
    %v1079 = vunpack.c.l.b16 %v1047
    %v1080 = vunpack.c.l.b16 %v1048
    %v1081 = vunpack.c.l.b16 %v1049
    %v1082 = vunpack.c.l.b16 %v1050
    %v1083 = vunpack.c.l.b16 %v1051
    %v1084 = vunpack.c.l.b16 %v1052
    %v1085 = vunpack.c.l.b16 %v1053
    %v1086 = vunpack.c.l.b16 %v1054
    %v1087 = vunpack.c.l.b16 %v1055
    %v1088 = vpack.c.b16 %v1073, %v1072
    %v1089 = vpack.c.b16 %v1075, %v1074
    %v1090 = vpack.c.b16 %v1077, %v1076
    %v1091 = vpack.c.b16 %v1079, %v1078
    %v1092 = vpack.c.b16 %v1081, %v1080
    %v1093 = vpack.c.b16 %v1083, %v1082
    %v1094 = vpack.c.b16 %v1085, %v1084
    %v1095 = vpack.c.b16 %v1087, %v1086
    %1104 = vmatpush.bf16.msra.mxu0 %v1095
    %1105 = vmatpush.bf16.msra.mxu0 %v1094
    %1106 = vmatpush.bf16.msra.mxu0 %v1093
    %1107 = vmatpush.bf16.msra.mxu0 %v1092
    %1108 = vmatpush.bf16.msra.mxu0 %v1091
    %1109 = vmatpush.bf16.msra.mxu0 %v1090
    %1110 = vmatpush.bf16.msra.mxu0 %v1089
    %1111 = vmatpush.bf16.msra.mxu0 %v1088
    %1112 = vmatmul.bf16.gmra.mxu0 %v1039
    %v1113 = vpop.f32.mrf.mxu0
    %v1114 = vadd.f32 0.0, %v1113
    %v1115 = vpop.f32.mrf.mxu0
    %1116 = vdwg.mxu0
    %v1117 = vrot.slane %v1114, 4
    %v1118 = vadd.f32 %v1114, %v1117
    %v1119 = vrot.slane %v1118, 2
    %v1120 = vadd.f32 %v1118, %v1119
    %v1121 = vrot.slane %v1120, 1
    %v1122 = vadd.f32 %v1120, %v1121
    %v1123 = vmul.f32 %v1122, %v900
    %v1124 = vsub.f32 %v1114, %v1123
    %v1125 = vmul.f32 %v1124, %v1124
    %v1126 = vrot.slane %v1125, 4
    %v1127 = vadd.f32 %v1125, %v1126
    %v1128 = vrot.slane %v1127, 2
    %v1129 = vadd.f32 %v1127, %v1128
    %v1130 = vrot.slane %v1129, 1
    %v1131 = vadd.f32 %v1129, %v1130
    %v1132 = vmul.f32 %v1131, %v900
    %v1133 = vadd.f32 %v1132, 1e-05
    %v1134 = vrsqrt.pop %v1133
    %v1135 = vmul.f32 %v1134, %v1133
    %v1136 = vmul.f32 %v1135, %v1134
    %v1137 = vmul.f32 0.5, %v1136
    %v1138 = vsub.f32 1.5, %v1137
    %v1139 = vmul.f32 %v1134, %v1138
    %vm1140 = vweird.f32 %v1133
    %vm1141 = vweird.f32 %v1134
    %vm1142 = vmor %vm1140, %vm1141
    %v1143 = vsel %vm1142, %v1134, %v1139
    %v1144 = vmul.f32 %v1124, %v1143
    %1145 = vst [vmem:[%s9] sm:$0xff] %v1144
    %v1146 = vpack.c.bf16 %v1144, %v1144
    %v1147 = vld [vmem:[%s6] sm:$0xf]
    %v1148 = vld [vmem:[%s6 + $0x4] sm:$0xf]
    %v1149 = vld [vmem:[%s6 + $0x8] sm:$0xf]
    %v1150 = vld [vmem:[%s6 + $0xc] sm:$0xf]
    %v1151 = vld [vmem:[%s6 + $0x10] sm:$0xf]
    %v1152 = vld [vmem:[%s6 + $0x14] sm:$0xf]
    %v1153 = vld [vmem:[%s6 + $0x18] sm:$0xf]
    %v1154 = vld [vmem:[%s6 + $0x1c] sm:$0xf]
    %v1155 = vld [vmem:[%s6 + $0x20] sm:$0xf]
    %v1156 = vld [vmem:[%s6 + $0x24] sm:$0xf]
    %v1157 = vld [vmem:[%s6 + $0x28] sm:$0xf]
    %v1158 = vld [vmem:[%s6 + $0x2c] sm:$0xf]
    %v1159 = vld [vmem:[%s6 + $0x30] sm:$0xf]
    %v1160 = vld [vmem:[%s6 + $0x34] sm:$0xf]
    %v1161 = vld [vmem:[%s6 + $0x38] sm:$0xf]
    %v1162 = vld [vmem:[%s6 + $0x3c] sm:$0xf]
    %v1179 = vunpack.c.l.b16 %v1147
    %v1180 = vunpack.c.l.b16 %v1148
    %v1181 = vunpack.c.l.b16 %v1149
    %v1182 = vunpack.c.l.b16 %v1150
    %v1183 = vunpack.c.l.b16 %v1151
    %v1184 = vunpack.c.l.b16 %v1152
    %v1185 = vunpack.c.l.b16 %v1153
    %v1186 = vunpack.c.l.b16 %v1154
    %v1187 = vunpack.c.l.b16 %v1155
    %v1188 = vunpack.c.l.b16 %v1156
    %v1189 = vunpack.c.l.b16 %v1157
    %v1190 = vunpack.c.l.b16 %v1158
    %v1191 = vunpack.c.l.b16 %v1159
    %v1192 = vunpack.c.l.b16 %v1160
    %v1193 = vunpack.c.l.b16 %v1161
    %v1194 = vunpack.c.l.b16 %v1162
    %v1195 = vpack.c.b16 %v1180, %v1179
    %v1196 = vpack.c.b16 %v1182, %v1181
    %v1197 = vpack.c.b16 %v1184, %v1183
    %v1198 = vpack.c.b16 %v1186, %v1185
    %v1199 = vpack.c.b16 %v1188, %v1187
    %v1200 = vpack.c.b16 %v1190, %v1189
    %v1201 = vpack.c.b16 %v1192, %v1191
    %v1202 = vpack.c.b16 %v1194, %v1193
    %1211 = vmatpush.bf16.msra.mxu0 %v1202
    %1212 = vmatpush.bf16.msra.mxu0 %v1201
    %1213 = vmatpush.bf16.msra.mxu0 %v1200
    %1214 = vmatpush.bf16.msra.mxu0 %v1199
    %1215 = vmatpush.bf16.msra.mxu0 %v1198
    %1216 = vmatpush.bf16.msra.mxu0 %v1197
    %1217 = vmatpush.bf16.msra.mxu0 %v1196
    %1218 = vmatpush.bf16.msra.mxu0 %v1195
    %1219 = vmatmul.bf16.gmra.mxu0 %v1146
    %v1220 = vpop.f32.mrf.mxu0
    %v1221 = vadd.f32 0.0, %v1220
    %v1222 = vpop.f32.mrf.mxu0
    %1223 = vdwg.mxu0
    %v1224 = vrot.slane %v1221, 4
    %v1225 = vadd.f32 %v1221, %v1224
    %v1226 = vrot.slane %v1225, 2
    %v1227 = vadd.f32 %v1225, %v1226
    %v1228 = vrot.slane %v1227, 1
    %v1229 = vadd.f32 %v1227, %v1228
    %v1230 = vmul.f32 %v1229, %v900
    %v1231 = vsub.f32 %v1221, %v1230
    %v1232 = vmul.f32 %v1231, %v1231
    %v1233 = vrot.slane %v1232, 4
    %v1234 = vadd.f32 %v1232, %v1233
    %v1235 = vrot.slane %v1234, 2
    %v1236 = vadd.f32 %v1234, %v1235
    %v1237 = vrot.slane %v1236, 1
    %v1238 = vadd.f32 %v1236, %v1237
    %v1239 = vmul.f32 %v1238, %v900
    %v1240 = vadd.f32 %v1239, 1e-05
    %v1241 = vrsqrt.pop %v1240
    %v1242 = vmul.f32 %v1241, %v1240
    %v1243 = vmul.f32 %v1242, %v1241
    %v1244 = vmul.f32 0.5, %v1243
    %v1245 = vsub.f32 1.5, %v1244
    %v1246 = vmul.f32 %v1241, %v1245
    %vm1247 = vweird.f32 %v1240
    %vm1248 = vweird.f32 %v1241
    %vm1249 = vmor %vm1247, %vm1248
    %v1250 = vsel %vm1249, %v1241, %v1246
    %v1251 = vmul.f32 %v1231, %v1250
    %v1252 = vperm.slane %v806, 0
    %v1253 = vmul.f32 %v1251, %v1252
    %v1254 = vperm.slane %v807, 0
    %v1255 = vadd.f32 %v1253, %v1254
    %v1256 = vmax.f32 %v1255, 0.0
    %v1257 = vpack.c.bf16 %v1256, %v1256
    %v1258 = vld [vmem:[%s7] sm:$0xf]
    %v1259 = vld [vmem:[%s7 + $0x4] sm:$0xf]
    %v1260 = vld [vmem:[%s7 + $0x8] sm:$0xf]
    %v1261 = vld [vmem:[%s7 + $0xc] sm:$0xf]
    %v1262 = vld [vmem:[%s7 + $0x10] sm:$0xf]
    %v1263 = vld [vmem:[%s7 + $0x14] sm:$0xf]
    %v1264 = vld [vmem:[%s7 + $0x18] sm:$0xf]
    %v1265 = vld [vmem:[%s7 + $0x1c] sm:$0xf]
    %v1266 = vld [vmem:[%s7 + $0x20] sm:$0xf]
    %v1267 = vld [vmem:[%s7 + $0x24] sm:$0xf]
    %v1268 = vld [vmem:[%s7 + $0x28] sm:$0xf]
    %v1269 = vld [vmem:[%s7 + $0x2c] sm:$0xf]
    %v1270 = vld [vmem:[%s7 + $0x30] sm:$0xf]
    %v1271 = vld [vmem:[%s7 + $0x34] sm:$0xf]
    %v1272 = vld [vmem:[%s7 + $0x38] sm:$0xf]
    %v1273 = vld [vmem:[%s7 + $0x3c] sm:$0xf]
    %v1274 = vperm.slane %v808, 0
    %v1291 = vunpack.c.l.b16 %v1258
    %v1292 = vunpack.c.l.b16 %v1259
    %v1293 = vunpack.c.l.b16 %v1260
    %v1294 = vunpack.c.l.b16 %v1261
    %v1295 = vunpack.c.l.b16 %v1262
    %v1296 = vunpack.c.l.b16 %v1263
    %v1297 = vunpack.c.l.b16 %v1264
    %v1298 = vunpack.c.l.b16 %v1265
    %v1299 = vunpack.c.l.b16 %v1266
    %v1300 = vunpack.c.l.b16 %v1267
    %v1301 = vunpack.c.l.b16 %v1268
    %v1302 = vunpack.c.l.b16 %v1269
    %v1303 = vunpack.c.l.b16 %v1270
    %v1304 = vunpack.c.l.b16 %v1271
    %v1305 = vunpack.c.l.b16 %v1272
    %v1306 = vunpack.c.l.b16 %v1273
    %v1307 = vpack.c.b16 %v1292, %v1291
    %v1308 = vpack.c.b16 %v1294, %v1293
    %v1309 = vpack.c.b16 %v1296, %v1295
    %v1310 = vpack.c.b16 %v1298, %v1297
    %v1311 = vpack.c.b16 %v1300, %v1299
    %v1312 = vpack.c.b16 %v1302, %v1301
    %v1313 = vpack.c.b16 %v1304, %v1303
    %v1314 = vpack.c.b16 %v1306, %v1305
    %1323 = vmatpush.bf16.msra.mxu0 %v1314
    %1324 = vmatpush.bf16.msra.mxu0 %v1313
    %1325 = vmatpush.bf16.msra.mxu0 %v1312
    %1326 = vmatpush.bf16.msra.mxu0 %v1311
    %1327 = vmatpush.bf16.msra.mxu0 %v1310
    %1328 = vmatpush.bf16.msra.mxu0 %v1309
    %1329 = vmatpush.bf16.msra.mxu0 %v1308
    %1330 = vmatpush.bf16.msra.mxu0 %v1307
    %1331 = vmatmul.bf16.gmra.mxu0 %v1257
    %v1332 = vpop.f32.mrf.mxu0
    %v1333 = vadd.f32 %v1274, %v1332
    %v1334 = vpop.f32.mrf.mxu0
    %1335 = vdwg.mxu0
    %1336 = vst [vmem:[%s10] sm:$0xff] %v1333
    %v1337 = vld [vmem:[%s675] sm:$0xff]
    %v1338 = vpack.c.bf16 %v1337, %v1337
    %v1339 = vld [vmem:[%s3] sm:$0xf]
    %v1340 = vld [vmem:[%s3 + $0x4] sm:$0xf]
    %v1341 = vld [vmem:[%s3 + $0x8] sm:$0xf]
    %v1342 = vld [vmem:[%s3 + $0xc] sm:$0xf]
    %v1343 = vld [vmem:[%s3 + $0x10] sm:$0xf]
    %v1344 = vld [vmem:[%s3 + $0x14] sm:$0xf]
    %v1345 = vld [vmem:[%s3 + $0x18] sm:$0xf]
    %v1346 = vld [vmem:[%s3 + $0x1c] sm:$0xf]
    %v1347 = vld [vmem:[%s3 + $0x20] sm:$0xf]
    %v1348 = vld [vmem:[%s3 + $0x24] sm:$0xf]
    %v1349 = vld [vmem:[%s3 + $0x28] sm:$0xf]
    %v1350 = vld [vmem:[%s3 + $0x2c] sm:$0xf]
    %v1351 = vld [vmem:[%s3 + $0x30] sm:$0xf]
    %v1352 = vld [vmem:[%s3 + $0x34] sm:$0xf]
    %v1353 = vld [vmem:[%s3 + $0x38] sm:$0xf]
    %v1354 = vld [vmem:[%s3 + $0x3c] sm:$0xf]
    %v1371 = vunpack.c.l.b16 %v1339
    %v1372 = vunpack.c.l.b16 %v1340
    %v1373 = vunpack.c.l.b16 %v1341
    %v1374 = vunpack.c.l.b16 %v1342
    %v1375 = vunpack.c.l.b16 %v1343
    %v1376 = vunpack.c.l.b16 %v1344
    %v1377 = vunpack.c.l.b16 %v1345
    %v1378 = vunpack.c.l.b16 %v1346
    %v1379 = vunpack.c.l.b16 %v1347
    %v1380 = vunpack.c.l.b16 %v1348
    %v1381 = vunpack.c.l.b16 %v1349
    %v1382 = vunpack.c.l.b16 %v1350
    %v1383 = vunpack.c.l.b16 %v1351
    %v1384 = vunpack.c.l.b16 %v1352
    %v1385 = vunpack.c.l.b16 %v1353
    %v1386 = vunpack.c.l.b16 %v1354
    %v1387 = vpack.c.b16 %v1372, %v1371
    %v1388 = vpack.c.b16 %v1374, %v1373
    %v1389 = vpack.c.b16 %v1376, %v1375
    %v1390 = vpack.c.b16 %v1378, %v1377
    %v1391 = vpack.c.b16 %v1380, %v1379
    %v1392 = vpack.c.b16 %v1382, %v1381
    %v1393 = vpack.c.b16 %v1384, %v1383
    %v1394 = vpack.c.b16 %v1386, %v1385
    %1403 = vmatpush.bf16.msra.mxu0 %v1394
    %1404 = vmatpush.bf16.msra.mxu0 %v1393
    %1405 = vmatpush.bf16.msra.mxu0 %v1392
    %1406 = vmatpush.bf16.msra.mxu0 %v1391
    %1407 = vmatpush.bf16.msra.mxu0 %v1390
    %1408 = vmatpush.bf16.msra.mxu0 %v1389
    %1409 = vmatpush.bf16.msra.mxu0 %v1388
    %1410 = vmatpush.bf16.msra.mxu0 %v1387
    %1411 = vmatmul.bf16.gmra.mxu0 %v1338
    %v1412 = vpop.f32.mrf.mxu0
    %v1413 = vadd.f32 0.0, %v1412
    %v1414 = vpop.f32.mrf.mxu0
    %1415 = vdwg.mxu0
    %v1416 = vrot.slane %v1413, 4
    %v1417 = vadd.f32 %v1413, %v1416
    %v1418 = vrot.slane %v1417, 2
    %v1419 = vadd.f32 %v1417, %v1418
    %v1420 = vrot.slane %v1419, 1
    %v1421 = vadd.f32 %v1419, %v1420
    %v1422 = vmul.f32 %v1421, %v900
    %v1423 = vsub.f32 %v1413, %v1422
    %v1424 = vmul.f32 %v1423, %v1423
    %v1425 = vrot.slane %v1424, 4
    %v1426 = vadd.f32 %v1424, %v1425
    %v1427 = vrot.slane %v1426, 2
    %v1428 = vadd.f32 %v1426, %v1427
    %v1429 = vrot.slane %v1428, 1
    %v1430 = vadd.f32 %v1428, %v1429
    %v1431 = vmul.f32 %v1430, %v900
    %v1432 = vadd.f32 %v1431, 1e-05
    %v1433 = vrsqrt.pop %v1432
    %v1434 = vmul.f32 %v1433, %v1432
    %v1435 = vmul.f32 %v1434, %v1433
    %v1436 = vmul.f32 0.5, %v1435
    %v1437 = vsub.f32 1.5, %v1436
    %v1438 = vmul.f32 %v1433, %v1437
    %vm1439 = vweird.f32 %v1432
    %vm1440 = vweird.f32 %v1433
    %vm1441 = vmor %vm1439, %vm1440
    %v1442 = vsel %vm1441, %v1433, %v1438
    %v1443 = vmul.f32 %v1423, %v1442
    %v1444 = vmul.f32 %v1443, %v923
    %v1445 = vadd.f32 %v1444, %v925
    %v1446 = vmax.f32 %v1445, 0.0
    %v1447 = vpack.c.bf16 %v1446, %v1446
    %v1448 = vld [vmem:[%s4] sm:$0xf]
    %v1449 = vld [vmem:[%s4 + $0x4] sm:$0xf]
    %v1450 = vld [vmem:[%s4 + $0x8] sm:$0xf]
    %v1451 = vld [vmem:[%s4 + $0xc] sm:$0xf]
    %v1452 = vld [vmem:[%s4 + $0x10] sm:$0xf]
    %v1453 = vld [vmem:[%s4 + $0x14] sm:$0xf]
    %v1454 = vld [vmem:[%s4 + $0x18] sm:$0xf]
    %v1455 = vld [vmem:[%s4 + $0x1c] sm:$0xf]
    %v1456 = vld [vmem:[%s4 + $0x20] sm:$0xf]
    %v1457 = vld [vmem:[%s4 + $0x24] sm:$0xf]
    %v1458 = vld [vmem:[%s4 + $0x28] sm:$0xf]
    %v1459 = vld [vmem:[%s4 + $0x2c] sm:$0xf]
    %v1460 = vld [vmem:[%s4 + $0x30] sm:$0xf]
    %v1461 = vld [vmem:[%s4 + $0x34] sm:$0xf]
    %v1462 = vld [vmem:[%s4 + $0x38] sm:$0xf]
    %v1463 = vld [vmem:[%s4 + $0x3c] sm:$0xf]
    %v1480 = vunpack.c.l.b16 %v1448
    %v1481 = vunpack.c.l.b16 %v1449
    %v1482 = vunpack.c.l.b16 %v1450
    %v1483 = vunpack.c.l.b16 %v1451
    %v1484 = vunpack.c.l.b16 %v1452
    %v1485 = vunpack.c.l.b16 %v1453
    %v1486 = vunpack.c.l.b16 %v1454
    %v1487 = vunpack.c.l.b16 %v1455
    %v1488 = vunpack.c.l.b16 %v1456
    %v1489 = vunpack.c.l.b16 %v1457
    %v1490 = vunpack.c.l.b16 %v1458
    %v1491 = vunpack.c.l.b16 %v1459
    %v1492 = vunpack.c.l.b16 %v1460
    %v1493 = vunpack.c.l.b16 %v1461
    %v1494 = vunpack.c.l.b16 %v1462
    %v1495 = vunpack.c.l.b16 %v1463
    %v1496 = vpack.c.b16 %v1481, %v1480
    %v1497 = vpack.c.b16 %v1483, %v1482
    %v1498 = vpack.c.b16 %v1485, %v1484
    %v1499 = vpack.c.b16 %v1487, %v1486
    %v1500 = vpack.c.b16 %v1489, %v1488
    %v1501 = vpack.c.b16 %v1491, %v1490
    %v1502 = vpack.c.b16 %v1493, %v1492
    %v1503 = vpack.c.b16 %v1495, %v1494
    %1512 = vmatpush.bf16.msra.mxu0 %v1503
    %1513 = vmatpush.bf16.msra.mxu0 %v1502
    %1514 = vmatpush.bf16.msra.mxu0 %v1501
    %1515 = vmatpush.bf16.msra.mxu0 %v1500
    %1516 = vmatpush.bf16.msra.mxu0 %v1499
    %1517 = vmatpush.bf16.msra.mxu0 %v1498
    %1518 = vmatpush.bf16.msra.mxu0 %v1497
    %1519 = vmatpush.bf16.msra.mxu0 %v1496
    %1520 = vmatmul.bf16.gmra.mxu0 %v1447
    %v1521 = vpop.f32.mrf.mxu0
    %v1522 = vadd.f32 0.0, %v1521
    %v1523 = vpop.f32.mrf.mxu0
    %1524 = vdwg.mxu0
    %v1525 = vrot.slane %v1522, 4
    %v1526 = vadd.f32 %v1522, %v1525
    %v1527 = vrot.slane %v1526, 2
    %v1528 = vadd.f32 %v1526, %v1527
    %v1529 = vrot.slane %v1528, 1
    %v1530 = vadd.f32 %v1528, %v1529
    %v1531 = vmul.f32 %v1530, %v900
    %v1532 = vsub.f32 %v1522, %v1531
    %v1533 = vmul.f32 %v1532, %v1532
    %v1534 = vrot.slane %v1533, 4
    %v1535 = vadd.f32 %v1533, %v1534
    %v1536 = vrot.slane %v1535, 2
    %v1537 = vadd.f32 %v1535, %v1536
    %v1538 = vrot.slane %v1537, 1
    %v1539 = vadd.f32 %v1537, %v1538
    %v1540 = vmul.f32 %v1539, %v900
    %v1541 = vadd.f32 %v1540, 1e-05
    %v1542 = vrsqrt.pop %v1541
    %v1543 = vmul.f32 %v1542, %v1541
    %v1544 = vmul.f32 %v1543, %v1542
    %v1545 = vmul.f32 0.5, %v1544
    %v1546 = vsub.f32 1.5, %v1545
    %v1547 = vmul.f32 %v1542, %v1546
    %vm1548 = vweird.f32 %v1541
    %vm1549 = vweird.f32 %v1542
    %vm1550 = vmor %vm1548, %vm1549
    %v1551 = vsel %vm1550, %v1542, %v1547
    %v1552 = vmul.f32 %v1532, %v1551
    %v1553 = vmul.f32 %v1552, %v1034
    %v1554 = vadd.f32 %v1553, %v1036
    %v1555 = vmax.f32 %v1554, 0.0
    %v1556 = vpack.c.bf16 %v1555, %v1555
    %v1557 = vld [vmem:[%s5] sm:$0xf]
    %v1558 = vld [vmem:[%s5 + $0x4] sm:$0xf]
    %v1559 = vld [vmem:[%s5 + $0x8] sm:$0xf]
    %v1560 = vld [vmem:[%s5 + $0xc] sm:$0xf]
    %v1561 = vld [vmem:[%s5 + $0x10] sm:$0xf]
    %v1562 = vld [vmem:[%s5 + $0x14] sm:$0xf]
    %v1563 = vld [vmem:[%s5 + $0x18] sm:$0xf]
    %v1564 = vld [vmem:[%s5 + $0x1c] sm:$0xf]
    %v1565 = vld [vmem:[%s5 + $0x20] sm:$0xf]
    %v1566 = vld [vmem:[%s5 + $0x24] sm:$0xf]
    %v1567 = vld [vmem:[%s5 + $0x28] sm:$0xf]
    %v1568 = vld [vmem:[%s5 + $0x2c] sm:$0xf]
    %v1569 = vld [vmem:[%s5 + $0x30] sm:$0xf]
    %v1570 = vld [vmem:[%s5 + $0x34] sm:$0xf]
    %v1571 = vld [vmem:[%s5 + $0x38] sm:$0xf]
    %v1572 = vld [vmem:[%s5 + $0x3c] sm:$0xf]
    %v1589 = vunpack.c.l.b16 %v1557
    %v1590 = vunpack.c.l.b16 %v1558
    %v1591 = vunpack.c.l.b16 %v1559
    %v1592 = vunpack.c.l.b16 %v1560
    %v1593 = vunpack.c.l.b16 %v1561
    %v1594 = vunpack.c.l.b16 %v1562
    %v1595 = vunpack.c.l.b16 %v1563
    %v1596 = vunpack.c.l.b16 %v1564
    %v1597 = vunpack.c.l.b16 %v1565
    %v1598 = vunpack.c.l.b16 %v1566
    %v1599 = vunpack.c.l.b16 %v1567
    %v1600 = vunpack.c.l.b16 %v1568
    %v1601 = vunpack.c.l.b16 %v1569
    %v1602 = vunpack.c.l.b16 %v1570
    %v1603 = vunpack.c.l.b16 %v1571
    %v1604 = vunpack.c.l.b16 %v1572
    %v1605 = vpack.c.b16 %v1590, %v1589
    %v1606 = vpack.c.b16 %v1592, %v1591
    %v1607 = vpack.c.b16 %v1594, %v1593
    %v1608 = vpack.c.b16 %v1596, %v1595
    %v1609 = vpack.c.b16 %v1598, %v1597
    %v1610 = vpack.c.b16 %v1600, %v1599
    %v1611 = vpack.c.b16 %v1602, %v1601
    %v1612 = vpack.c.b16 %v1604, %v1603
    %1621 = vmatpush.bf16.msra.mxu0 %v1612
    %1622 = vmatpush.bf16.msra.mxu0 %v1611
    %1623 = vmatpush.bf16.msra.mxu0 %v1610
    %1624 = vmatpush.bf16.msra.mxu0 %v1609
    %1625 = vmatpush.bf16.msra.mxu0 %v1608
    %1626 = vmatpush.bf16.msra.mxu0 %v1607
    %1627 = vmatpush.bf16.msra.mxu0 %v1606
    %1628 = vmatpush.bf16.msra.mxu0 %v1605
    %1629 = vmatmul.bf16.gmra.mxu0 %v1556
    %v1630 = vpop.f32.mrf.mxu0
    %v1631 = vadd.f32 0.0, %v1630
    %v1632 = vpop.f32.mrf.mxu0
    %1633 = vdwg.mxu0
    %v1634 = vrot.slane %v1631, 4
    %v1635 = vadd.f32 %v1631, %v1634
    %v1636 = vrot.slane %v1635, 2
    %v1637 = vadd.f32 %v1635, %v1636
    %v1638 = vrot.slane %v1637, 1
    %v1639 = vadd.f32 %v1637, %v1638
    %v1640 = vmul.f32 %v1639, %v900
    %v1641 = vsub.f32 %v1631, %v1640
    %v1642 = vmul.f32 %v1641, %v1641
    %v1643 = vrot.slane %v1642, 4
    %v1644 = vadd.f32 %v1642, %v1643
    %v1645 = vrot.slane %v1644, 2
    %v1646 = vadd.f32 %v1644, %v1645
    %v1647 = vrot.slane %v1646, 1
    %v1648 = vadd.f32 %v1646, %v1647
    %v1649 = vmul.f32 %v1648, %v900
    %v1650 = vadd.f32 %v1649, 1e-05
    %v1651 = vrsqrt.pop %v1650
    %v1652 = vmul.f32 %v1651, %v1650
    %v1653 = vmul.f32 %v1652, %v1651
    %v1654 = vmul.f32 0.5, %v1653
    %v1655 = vsub.f32 1.5, %v1654
    %v1656 = vmul.f32 %v1651, %v1655
    %vm1657 = vweird.f32 %v1650
    %vm1658 = vweird.f32 %v1651
    %vm1659 = vmor %vm1657, %vm1658
    %v1660 = vsel %vm1659, %v1651, %v1656
    %v1661 = vmul.f32 %v1641, %v1660
    %1662 = vst [vmem:[%s9 + $0x8] sm:$0xff] %v1661
    %v1663 = vpack.c.bf16 %v1661, %v1661
    %v1664 = vld [vmem:[%s6] sm:$0xf]
    %v1665 = vld [vmem:[%s6 + $0x4] sm:$0xf]
    %v1666 = vld [vmem:[%s6 + $0x8] sm:$0xf]
    %v1667 = vld [vmem:[%s6 + $0xc] sm:$0xf]
    %v1668 = vld [vmem:[%s6 + $0x10] sm:$0xf]
    %v1669 = vld [vmem:[%s6 + $0x14] sm:$0xf]
    %v1670 = vld [vmem:[%s6 + $0x18] sm:$0xf]
    %v1671 = vld [vmem:[%s6 + $0x1c] sm:$0xf]
    %v1672 = vld [vmem:[%s6 + $0x20] sm:$0xf]
    %v1673 = vld [vmem:[%s6 + $0x24] sm:$0xf]
    %v1674 = vld [vmem:[%s6 + $0x28] sm:$0xf]
    %v1675 = vld [vmem:[%s6 + $0x2c] sm:$0xf]
    %v1676 = vld [vmem:[%s6 + $0x30] sm:$0xf]
    %v1677 = vld [vmem:[%s6 + $0x34] sm:$0xf]
    %v1678 = vld [vmem:[%s6 + $0x38] sm:$0xf]
    %v1679 = vld [vmem:[%s6 + $0x3c] sm:$0xf]
    %v1696 = vunpack.c.l.b16 %v1664
    %v1697 = vunpack.c.l.b16 %v1665
    %v1698 = vunpack.c.l.b16 %v1666
    %v1699 = vunpack.c.l.b16 %v1667
    %v1700 = vunpack.c.l.b16 %v1668
    %v1701 = vunpack.c.l.b16 %v1669
    %v1702 = vunpack.c.l.b16 %v1670
    %v1703 = vunpack.c.l.b16 %v1671
    %v1704 = vunpack.c.l.b16 %v1672
    %v1705 = vunpack.c.l.b16 %v1673
    %v1706 = vunpack.c.l.b16 %v1674
    %v1707 = vunpack.c.l.b16 %v1675
    %v1708 = vunpack.c.l.b16 %v1676
    %v1709 = vunpack.c.l.b16 %v1677
    %v1710 = vunpack.c.l.b16 %v1678
    %v1711 = vunpack.c.l.b16 %v1679
    %v1712 = vpack.c.b16 %v1697, %v1696
    %v1713 = vpack.c.b16 %v1699, %v1698
    %v1714 = vpack.c.b16 %v1701, %v1700
    %v1715 = vpack.c.b16 %v1703, %v1702
    %v1716 = vpack.c.b16 %v1705, %v1704
    %v1717 = vpack.c.b16 %v1707, %v1706
    %v1718 = vpack.c.b16 %v1709, %v1708
    %v1719 = vpack.c.b16 %v1711, %v1710
    %1728 = vmatpush.bf16.msra.mxu0 %v1719
    %1729 = vmatpush.bf16.msra.mxu0 %v1718
    %1730 = vmatpush.bf16.msra.mxu0 %v1717
    %1731 = vmatpush.bf16.msra.mxu0 %v1716
    %1732 = vmatpush.bf16.msra.mxu0 %v1715
    %1733 = vmatpush.bf16.msra.mxu0 %v1714
    %1734 = vmatpush.bf16.msra.mxu0 %v1713
    %1735 = vmatpush.bf16.msra.mxu0 %v1712
    %1736 = vmatmul.bf16.gmra.mxu0 %v1663
    %v1737 = vpop.f32.mrf.mxu0
    %v1738 = vadd.f32 0.0, %v1737
    %v1739 = vpop.f32.mrf.mxu0
    %1740 = vdwg.mxu0
    %v1741 = vrot.slane %v1738, 4
    %v1742 = vadd.f32 %v1738, %v1741
    %v1743 = vrot.slane %v1742, 2
    %v1744 = vadd.f32 %v1742, %v1743
    %v1745 = vrot.slane %v1744, 1
    %v1746 = vadd.f32 %v1744, %v1745
    %v1747 = vmul.f32 %v1746, %v900
    %v1748 = vsub.f32 %v1738, %v1747
    %v1749 = vmul.f32 %v1748, %v1748
    %v1750 = vrot.slane %v1749, 4
    %v1751 = vadd.f32 %v1749, %v1750
    %v1752 = vrot.slane %v1751, 2
    %v1753 = vadd.f32 %v1751, %v1752
    %v1754 = vrot.slane %v1753, 1
    %v1755 = vadd.f32 %v1753, %v1754
    %v1756 = vmul.f32 %v1755, %v900
    %v1757 = vadd.f32 %v1756, 1e-05
    %v1758 = vrsqrt.pop %v1757
    %v1759 = vmul.f32 %v1758, %v1757
    %v1760 = vmul.f32 %v1759, %v1758
    %v1761 = vmul.f32 0.5, %v1760
    %v1762 = vsub.f32 1.5, %v1761
    %v1763 = vmul.f32 %v1758, %v1762
    %vm1764 = vweird.f32 %v1757
    %vm1765 = vweird.f32 %v1758
    %vm1766 = vmor %vm1764, %vm1765
    %v1767 = vsel %vm1766, %v1758, %v1763
    %v1768 = vmul.f32 %v1748, %v1767
    %v1769 = vmul.f32 %v1768, %v1252
    %v1770 = vadd.f32 %v1769, %v1254
    %v1771 = vmax.f32 %v1770, 0.0
    %v1772 = vpack.c.bf16 %v1771, %v1771
    %v1773 = vld [vmem:[%s7] sm:$0xf]
    %v1774 = vld [vmem:[%s7 + $0x4] sm:$0xf]
    %v1775 = vld [vmem:[%s7 + $0x8] sm:$0xf]
    %v1776 = vld [vmem:[%s7 + $0xc] sm:$0xf]
    %v1777 = vld [vmem:[%s7 + $0x10] sm:$0xf]
    %v1778 = vld [vmem:[%s7 + $0x14] sm:$0xf]
    %v1779 = vld [vmem:[%s7 + $0x18] sm:$0xf]
    %v1780 = vld [vmem:[%s7 + $0x1c] sm:$0xf]
    %v1781 = vld [vmem:[%s7 + $0x20] sm:$0xf]
    %v1782 = vld [vmem:[%s7 + $0x24] sm:$0xf]
    %v1783 = vld [vmem:[%s7 + $0x28] sm:$0xf]
    %v1784 = vld [vmem:[%s7 + $0x2c] sm:$0xf]
    %v1785 = vld [vmem:[%s7 + $0x30] sm:$0xf]
    %v1786 = vld [vmem:[%s7 + $0x34] sm:$0xf]
    %v1787 = vld [vmem:[%s7 + $0x38] sm:$0xf]
    %v1788 = vld [vmem:[%s7 + $0x3c] sm:$0xf]
    %v1805 = vunpack.c.l.b16 %v1773
    %v1806 = vunpack.c.l.b16 %v1774
    %v1807 = vunpack.c.l.b16 %v1775
    %v1808 = vunpack.c.l.b16 %v1776
    %v1809 = vunpack.c.l.b16 %v1777
    %v1810 = vunpack.c.l.b16 %v1778
    %v1811 = vunpack.c.l.b16 %v1779
    %v1812 = vunpack.c.l.b16 %v1780
    %v1813 = vunpack.c.l.b16 %v1781
    %v1814 = vunpack.c.l.b16 %v1782
    %v1815 = vunpack.c.l.b16 %v1783
    %v1816 = vunpack.c.l.b16 %v1784
    %v1817 = vunpack.c.l.b16 %v1785
    %v1818 = vunpack.c.l.b16 %v1786
    %v1819 = vunpack.c.l.b16 %v1787
    %v1820 = vunpack.c.l.b16 %v1788
    %v1821 = vpack.c.b16 %v1806, %v1805
    %v1822 = vpack.c.b16 %v1808, %v1807
    %v1823 = vpack.c.b16 %v1810, %v1809
    %v1824 = vpack.c.b16 %v1812, %v1811
    %v1825 = vpack.c.b16 %v1814, %v1813
    %v1826 = vpack.c.b16 %v1816, %v1815
    %v1827 = vpack.c.b16 %v1818, %v1817
    %v1828 = vpack.c.b16 %v1820, %v1819
    %1837 = vmatpush.bf16.msra.mxu0 %v1828
    %1838 = vmatpush.bf16.msra.mxu0 %v1827
    %1839 = vmatpush.bf16.msra.mxu0 %v1826
    %1840 = vmatpush.bf16.msra.mxu0 %v1825
    %1841 = vmatpush.bf16.msra.mxu0 %v1824
    %1842 = vmatpush.bf16.msra.mxu0 %v1823
    %1843 = vmatpush.bf16.msra.mxu0 %v1822
    %1844 = vmatpush.bf16.msra.mxu0 %v1821
    %1845 = vmatmul.bf16.gmra.mxu0 %v1772
    %v1846 = vpop.f32.mrf.mxu0
    %v1847 = vadd.f32 %v1274, %v1846
    %v1848 = vpop.f32.mrf.mxu0
    %1849 = vdwg.mxu0
    %1850 = vst [vmem:[%s10 + $0x8] sm:$0xff] %v1847
  $region45: #{simsiam_forward.1} parent=0 // pred_fallthru
    _
  // Predicated region
  $region46: #{simsiam_forward.1} parent=0 // pred_check
    _
  $region47: #{simsiam_forward.1} parent=0 // pred_check_branch
    %1852 = sbr.rel (0) target = $region49
  $region48: #{simsiam_forward.1} parent=0 // pred_region
    _
  $region49: #{simsiam_forward.1} parent=0 // pred_fallthru
    _
  // Predicated region
  $region50: #{simsiam_forward.1} parent=0 // pred_check
    _
  $region51: #{simsiam_forward.1} parent=0 // pred_check_branch
    %1854 = sbr.rel (0) target = $region53
  $region52: #{simsiam_forward.1} parent=0 // pred_region
    _
  $region53: #{simsiam_forward.1} parent=0 // pred_fallthru
    _
  // Predicated region
  $region54: #{simsiam_forward.1} parent=0 // pred_check
    _
  $region55: #{simsiam_forward.1} parent=0 // pred_check_branch
    %1856 = sbr.rel (0) target = $region57
  $region56: #{simsiam_forward.1} parent=0 // pred_region
    _
  $region57: #{simsiam_forward.1} parent=0 // pred_fallthru
    _
  // Predicated region
  $region58: #{simsiam_forward.1} parent=0 // pred_check
    _
  $region59: #{simsiam_forward.1} parent=0 // pred_check_branch
    %1858 = sbr.rel (0) target = $region61
  $region60: #{simsiam_forward.1} parent=0 // pred_region
    _
  $region61: #{simsiam_forward.1} parent=0 // pred_fallthru
    _

</llo_original>
